<compile_context>
chip_gen: v6e
topology: v6e:2x2x1
jax: 0.10.0
libtpu: 0.0.40
codegen_flags: <defaults>
</compile_context>

<pallas_src>
import functools

import numpy as np
import jax
import jax.numpy as jnp
from jax import lax
from jax.experimental import pallas as pl
from jax.experimental.pallas import tpu as pltpu

_CompilerParams = getattr(pltpu, "CompilerParams", None)
if _CompilerParams is None:  # pragma: no cover - very old jax
    _CompilerParams = getattr(pltpu, "TPUCompilerParams")


# ----------------------------------------------------------------------------
# small helpers
# ----------------------------------------------------------------------------
def _round_up(x, m):
    return (x + m - 1) // m * m


@functools.lru_cache(maxsize=None)
def _vmem_limit_bytes():
    """~3/4 of physical VMEM: 96 MiB on 128-MiB parts (v5e/v6e), 48 MiB on v7x."""
    cap = 128 * 1024 * 1024
    try:
        info = pltpu.get_tpu_info()
        cap = int(getattr(info, "vmem_capacity_bytes", cap) or cap)
    except Exception:
        pass
    return int(cap * 3 // 4)


def _conv_row_cap(cin, cout, k, wp):
    """Max flat output rows per conv tile so slab/acc/output/dot-temps fit."""
    p = (k - 1) // 2
    limit = _vmem_limit_bytes()
    w_bytes = 2 * k * k * cin * cout * 2            # weights (double buffered)
    budget = int(limit * 0.6) - w_bytes - (4 << 20)
    per_row = 6 * cin + 24 * cout                   # xbuf(2x)+sbuf + acc+out(2x)+temps
    fixed = (2 * (2 * p + 4) + 2 * p) * wp * cin * 2
    cap = (budget - fixed) // per_row
    return max(8 * wp, cap)


def _largest_divisor(x, cap):
    best = 1
    for d in range(1, x + 1):
        if x % d == 0 and d <= cap:
            best = d
    return best


def _plan_hp(h, p, cap_rows, wp):
    """Padded height for a run of convs: smallest hp >= h+2p whose best
    divisor (under the VMEM row cap) minimizes the number of row tiles."""
    max_th = max(1, cap_rows // wp)
    best = None
    for extra in range(0, 41):
        hp = h + 2 * p + extra
        th = _largest_divisor(hp, max_th)
        key = (hp // th, hp)
        if best is None or key < best[0]:
            best = (key, hp)
    return best[1]


def _pick_tm(rows, cap=2048):
    best = 1
    for d in range(1, min(rows, cap) + 1):
        if rows % d == 0:
            best = d
    return best


def _pick_pool_tile(ho, wo, c):
    best = 1
    for d in range(1, min(ho, 32) + 1):
        if ho % d == 0 and 4 * d * wo * c * 2 <= 4 * 1024 * 1024:
            best = d
    return best


# ----------------------------------------------------------------------------
# padded, flattened activation layout carried between convs of a run
# ----------------------------------------------------------------------------
class PaddedAct:
    """data is (rows, C) bf16, rows = (front + n*hp + back) * wp.  Logical
    pixel (b, y, x) lives at flat row (front + b*hp + p + y)*wp + (p + x).
    All halo rows/cols inside each image's hp x wp window are exact zeros;
    the front/back slack rows are don't-care (only feed masked outputs)."""

    def __init__(self, data, n, h, w, p, wp, hp, front):
        self.data = data
        self.n, self.h, self.w, self.p = n, h, w, p
        self.wp, self.hp, self.front = wp, hp, front


def to_padded(x, p, hp, wp):
    n, h, w, c = x.shape
    xp = jnp.pad(x.astype(jnp.bfloat16),
                 ((0, 0), (p, hp - h - p), (p, wp - w - p), (0, 0)))
    flat = xp.reshape(n * hp * wp, c)
    flat = jnp.pad(flat, ((p * wp, p * wp), (0, 0)))   # front/back DMA slack
    return PaddedAct(flat, n, h, w, p, wp, hp, p)


def padded_to_nhwc(pa, c_valid=None):
    c = pa.data.shape[1]
    x = pa.data[pa.front * pa.wp:(pa.front + pa.n * pa.hp) * pa.wp]
    x = x.reshape(pa.n, pa.hp, pa.wp, c)[:, pa.p:pa.p + pa.h,
                                         pa.p:pa.p + pa.w, :]
    if c_valid is not None and c_valid != c:
        x = x[..., :c_valid]
    return x


# ----------------------------------------------------------------------------
# KxK conv kernel: padded-layout in, padded-layout out (halos zeroed in-kernel)
# ----------------------------------------------------------------------------
@functools.lru_cache(maxsize=None)
def _build_conv(n, h, w, cin, cout, k, relu, hp, wp, front_in):
    p = (k - 1) // 2
    kk = k * k
    cap = _conv_row_cap(cin, cout, k, wp)
    th = _largest_divisor(hp, max(1, cap // wp))   # output H rows per tile
    num_t = hp // th
    tile_rows = th * wp                            # flat rows written per step
    cpr = (th + 2 * p) * wp                        # flat rows DMA'd per step
    DST = 16                                       # slab dest offset (aligned)
    buf_rows = cpr + 2 * DST                       # slack for +-p column shifts
    front_out = _round_up(p, th)
    rows_out = (2 * front_out + n * hp) * wp
    f0 = front_out // th
    seq = (num_t == 1)                             # chain prefetch across batch

    # static W-halo mask (1.0 at valid columns p <= x < w+p), tiled over th rows
    col = np.zeros((wp,), np.float32)
    col[p:p + w] = 1.0
    wmask = jnp.asarray(np.tile(col, th).reshape(tile_rows, 1))

    def kernel(x_hbm, w_ref, b_ref, wm_ref, o_ref, xbuf, sbuf, acc_ref, sem):
        bi = pl.program_id(0)
        t = 0 if seq else pl.program_id(1)
        idx = bi if seq else t
        slot = idx % 2

        def slab(bi_, t_, slot_):
            start = (front_in + bi_ * hp + t_ * th - p) * wp
            if not isinstance(start, int):
                start = pl.multiple_of(start, 8)
            return pltpu.make_async_copy(
                x_hbm.at[pl.ds(start, cpr)],
                xbuf.at[slot_, pl.ds(DST, cpr)],
                sem.at[slot_])

        if seq:
            @pl.when(bi == 0)
            def _():
                slab(0, 0, 0).start()

            @pl.when(bi + 1 < n)          # cross-image prefetch
            def _():
                slab(bi + 1, 0, 1 - slot).start()
        else:
            @pl.when(t == 0)
            def _():
                slab(bi, 0, 0).start()

            @pl.when(t + 1 < num_t)       # within-image prefetch
            def _():
                slab(bi, t + 1, 1 - slot).start()

        slab(bi, t, slot).wait()          # same descriptor as the .start()

        x_slot = xbuf.at[slot]
        state = {'wrote': False, 'pend': None}

        def emit(v):
            if not state['wrote']:
                acc_ref[...] = v + b_ref[...]       # bias folded in
                state['wrote'] = True
            else:
                acc_ref[...] += v

        def accumulate(c):
            if state['pend'] is None:
                state['pend'] = c
            else:
                emit(state['pend'] + c)             # pairwise before the RMW
                state['pend'] = None

        for kj in range(k):
            base = DST + kj - p
            if base % 8 == 0:                       # center column: aligned
                src, b0 = x_slot, base
            else:
                # one aligned, shifted copy of the slab per kernel column
                sbuf[...] = x_slot[pl.ds(base, cpr), :]
                src, b0 = sbuf, 0
            for ki in range(k):
                lhs = src[pl.ds(b0 + ki * wp, tile_rows), :]
                accumulate(jnp.dot(lhs, w_ref[ki * k + kj],
                                   preferred_element_type=jnp.float32))
        if state['pend'] is not None:
            emit(state['pend'])

        res = acc_ref[...]
        if relu:
            res = jnp.maximum(res, 0.0)
        # zero every halo position so the next conv can reuse this layout as-is
        ridx = lax.broadcasted_iota(jnp.int32, (tile_rows, 1), 0)
        lo = (p - t * th) * wp
        hi = (h + p - t * th) * wp
        valid = (wm_ref[...] > 0.5) & (ridx >= lo) & (ridx < hi)
        o_ref[...] = jnp.where(valid, res, 0.0).astype(o_ref.dtype)

    if seq:
        grid = (n,)
        w_spec = pl.BlockSpec((kk, cin, cout), lambda b: (0, 0, 0))
        b_spec = pl.BlockSpec((1, cout), lambda b: (0, 0))
        m_spec = pl.BlockSpec((tile_rows, 1), lambda b: (0, 0))
        o_spec = pl.BlockSpec((tile_rows, cout), lambda b: (f0 + b, 0))
        dims = ("arbitrary",)
    else:
        grid = (n, num_t)
        w_spec = pl.BlockSpec((kk, cin, cout), lambda b, t: (0, 0, 0))
        b_spec = pl.BlockSpec((1, cout), lambda b, t: (0, 0))
        m_spec = pl.BlockSpec((tile_rows, 1), lambda b, t: (0, 0))
        o_spec = pl.BlockSpec((tile_rows, cout),
                              lambda b, t: (f0 + b * num_t + t, 0))
        dims = ("parallel", "arbitrary")
        # TODO(synk): v7x with batch==1 would still want a 2-way parallel
        # split of the row tiles to feed both TensorCores.

    flops = 2 * n * hp * wp * kk * cin * cout
    bytes_acc = 2 * (n * num_t * cpr * cin + 2 * kk * cin * cout
                     + n * hp * wp * cout)

    call = pl.pallas_call(
        kernel,
        out_shape=jax.ShapeDtypeStruct((rows_out, cout), jnp.bfloat16),
        grid=grid,
        in_specs=[pl.BlockSpec(memory_space=pl.ANY), w_spec, b_spec, m_spec],
        out_specs=o_spec,
        scratch_shapes=[
            pltpu.VMEM((2, buf_rows, cin), jnp.bfloat16),   # double-buffered slab
            pltpu.VMEM((cpr, cin), jnp.bfloat16),           # per-column shifted slab
            pltpu.VMEM((tile_rows, cout), jnp.float32),     # f32 accumulator
            pltpu.SemaphoreType.DMA((2,)),
        ],
        compiler_params=_CompilerParams(
            dimension_semantics=dims,
            vmem_limit_bytes=_vmem_limit_bytes()),
        cost_estimate=pl.CostEstimate(
            flops=flops, transcendentals=0, bytes_accessed=bytes_acc),
    )
    return call, front_out, wmask


def conv_padded(pa, wgt, bias, relu=True):
    cin = pa.data.shape[1]
    kk, wcin, cout = wgt.shape
    k = int(round(kk ** 0.5))
    assert wcin == cin and (k - 1) // 2 == pa.p
    call, front_out, wmask = _build_conv(pa.n, pa.h, pa.w, cin, cout, k,
                                         bool(relu), pa.hp, pa.wp, pa.front)
    out = call(pa.data, wgt, bias, wmask)
    return PaddedAct(out, pa.n, pa.h, pa.w, pa.p, pa.wp, pa.hp, front_out)


def conv_run(x, layers, k):
    """Run of same-K 'same' convs; the activation stays in the padded
    flattened layout between layers (one pad in, one slice out)."""
    if not layers:
        return x
    n, h, w, _ = x.shape
    p = (k - 1) // 2
    wp = _round_up(w + 2 * p, 8)
    cap = min(_conv_row_cap(wg.shape[1], wg.shape[2], k, wp) for wg, _ in layers)
    hp = _plan_hp(h, p, cap, wp)
    pa = to_padded(x, p, hp, wp)
    for wg, b in layers:
        pa = conv_padded(pa, wg, b, relu=True)
    return padded_to_nhwc(pa)


# ----------------------------------------------------------------------------
# row-tiled matmul (1x1 convs, heads, im2col stem)
# ----------------------------------------------------------------------------
@functools.lru_cache(maxsize=None)
def _build_matmul(rows, tm, kdim, cout, relu):
    def kernel(x_ref, w_ref, b_ref, o_ref):
        acc = jnp.dot(x_ref[...], w_ref[...],
                      preferred_element_type=jnp.float32) + b_ref[...]
        if relu:
            acc = jnp.maximum(acc, 0.0)
        o_ref[...] = acc.astype(o_ref.dtype)

    return pl.pallas_call(
        kernel,
        out_shape=jax.ShapeDtypeStruct((rows, cout), jnp.bfloat16),
        grid=(rows // tm,),
        in_specs=[
            pl.BlockSpec((tm, kdim), lambda i: (i, 0)),
            pl.BlockSpec((kdim, cout), lambda i: (0, 0)),
            pl.BlockSpec((1, cout), lambda i: (0, 0)),
        ],
        out_specs=pl.BlockSpec((tm, cout), lambda i: (i, 0)),
        compiler_params=_CompilerParams(
            dimension_semantics=("parallel",),
            vmem_limit_bytes=_vmem_limit_bytes()),
        cost_estimate=pl.CostEstimate(
            flops=2 * rows * kdim * cout, transcendentals=0,
            bytes_accessed=(rows * kdim + kdim * cout + rows * cout) * 2),
    )


def matmul_bias(x2d, w2d, bias, relu):
    rows, kdim = x2d.shape
    cout = w2d.shape[1]
    rows_pad = _round_up(rows, 8)
    x2d = x2d.astype(jnp.bfloat16)
    if rows_pad != rows:
        x2d = jnp.pad(x2d, ((0, rows_pad - rows), (0, 0)))
    tm = _pick_tm(rows_pad)
    out = _build_matmul(rows_pad, tm, kdim, cout, bool(relu))(x2d, w2d, bias)
    return out[:rows] if rows_pad != rows else out


def conv_stem_im2col(x, wgt, bias):
    """3x3/pad-1 conv with cin=3 as an im2col matmul (K padded to 32 lanes)."""
    n, h, w, cin = x.shape
    k = 3
    xp = jnp.pad(x.astype(jnp.bfloat16), ((0, 0), (1, 1), (1, 1), (0, 0)))
    cols = [xp[:, ki:ki + h, kj:kj + w, :]
            for ki in range(k) for kj in range(k)]
    xim = jnp.concatenate(cols, axis=-1)            # (n,h,w,9*cin)
    kdim = k * k * cin
    kpad = _round_up(kdim, 8)
    w2 = wgt.reshape(kdim, -1)
    if kpad != kdim:
        xim = jnp.pad(xim, ((0, 0), (0, 0), (0, 0), (0, kpad - kdim)))
        w2 = jnp.pad(w2, ((0, kpad - kdim), (0, 0)))
    out = matmul_bias(xim.reshape(n * h * w, kpad), w2, bias, relu=True)
    return out.reshape(n, h, w, -1)


# ----------------------------------------------------------------------------
# 2x2 / stride-2 max pool
# ----------------------------------------------------------------------------
@functools.lru_cache(maxsize=None)
def _build_pool(n, ho, wo, c, th):
    def kernel(x_ref, o_ref):
        for j in range(th):
            v = jnp.maximum(x_ref[0, 2 * j], x_ref[0, 2 * j + 1])   # (wo, 2c)
            o_ref[0, j] = jnp.maximum(v[:, :c], v[:, c:])

    return pl.pallas_call(
        kernel,
        out_shape=jax.ShapeDtypeStruct((n, ho, wo, c), jnp.bfloat16),
        grid=(n, ho // th),
        in_specs=[pl.BlockSpec((1, 2 * th, wo, 2 * c),
                               lambda b, i: (b, i, 0, 0))],
        out_specs=pl.BlockSpec((1, th, wo, c), lambda b, i: (b, i, 0, 0)),
        compiler_params=_CompilerParams(
            dimension_semantics=("parallel", "parallel"),
            vmem_limit_bytes=_vmem_limit_bytes()),
    )


def maxpool2x2(x):
    n, h, w, c = x.shape
    # TODO(synk): odd H/W (PyTorch floor behaviour) not needed for this net.
    assert h % 2 == 0 and w % 2 == 0
    ho, wo = h // 2, w // 2
    x2 = x.astype(jnp.bfloat16).reshape(n, h, wo, 2 * c)
    th = _pick_pool_tile(ho, wo, c)
    return _build_pool(n, ho, wo, c, th)(x2)


# ----------------------------------------------------------------------------
# model configuration / parameters (mirrors OpenPose_Feature / blocks)
# ----------------------------------------------------------------------------
FEATURE_CFG = [
    ('conv', 3, 64), ('conv', 64, 64), ('pool',),
    ('conv', 64, 128), ('conv', 128, 128), ('pool',),
    ('conv', 128, 256), ('conv', 256, 256), ('conv', 256, 256),
    ('conv', 256, 256), ('pool',),
    ('conv', 256, 512), ('conv', 512, 512),
    ('conv', 512, 256), ('conv', 256, 128),
]


def _conv_param(key, cin, cout, k, cin_pad=None, cout_pad=None):
    # Synthetic deterministic init (He-style); the original uses pretrained
    # VGG19 / normal(std=0.01).
    # TODO(synk): pretrained VGG19 weights are not reproducible in-script.
    std = (2.0 / (k * k * cin)) ** 0.5
    w = jax.random.normal(key, (k * k, cin, cout), jnp.float32) * std
    if cin_pad and cin_pad != cin:
        w = jnp.pad(w, ((0, 0), (0, cin_pad - cin), (0, 0)))
    if cout_pad and cout_pad != cout:
        w = jnp.pad(w, ((0, 0), (0, 0), (0, cout_pad - cout)))
    b = jnp.zeros((1, w.shape[2]), jnp.float32)
    return w.astype(jnp.bfloat16), b


def build_params(root_key):
    params = {}
    fkey = jax.random.fold_in(root_key, 0)
    feature, idx = [], 0
    for item in FEATURE_CFG:
        if item[0] == 'pool':
            feature.append('pool')
        else:
            _, cin, cout = item
            feature.append(_conv_param(jax.random.fold_in(fkey, idx),
                                       cin, cout, 3))
            idx += 1
    params['feature'] = feature

    for stage in range(1, 7):
        skey = jax.random.fold_in(root_key, stage)
        if stage == 1:
            k, conv_cfg, cin0_pad = 3, [(128, 128)] * 3, None
            mid_cfg, head_in = (128, 512), 512
        else:
            k, conv_cfg, cin0_pad = 7, [(185, 128)] + [(128, 128)] * 4, 192
            mid_cfg, head_in = (128, 128), 128
        branches = {}
        for bidx, nout in ((1, 38), (2, 19)):
            bkey = jax.random.fold_in(skey, bidx)
            convs = []
            for li, (ci, co) in enumerate(conv_cfg):
                convs.append(_conv_param(
                    jax.random.fold_in(bkey, li), ci, co, k,
                    cin_pad=cin0_pad if li == 0 else None))
            wm, bm = _conv_param(jax.random.fold_in(bkey, 50),
                                 mid_cfg[0], mid_cfg[1], 1)
            wh, bh = _conv_param(jax.random.fold_in(bkey, 99),
                                 head_in, nout, 1, cout_pad=128)
            branches['b%d' % bidx] = {'convs': convs, 'mid': (wm[0], bm),
                                      'head': (wh[0], bh), 'nout': nout}
        params['stage%d' % stage] = {'k': k, 'b1': branches['b1'],
                                     'b2': branches['b2']}
    return params


# ----------------------------------------------------------------------------
# forward pass (reproduces OpenPoseNet.forward; NCHW at the boundaries)
# ----------------------------------------------------------------------------
def run_feature(x, feature):
    w0, b0 = feature[0]                 # cin=3 stem conv as an im2col matmul
    x = conv_stem_im2col(x, w0, b0)
    pending = []
    for item in feature[1:]:
        if isinstance(item, str):
            x = conv_run(x, pending, k=3)
            pending = []
            x = maxpool2x2(x)
        else:
            pending.append(item)
    return conv_run(x, pending, k=3)


def _run_branch(pa_in, blk):
    pa = pa_in
    for wg, b in blk['convs']:
        pa = conv_padded(pa, wg, b, relu=True)
    # 1x1 convs run directly on the padded flattened rows; the halo rows
    # produce junk there but are sliced off below.
    y = matmul_bias(pa.data, blk['mid'][0], blk['mid'][1], relu=True)
    y = matmul_bias(y, blk['head'][0], blk['head'][1], relu=False)
    py = PaddedAct(y, pa.n, pa.h, pa.w, pa.p, pa.wp, pa.hp, pa.front)
    return padded_to_nhwc(py, c_valid=blk['nout'])


def openpose_forward(x_nchw, params):
    x = jnp.transpose(x_nchw, (0, 2, 3, 1)).astype(jnp.bfloat16)   # NCHW->NHWC
    out1 = run_feature(x, params['feature'])                       # (N,H/8,W/8,128)

    n, hs, ws, _ = out1.shape
    saved = []
    prev = out1                                                    # stage-1 input
    for stage in range(1, 7):
        sp = params['stage%d' % stage]
        k = sp['k']
        p = (k - 1) // 2
        wp = _round_up(ws + 2 * p, 8)
        caps = [_conv_row_cap(wg.shape[1], wg.shape[2], k, wp)
                for br in ('b1', 'b2') for wg, _ in sp[br]['convs']]
        hp = _plan_hp(hs, p, min(caps), wp)
        pa_in = to_padded(prev, p, hp, wp)       # padded once, shared by both branches
        x1 = _run_branch(pa_in, sp['b1'])        # (..., 38)  PAF maps
        x2 = _run_branch(pa_in, sp['b2'])        # (..., 19)  heatmaps
        saved += [x1, x2]
        if stage < 6:
            zpad = jnp.zeros(x1.shape[:-1] + (7,), x1.dtype)
            # torch.cat([out_i_1, out_i_2, out1], dim=1); +7 zero ch -> 192 lanes
            prev = jnp.concatenate([x1, x2, out1, zpad], axis=-1)

    to_nchw = lambda t: jnp.transpose(t, (0, 3, 1, 2)).astype(jnp.float32)
    saved_nchw = [to_nchw(t) for t in saved]
    return (saved_nchw[-2], saved_nchw[-1]), saved_nchw


# ----------------------------------------------------------------------------
if __name__ == "__main__":
    root_key = jax.random.PRNGKey(0)
    # Small input consistent with the module (original was (2, 3, 368, 368)).
    x = jax.random.uniform(jax.random.fold_in(root_key, 9999),
                           (2, 3, 32, 32), jnp.float32)
    params = build_params(root_key)

    (out6_1, out6_2), saved_for_loss = openpose_forward(x, params)
    jax.block_until_ready((out6_1, out6_2, saved_for_loss))

    assert out6_1.shape == (2, 38, 4, 4), out6_1.shape   # PAF maps (L1)
    assert out6_2.shape == (2, 19, 4, 4), out6_2.shape   # heatmaps (L2)
    assert len(saved_for_loss) == 12
    assert all(bool(jnp.all(jnp.isfinite(t))) for t in (out6_1, out6_2))
    print("KERNEL_OK")
</pallas_src>

<mosaic_0001>
module attributes {stable_mosaic.version = 11 : i64} {
  func.func @kernel(%arg0: i32, %arg1: memref<2048x32xbf16, #tpu.memory_space<vmem>>, %arg2: memref<32x64xbf16, #tpu.memory_space<vmem>>, %arg3: memref<1x64xf32, #tpu.memory_space<vmem>>, %arg4: memref<2048x64xbf16, #tpu.memory_space<vmem>>) attributes {dimension_semantics = [#tpu.dimension_semantics<parallel>], iteration_bounds = array<i64: 1>, scalar_prefetch = 0 : i64, scratch_operands = 0 : i64, tpu.core_type = #tpu.core_type<tc>, window_params = [{transform_indices = @transform_0, window_bounds = array<i64: 2048, 32>}, {pipeline_mode = #tpu.pipeline_mode<synchronous>, transform_indices = @transform_1, window_bounds = array<i64: 32, 64>}, {pipeline_mode = #tpu.pipeline_mode<synchronous>, transform_indices = @transform_2, window_bounds = array<i64: 1, 64>}, {transform_indices = @transform_3, window_bounds = array<i64: 2048, 64>}]} {
    %c0 = arith.constant 0 : index
    %c0_0 = arith.constant 0 : index
    %0 = vector.load %arg1[%c0, %c0_0] : memref<2048x32xbf16, #tpu.memory_space<vmem>>, vector<2048x32xbf16>
    %c0_1 = arith.constant 0 : index
    %c0_2 = arith.constant 0 : index
    %1 = vector.load %arg2[%c0_1, %c0_2] : memref<32x64xbf16, #tpu.memory_space<vmem>>, vector<32x64xbf16>
    %cst = arith.constant dense<0.000000e+00> : vector<2048x64xf32>
    %2 = tpu.matmul %0, %1, %cst {dimension_numbers = #tpu.dot_dimension_numbers<[1], [0], [0], [1], [0, 0, 1, 1], [], []>} : vector<2048x32xbf16>, vector<32x64xbf16>, vector<2048x64xf32> -> vector<2048x64xf32>
    %c0_3 = arith.constant 0 : index
    %c0_4 = arith.constant 0 : index
    %3 = vector.load %arg3[%c0_3, %c0_4] : memref<1x64xf32, #tpu.memory_space<vmem>>, vector<1x64xf32>
    %4 = vector.broadcast %3 : vector<1x64xf32> to vector<2048x64xf32>
    %5 = arith.addf %2, %4 : vector<2048x64xf32>
    %cst_5 = arith.constant 0.000000e+00 : f32
    %6 = vector.broadcast %cst_5 : f32 to vector<2048x64xf32>
    %7 = arith.maximumf %5, %6 : vector<2048x64xf32>
    %8 = arith.truncf %7 : vector<2048x64xf32> to vector<2048x64xbf16>
    %c0_6 = arith.constant 0 : index
    %c0_7 = arith.constant 0 : index
    %9 = vector.load %arg4[%c0_6, %c0_7] : memref<2048x64xbf16, #tpu.memory_space<vmem>>, vector<2048x64xbf16>
    tpu.vector_store %arg4[%c0_6, %c0_7], %8 {strides = array<i32>} : memref<2048x64xbf16, #tpu.memory_space<vmem>>, vector<2048x64xbf16>,
    return
  }
  func.func @transform_0(%arg0: i32) -> (i32, i32) {
    %c0_i32 = arith.constant 0 : i32
    %c0_i32_0 = arith.constant 0 : i32
    return %arg0, %c0_i32 : i32, i32
  }
  func.func @transform_1(%arg0: i32) -> (i32, i32) {
    %c0_i32 = arith.constant 0 : i32
    %c0_i32_0 = arith.constant 0 : i32
    %c0_i32_1 = arith.constant 0 : i32
    return %c0_i32, %c0_i32_0 : i32, i32
  }
  func.func @transform_2(%arg0: i32) -> (i32, i32) {
    %c0_i32 = arith.constant 0 : i32
    %c0_i32_0 = arith.constant 0 : i32
    %c0_i32_1 = arith.constant 0 : i32
    return %c0_i32, %c0_i32_0 : i32, i32
  }
  func.func @transform_3(%arg0: i32) -> (i32, i32) {
    %c0_i32 = arith.constant 0 : i32
    %c0_i32_0 = arith.constant 0 : i32
    return %arg0, %c0_i32 : i32, i32
  }
}

</mosaic_0001>

<llo_original>
// kernel: tpu_custom_call.1
$region0: #{tpu_custom_call.1}
  #allocation0 [shape = 'u32[]', space=smem, size = 0x4, offset = 0x4, fixed_abs, tag = 'smem constant byte address 0x4 - core index']
  #allocation1 [shape = 'u32[144,128]{1,0:T(1,128)}', space=vmem, size = 0x12000, scoped, tag = 'internal scratch']
  %s0 = inlined_call_operand.vmem [shape: bf16[2048,32], index: 0, kind: input, shape index: {}]
  %s1 = inlined_call_operand.vmem [shape: bf16[32,64], index: 1, kind: input, shape index: {}]
  %s2 = inlined_call_operand.vmem [shape: f32[1,64], index: 2, kind: input, shape index: {}]
  %s3 = inlined_call_operand.vmem [shape: bf16[2048,64], index: 3, kind: output, shape index: {}]
  %s4 = sld [smem:[#allocation0]]
  $region22: #{tpu_custom_call.1} parent=0
    _
  %s6 = ssub.s32 1, %s4
  %s7 = scalar_select 0, %s6, %s4
  // Predicated region
  $region2: #{tpu_custom_call.1} parent=0 // pred_check
    _
  $region3: #{tpu_custom_call.1} parent=0 // pred_check_branch
    %9 = sbr.rel (0) target = $region5
  $region4: #{tpu_custom_call.1} parent=0 // pred_region
    _
  $region5: #{tpu_custom_call.1} parent=0 // pred_fallthru
    _
  // Predicated region
  $region6: #{tpu_custom_call.1} parent=0 // pred_check
    _
  $region7: #{tpu_custom_call.1} parent=0 // pred_check_branch
    %11 = sbr.rel (0) target = $region9
  $region8: #{tpu_custom_call.1} parent=0 // pred_region
    _
  $region9: #{tpu_custom_call.1} parent=0 // pred_fallthru
    _
  // Predicated region
  $region10: #{tpu_custom_call.1} parent=0 // pred_check
    _
  $region11: #{tpu_custom_call.1} parent=0 // pred_check_branch
    %13 = sbr.rel (0) target = $region13
  $region12: #{tpu_custom_call.1} parent=0 // pred_region
    _
  $region13: #{tpu_custom_call.1} parent=0 // pred_fallthru
    _
  %v15 = vld [vmem:[%s0] sm:$0xf]
  %v16 = vld [vmem:[%s0 + $0x4] sm:$0xf]
  %v17 = vld [vmem:[%s0 + $0x8] sm:$0xf]
  %v18 = vld [vmem:[%s0 + $0xc] sm:$0xf]
  %v19 = vld [vmem:[%s0 + $0x10] sm:$0xf]
  %v20 = vld [vmem:[%s0 + $0x14] sm:$0xf]
  %v21 = vld [vmem:[%s0 + $0x18] sm:$0xf]
  %v22 = vld [vmem:[%s0 + $0x1c] sm:$0xf]
  %v23 = vld [vmem:[%s0 + $0x20] sm:$0xf]
  %v24 = vld [vmem:[%s0 + $0x24] sm:$0xf]
  %v25 = vld [vmem:[%s0 + $0x28] sm:$0xf]
  %v26 = vld [vmem:[%s0 + $0x2c] sm:$0xf]
  %v27 = vld [vmem:[%s0 + $0x30] sm:$0xf]
  %v28 = vld [vmem:[%s0 + $0x34] sm:$0xf]
  %v29 = vld [vmem:[%s0 + $0x38] sm:$0xf]
  %v30 = vld [vmem:[%s0 + $0x3c] sm:$0xf]
  %v31 = vld [vmem:[%s0 + $0x40] sm:$0xf]
  %v32 = vld [vmem:[%s0 + $0x44] sm:$0xf]
  %v33 = vld [vmem:[%s0 + $0x48] sm:$0xf]
  %v34 = vld [vmem:[%s0 + $0x4c] sm:$0xf]
  %v35 = vld [vmem:[%s0 + $0x50] sm:$0xf]
  %v36 = vld [vmem:[%s0 + $0x54] sm:$0xf]
  %v37 = vld [vmem:[%s0 + $0x58] sm:$0xf]
  %v38 = vld [vmem:[%s0 + $0x5c] sm:$0xf]
  %v39 = vld [vmem:[%s0 + $0x60] sm:$0xf]
  %v40 = vld [vmem:[%s0 + $0x64] sm:$0xf]
  %v41 = vld [vmem:[%s0 + $0x68] sm:$0xf]
  %v42 = vld [vmem:[%s0 + $0x6c] sm:$0xf]
  %v43 = vld [vmem:[%s0 + $0x70] sm:$0xf]
  %v44 = vld [vmem:[%s0 + $0x74] sm:$0xf]
  %v45 = vld [vmem:[%s0 + $0x78] sm:$0xf]
  %v46 = vld [vmem:[%s0 + $0x7c] sm:$0xf]
  %v47 = vld [vmem:[%s0 + $0x80] sm:$0xf]
  %v48 = vld [vmem:[%s0 + $0x84] sm:$0xf]
  %v49 = vld [vmem:[%s0 + $0x88] sm:$0xf]
  %v50 = vld [vmem:[%s0 + $0x8c] sm:$0xf]
  %v51 = vld [vmem:[%s0 + $0x90] sm:$0xf]
  %v52 = vld [vmem:[%s0 + $0x94] sm:$0xf]
  %v53 = vld [vmem:[%s0 + $0x98] sm:$0xf]
  %v54 = vld [vmem:[%s0 + $0x9c] sm:$0xf]
  %v55 = vld [vmem:[%s0 + $0xa0] sm:$0xf]
  %v56 = vld [vmem:[%s0 + $0xa4] sm:$0xf]
  %v57 = vld [vmem:[%s0 + $0xa8] sm:$0xf]
  %v58 = vld [vmem:[%s0 + $0xac] sm:$0xf]
  %v59 = vld [vmem:[%s0 + $0xb0] sm:$0xf]
  %v60 = vld [vmem:[%s0 + $0xb4] sm:$0xf]
  %v61 = vld [vmem:[%s0 + $0xb8] sm:$0xf]
  %v62 = vld [vmem:[%s0 + $0xbc] sm:$0xf]
  %v63 = vld [vmem:[%s0 + $0xc0] sm:$0xf]
  %v64 = vld [vmem:[%s0 + $0xc4] sm:$0xf]
  %v65 = vld [vmem:[%s0 + $0xc8] sm:$0xf]
  %v66 = vld [vmem:[%s0 + $0xcc] sm:$0xf]
  %v67 = vld [vmem:[%s0 + $0xd0] sm:$0xf]
  %v68 = vld [vmem:[%s0 + $0xd4] sm:$0xf]
  %v69 = vld [vmem:[%s0 + $0xd8] sm:$0xf]
  %v70 = vld [vmem:[%s0 + $0xdc] sm:$0xf]
  %v71 = vld [vmem:[%s0 + $0xe0] sm:$0xf]
  %v72 = vld [vmem:[%s0 + $0xe4] sm:$0xf]
  %v73 = vld [vmem:[%s0 + $0xe8] sm:$0xf]
  %v74 = vld [vmem:[%s0 + $0xec] sm:$0xf]
  %v75 = vld [vmem:[%s0 + $0xf0] sm:$0xf]
  %v76 = vld [vmem:[%s0 + $0xf4] sm:$0xf]
  %v77 = vld [vmem:[%s0 + $0xf8] sm:$0xf]
  %v78 = vld [vmem:[%s0 + $0xfc] sm:$0xf]
  %v79 = vld [vmem:[%s0 + $0x100] sm:$0xf]
  %v80 = vld [vmem:[%s0 + $0x104] sm:$0xf]
  %v81 = vld [vmem:[%s0 + $0x108] sm:$0xf]
  %v82 = vld [vmem:[%s0 + $0x10c] sm:$0xf]
  %v83 = vld [vmem:[%s0 + $0x110] sm:$0xf]
  %v84 = vld [vmem:[%s0 + $0x114] sm:$0xf]
  %v85 = vld [vmem:[%s0 + $0x118] sm:$0xf]
  %v86 = vld [vmem:[%s0 + $0x11c] sm:$0xf]
  %v87 = vld [vmem:[%s0 + $0x120] sm:$0xf]
  %v88 = vld [vmem:[%s0 + $0x124] sm:$0xf]
  %v89 = vld [vmem:[%s0 + $0x128] sm:$0xf]
  %v90 = vld [vmem:[%s0 + $0x12c] sm:$0xf]
  %v91 = vld [vmem:[%s0 + $0x130] sm:$0xf]
  %v92 = vld [vmem:[%s0 + $0x134] sm:$0xf]
  %v93 = vld [vmem:[%s0 + $0x138] sm:$0xf]
  %v94 = vld [vmem:[%s0 + $0x13c] sm:$0xf]
  %v95 = vld [vmem:[%s0 + $0x140] sm:$0xf]
  %v96 = vld [vmem:[%s0 + $0x144] sm:$0xf]
  %v97 = vld [vmem:[%s0 + $0x148] sm:$0xf]
  %v98 = vld [vmem:[%s0 + $0x14c] sm:$0xf]
  %v99 = vld [vmem:[%s0 + $0x150] sm:$0xf]
  %v100 = vld [vmem:[%s0 + $0x154] sm:$0xf]
  %v101 = vld [vmem:[%s0 + $0x158] sm:$0xf]
  %v102 = vld [vmem:[%s0 + $0x15c] sm:$0xf]
  %v103 = vld [vmem:[%s0 + $0x160] sm:$0xf]
  %v104 = vld [vmem:[%s0 + $0x164] sm:$0xf]
  %v105 = vld [vmem:[%s0 + $0x168] sm:$0xf]
  %v106 = vld [vmem:[%s0 + $0x16c] sm:$0xf]
  %v107 = vld [vmem:[%s0 + $0x170] sm:$0xf]
  %v108 = vld [vmem:[%s0 + $0x174] sm:$0xf]
  %v109 = vld [vmem:[%s0 + $0x178] sm:$0xf]
  %v110 = vld [vmem:[%s0 + $0x17c] sm:$0xf]
  %v111 = vld [vmem:[%s0 + $0x180] sm:$0xf]
  %v112 = vld [vmem:[%s0 + $0x184] sm:$0xf]
  %v113 = vld [vmem:[%s0 + $0x188] sm:$0xf]
  %v114 = vld [vmem:[%s0 + $0x18c] sm:$0xf]
  %v115 = vld [vmem:[%s0 + $0x190] sm:$0xf]
  %v116 = vld [vmem:[%s0 + $0x194] sm:$0xf]
  %v117 = vld [vmem:[%s0 + $0x198] sm:$0xf]
  %v118 = vld [vmem:[%s0 + $0x19c] sm:$0xf]
  %v119 = vld [vmem:[%s0 + $0x1a0] sm:$0xf]
  %v120 = vld [vmem:[%s0 + $0x1a4] sm:$0xf]
  %v121 = vld [vmem:[%s0 + $0x1a8] sm:$0xf]
  %v122 = vld [vmem:[%s0 + $0x1ac] sm:$0xf]
  %v123 = vld [vmem:[%s0 + $0x1b0] sm:$0xf]
  %v124 = vld [vmem:[%s0 + $0x1b4] sm:$0xf]
  %v125 = vld [vmem:[%s0 + $0x1b8] sm:$0xf]
  %v126 = vld [vmem:[%s0 + $0x1bc] sm:$0xf]
  %v127 = vld [vmem:[%s0 + $0x1c0] sm:$0xf]
  %v128 = vld [vmem:[%s0 + $0x1c4] sm:$0xf]
  %v129 = vld [vmem:[%s0 + $0x1c8] sm:$0xf]
  %v130 = vld [vmem:[%s0 + $0x1cc] sm:$0xf]
  %v131 = vld [vmem:[%s0 + $0x1d0] sm:$0xf]
  %v132 = vld [vmem:[%s0 + $0x1d4] sm:$0xf]
  %v133 = vld [vmem:[%s0 + $0x1d8] sm:$0xf]
  %v134 = vld [vmem:[%s0 + $0x1dc] sm:$0xf]
  %v135 = vld [vmem:[%s0 + $0x1e0] sm:$0xf]
  %v136 = vld [vmem:[%s0 + $0x1e4] sm:$0xf]
  %v137 = vld [vmem:[%s0 + $0x1e8] sm:$0xf]
  %v138 = vld [vmem:[%s0 + $0x1ec] sm:$0xf]
  %v139 = vld [vmem:[%s0 + $0x1f0] sm:$0xf]
  %v140 = vld [vmem:[%s0 + $0x1f4] sm:$0xf]
  %v141 = vld [vmem:[%s0 + $0x1f8] sm:$0xf]
  %v142 = vld [vmem:[%s0 + $0x1fc] sm:$0xf]
  %v143 = vld [vmem:[%s0 + $0x200] sm:$0xf]
  %v144 = vld [vmem:[%s0 + $0x204] sm:$0xf]
  %v145 = vld [vmem:[%s0 + $0x208] sm:$0xf]
  %v146 = vld [vmem:[%s0 + $0x20c] sm:$0xf]
  %v147 = vld [vmem:[%s0 + $0x210] sm:$0xf]
  %v148 = vld [vmem:[%s0 + $0x214] sm:$0xf]
  %v149 = vld [vmem:[%s0 + $0x218] sm:$0xf]
  %v150 = vld [vmem:[%s0 + $0x21c] sm:$0xf]
  %v151 = vld [vmem:[%s0 + $0x220] sm:$0xf]
  %v152 = vld [vmem:[%s0 + $0x224] sm:$0xf]
  %v153 = vld [vmem:[%s0 + $0x228] sm:$0xf]
  %v154 = vld [vmem:[%s0 + $0x22c] sm:$0xf]
  %v155 = vld [vmem:[%s0 + $0x230] sm:$0xf]
  %v156 = vld [vmem:[%s0 + $0x234] sm:$0xf]
  %v157 = vld [vmem:[%s0 + $0x238] sm:$0xf]
  %v158 = vld [vmem:[%s0 + $0x23c] sm:$0xf]
  %v159 = vld [vmem:[%s0 + $0x240] sm:$0xf]
  %v160 = vld [vmem:[%s0 + $0x244] sm:$0xf]
  %v161 = vld [vmem:[%s0 + $0x248] sm:$0xf]
  %v162 = vld [vmem:[%s0 + $0x24c] sm:$0xf]
  %v163 = vld [vmem:[%s0 + $0x250] sm:$0xf]
  %v164 = vld [vmem:[%s0 + $0x254] sm:$0xf]
  %v165 = vld [vmem:[%s0 + $0x258] sm:$0xf]
  %v166 = vld [vmem:[%s0 + $0x25c] sm:$0xf]
  %v167 = vld [vmem:[%s0 + $0x260] sm:$0xf]
  %v168 = vld [vmem:[%s0 + $0x264] sm:$0xf]
  %v169 = vld [vmem:[%s0 + $0x268] sm:$0xf]
  %v170 = vld [vmem:[%s0 + $0x26c] sm:$0xf]
  %v171 = vld [vmem:[%s0 + $0x270] sm:$0xf]
  %v172 = vld [vmem:[%s0 + $0x274] sm:$0xf]
  %v173 = vld [vmem:[%s0 + $0x278] sm:$0xf]
  %v174 = vld [vmem:[%s0 + $0x27c] sm:$0xf]
  %v175 = vld [vmem:[%s0 + $0x280] sm:$0xf]
  %v176 = vld [vmem:[%s0 + $0x284] sm:$0xf]
  %v177 = vld [vmem:[%s0 + $0x288] sm:$0xf]
  %v178 = vld [vmem:[%s0 + $0x28c] sm:$0xf]
  %v179 = vld [vmem:[%s0 + $0x290] sm:$0xf]
  %v180 = vld [vmem:[%s0 + $0x294] sm:$0xf]
  %v181 = vld [vmem:[%s0 + $0x298] sm:$0xf]
  %v182 = vld [vmem:[%s0 + $0x29c] sm:$0xf]
  %v183 = vld [vmem:[%s0 + $0x2a0] sm:$0xf]
  %v184 = vld [vmem:[%s0 + $0x2a4] sm:$0xf]
  %v185 = vld [vmem:[%s0 + $0x2a8] sm:$0xf]
  %v186 = vld [vmem:[%s0 + $0x2ac] sm:$0xf]
  %v187 = vld [vmem:[%s0 + $0x2b0] sm:$0xf]
  %v188 = vld [vmem:[%s0 + $0x2b4] sm:$0xf]
  %v189 = vld [vmem:[%s0 + $0x2b8] sm:$0xf]
  %v190 = vld [vmem:[%s0 + $0x2bc] sm:$0xf]
  %v191 = vld [vmem:[%s0 + $0x2c0] sm:$0xf]
  %v192 = vld [vmem:[%s0 + $0x2c4] sm:$0xf]
  %v193 = vld [vmem:[%s0 + $0x2c8] sm:$0xf]
  %v194 = vld [vmem:[%s0 + $0x2cc] sm:$0xf]
  %v195 = vld [vmem:[%s0 + $0x2d0] sm:$0xf]
  %v196 = vld [vmem:[%s0 + $0x2d4] sm:$0xf]
  %v197 = vld [vmem:[%s0 + $0x2d8] sm:$0xf]
  %v198 = vld [vmem:[%s0 + $0x2dc] sm:$0xf]
  %v199 = vld [vmem:[%s0 + $0x2e0] sm:$0xf]
  %v200 = vld [vmem:[%s0 + $0x2e4] sm:$0xf]
  %v201 = vld [vmem:[%s0 + $0x2e8] sm:$0xf]
  %v202 = vld [vmem:[%s0 + $0x2ec] sm:$0xf]
  %v203 = vld [vmem:[%s0 + $0x2f0] sm:$0xf]
  %v204 = vld [vmem:[%s0 + $0x2f4] sm:$0xf]
  %v205 = vld [vmem:[%s0 + $0x2f8] sm:$0xf]
  %v206 = vld [vmem:[%s0 + $0x2fc] sm:$0xf]
  %v207 = vld [vmem:[%s0 + $0x300] sm:$0xf]
  %v208 = vld [vmem:[%s0 + $0x304] sm:$0xf]
  %v209 = vld [vmem:[%s0 + $0x308] sm:$0xf]
  %v210 = vld [vmem:[%s0 + $0x30c] sm:$0xf]
  %v211 = vld [vmem:[%s0 + $0x310] sm:$0xf]
  %v212 = vld [vmem:[%s0 + $0x314] sm:$0xf]
  %v213 = vld [vmem:[%s0 + $0x318] sm:$0xf]
  %v214 = vld [vmem:[%s0 + $0x31c] sm:$0xf]
  %v215 = vld [vmem:[%s0 + $0x320] sm:$0xf]
  %v216 = vld [vmem:[%s0 + $0x324] sm:$0xf]
  %v217 = vld [vmem:[%s0 + $0x328] sm:$0xf]
  %v218 = vld [vmem:[%s0 + $0x32c] sm:$0xf]
  %v219 = vld [vmem:[%s0 + $0x330] sm:$0xf]
  %v220 = vld [vmem:[%s0 + $0x334] sm:$0xf]
  %v221 = vld [vmem:[%s0 + $0x338] sm:$0xf]
  %v222 = vld [vmem:[%s0 + $0x33c] sm:$0xf]
  %v223 = vld [vmem:[%s0 + $0x340] sm:$0xf]
  %v224 = vld [vmem:[%s0 + $0x344] sm:$0xf]
  %v225 = vld [vmem:[%s0 + $0x348] sm:$0xf]
  %v226 = vld [vmem:[%s0 + $0x34c] sm:$0xf]
  %v227 = vld [vmem:[%s0 + $0x350] sm:$0xf]
  %v228 = vld [vmem:[%s0 + $0x354] sm:$0xf]
  %v229 = vld [vmem:[%s0 + $0x358] sm:$0xf]
  %v230 = vld [vmem:[%s0 + $0x35c] sm:$0xf]
  %v231 = vld [vmem:[%s0 + $0x360] sm:$0xf]
  %v232 = vld [vmem:[%s0 + $0x364] sm:$0xf]
  %v233 = vld [vmem:[%s0 + $0x368] sm:$0xf]
  %v234 = vld [vmem:[%s0 + $0x36c] sm:$0xf]
  %v235 = vld [vmem:[%s0 + $0x370] sm:$0xf]
  %v236 = vld [vmem:[%s0 + $0x374] sm:$0xf]
  %v237 = vld [vmem:[%s0 + $0x378] sm:$0xf]
  %v238 = vld [vmem:[%s0 + $0x37c] sm:$0xf]
  %v239 = vld [vmem:[%s0 + $0x380] sm:$0xf]
  %v240 = vld [vmem:[%s0 + $0x384] sm:$0xf]
  %v241 = vld [vmem:[%s0 + $0x388] sm:$0xf]
  %v242 = vld [vmem:[%s0 + $0x38c] sm:$0xf]
  %v243 = vld [vmem:[%s0 + $0x390] sm:$0xf]
  %v244 = vld [vmem:[%s0 + $0x394] sm:$0xf]
  %v245 = vld [vmem:[%s0 + $0x398] sm:$0xf]
  %v246 = vld [vmem:[%s0 + $0x39c] sm:$0xf]
  %v247 = vld [vmem:[%s0 + $0x3a0] sm:$0xf]
  %v248 = vld [vmem:[%s0 + $0x3a4] sm:$0xf]
  %v249 = vld [vmem:[%s0 + $0x3a8] sm:$0xf]
  %v250 = vld [vmem:[%s0 + $0x3ac] sm:$0xf]
  %v251 = vld [vmem:[%s0 + $0x3b0] sm:$0xf]
  %v252 = vld [vmem:[%s0 + $0x3b4] sm:$0xf]
  %v253 = vld [vmem:[%s0 + $0x3b8] sm:$0xf]
  %v254 = vld [vmem:[%s0 + $0x3bc] sm:$0xf]
  %v255 = vld [vmem:[%s0 + $0x3c0] sm:$0xf]
  %v256 = vld [vmem:[%s0 + $0x3c4] sm:$0xf]
  %v257 = vld [vmem:[%s0 + $0x3c8] sm:$0xf]
  %v258 = vld [vmem:[%s0 + $0x3cc] sm:$0xf]
  %v259 = vld [vmem:[%s0 + $0x3d0] sm:$0xf]
  %v260 = vld [vmem:[%s0 + $0x3d4] sm:$0xf]
  %v261 = vld [vmem:[%s0 + $0x3d8] sm:$0xf]
  %v262 = vld [vmem:[%s0 + $0x3dc] sm:$0xf]
  %v263 = vld [vmem:[%s0 + $0x3e0] sm:$0xf]
  %v264 = vld [vmem:[%s0 + $0x3e4] sm:$0xf]
  %v265 = vld [vmem:[%s0 + $0x3e8] sm:$0xf]
  %v266 = vld [vmem:[%s0 + $0x3ec] sm:$0xf]
  %v267 = vld [vmem:[%s0 + $0x3f0] sm:$0xf]
  %v268 = vld [vmem:[%s0 + $0x3f4] sm:$0xf]
  %v269 = vld [vmem:[%s0 + $0x3f8] sm:$0xf]
  %v270 = vld [vmem:[%s0 + $0x3fc] sm:$0xf]
  %v271 = vld [vmem:[%s1] sm:$0xf]
  %v272 = vld [vmem:[%s1 + $0x4] sm:$0xf]
  %v273 = vld [vmem:[%s1 + $0x8] sm:$0xf]
  %v274 = vld [vmem:[%s1 + $0xc] sm:$0xf]
  %v275 = vld [vmem:[%s2] sm:$0x1]
  %v277 = vlaneseq
  %v278 = vshrl.u32 %v277, 7
  %v279 = vsub.s32 0, %v278
  %v280 = vrot.slane %v275, %v279
  %v538 = vunpack.c.l.b16 %v15
  %v539 = vunpack.c.l.b16 %v16
  %v540 = vunpack.c.l.b16 %v17
  %v541 = vunpack.c.l.b16 %v18
  %v542 = vunpack.c.l.b16 %v19
  %v543 = vunpack.c.l.b16 %v20
  %v544 = vunpack.c.l.b16 %v21
  %v545 = vunpack.c.l.b16 %v22
  %v546 = vunpack.c.l.b16 %v23
  %v547 = vunpack.c.l.b16 %v24
  %v548 = vunpack.c.l.b16 %v25
  %v549 = vunpack.c.l.b16 %v26
  %v550 = vunpack.c.l.b16 %v27
  %v551 = vunpack.c.l.b16 %v28
  %v552 = vunpack.c.l.b16 %v29
  %v553 = vunpack.c.l.b16 %v30
  %v554 = vunpack.c.l.b16 %v31
  %v555 = vunpack.c.l.b16 %v32
  %v556 = vunpack.c.l.b16 %v33
  %v557 = vunpack.c.l.b16 %v34
  %v558 = vunpack.c.l.b16 %v35
  %v559 = vunpack.c.l.b16 %v36
  %v560 = vunpack.c.l.b16 %v37
  %v561 = vunpack.c.l.b16 %v38
  %v562 = vunpack.c.l.b16 %v39
  %v563 = vunpack.c.l.b16 %v40
  %v564 = vunpack.c.l.b16 %v41
  %v565 = vunpack.c.l.b16 %v42
  %v566 = vunpack.c.l.b16 %v43
  %v567 = vunpack.c.l.b16 %v44
  %v568 = vunpack.c.l.b16 %v45
  %v569 = vunpack.c.l.b16 %v46
  %v570 = vunpack.c.l.b16 %v47
  %v571 = vunpack.c.l.b16 %v48
  %v572 = vunpack.c.l.b16 %v49
  %v573 = vunpack.c.l.b16 %v50
  %v574 = vunpack.c.l.b16 %v51
  %v575 = vunpack.c.l.b16 %v52
  %v576 = vunpack.c.l.b16 %v53
  %v577 = vunpack.c.l.b16 %v54
  %v578 = vunpack.c.l.b16 %v55
  %v579 = vunpack.c.l.b16 %v56
  %v580 = vunpack.c.l.b16 %v57
  %v581 = vunpack.c.l.b16 %v58
  %v582 = vunpack.c.l.b16 %v59
  %v583 = vunpack.c.l.b16 %v60
  %v584 = vunpack.c.l.b16 %v61
  %v585 = vunpack.c.l.b16 %v62
  %v586 = vunpack.c.l.b16 %v63
  %v587 = vunpack.c.l.b16 %v64
  %v588 = vunpack.c.l.b16 %v65
  %v589 = vunpack.c.l.b16 %v66
  %v590 = vunpack.c.l.b16 %v67
  %v591 = vunpack.c.l.b16 %v68
  %v592 = vunpack.c.l.b16 %v69
  %v593 = vunpack.c.l.b16 %v70
  %v594 = vunpack.c.l.b16 %v71
  %v595 = vunpack.c.l.b16 %v72
  %v596 = vunpack.c.l.b16 %v73
  %v597 = vunpack.c.l.b16 %v74
  %v598 = vunpack.c.l.b16 %v75
  %v599 = vunpack.c.l.b16 %v76
  %v600 = vunpack.c.l.b16 %v77
  %v601 = vunpack.c.l.b16 %v78
  %v602 = vunpack.c.l.b16 %v79
  %v603 = vunpack.c.l.b16 %v80
  %v604 = vunpack.c.l.b16 %v81
  %v605 = vunpack.c.l.b16 %v82
  %v606 = vunpack.c.l.b16 %v83
  %v607 = vunpack.c.l.b16 %v84
  %v608 = vunpack.c.l.b16 %v85
  %v609 = vunpack.c.l.b16 %v86
  %v610 = vunpack.c.l.b16 %v87
  %v611 = vunpack.c.l.b16 %v88
  %v612 = vunpack.c.l.b16 %v89
  %v613 = vunpack.c.l.b16 %v90
  %v614 = vunpack.c.l.b16 %v91
  %v615 = vunpack.c.l.b16 %v92
  %v616 = vunpack.c.l.b16 %v93
  %v617 = vunpack.c.l.b16 %v94
  %v618 = vunpack.c.l.b16 %v95
  %v619 = vunpack.c.l.b16 %v96
  %v620 = vunpack.c.l.b16 %v97
  %v621 = vunpack.c.l.b16 %v98
  %v622 = vunpack.c.l.b16 %v99
  %v623 = vunpack.c.l.b16 %v100
  %v624 = vunpack.c.l.b16 %v101
  %v625 = vunpack.c.l.b16 %v102
  %v626 = vunpack.c.l.b16 %v103
  %v627 = vunpack.c.l.b16 %v104
  %v628 = vunpack.c.l.b16 %v105
  %v629 = vunpack.c.l.b16 %v106
  %v630 = vunpack.c.l.b16 %v107
  %v631 = vunpack.c.l.b16 %v108
  %v632 = vunpack.c.l.b16 %v109
  %v633 = vunpack.c.l.b16 %v110
  %v634 = vunpack.c.l.b16 %v111
  %v635 = vunpack.c.l.b16 %v112
  %v636 = vunpack.c.l.b16 %v113
  %v637 = vunpack.c.l.b16 %v114
  %v638 = vunpack.c.l.b16 %v115
  %v639 = vunpack.c.l.b16 %v116
  %v640 = vunpack.c.l.b16 %v117
  %v641 = vunpack.c.l.b16 %v118
  %v642 = vunpack.c.l.b16 %v119
  %v643 = vunpack.c.l.b16 %v120
  %v644 = vunpack.c.l.b16 %v121
  %v645 = vunpack.c.l.b16 %v122
  %v646 = vunpack.c.l.b16 %v123
  %v647 = vunpack.c.l.b16 %v124
  %v648 = vunpack.c.l.b16 %v125
  %v649 = vunpack.c.l.b16 %v126
  %v650 = vunpack.c.l.b16 %v127
  %v651 = vunpack.c.l.b16 %v128
  %v652 = vunpack.c.l.b16 %v129
  %v653 = vunpack.c.l.b16 %v130
  %v654 = vunpack.c.l.b16 %v131
  %v655 = vunpack.c.l.b16 %v132
  %v656 = vunpack.c.l.b16 %v133
  %v657 = vunpack.c.l.b16 %v134
  %v658 = vunpack.c.l.b16 %v135
  %v659 = vunpack.c.l.b16 %v136
  %v660 = vunpack.c.l.b16 %v137
  %v661 = vunpack.c.l.b16 %v138
  %v662 = vunpack.c.l.b16 %v139
  %v663 = vunpack.c.l.b16 %v140
  %v664 = vunpack.c.l.b16 %v141
  %v665 = vunpack.c.l.b16 %v142
  %v666 = vunpack.c.l.b16 %v143
  %v667 = vunpack.c.l.b16 %v144
  %v668 = vunpack.c.l.b16 %v145
  %v669 = vunpack.c.l.b16 %v146
  %v670 = vunpack.c.l.b16 %v147
  %v671 = vunpack.c.l.b16 %v148
  %v672 = vunpack.c.l.b16 %v149
  %v673 = vunpack.c.l.b16 %v150
  %v674 = vunpack.c.l.b16 %v151
  %v675 = vunpack.c.l.b16 %v152
  %v676 = vunpack.c.l.b16 %v153
  %v677 = vunpack.c.l.b16 %v154
  %v678 = vunpack.c.l.b16 %v155
  %v679 = vunpack.c.l.b16 %v156
  %v680 = vunpack.c.l.b16 %v157
  %v681 = vunpack.c.l.b16 %v158
  %v682 = vunpack.c.l.b16 %v159
  %v683 = vunpack.c.l.b16 %v160
  %v684 = vunpack.c.l.b16 %v161
  %v685 = vunpack.c.l.b16 %v162
  %v686 = vunpack.c.l.b16 %v163
  %v687 = vunpack.c.l.b16 %v164
  %v688 = vunpack.c.l.b16 %v165
  %v689 = vunpack.c.l.b16 %v166
  %v690 = vunpack.c.l.b16 %v167
  %v691 = vunpack.c.l.b16 %v168
  %v692 = vunpack.c.l.b16 %v169
  %v693 = vunpack.c.l.b16 %v170
  %v694 = vunpack.c.l.b16 %v171
  %v695 = vunpack.c.l.b16 %v172
  %v696 = vunpack.c.l.b16 %v173
  %v697 = vunpack.c.l.b16 %v174
  %v698 = vunpack.c.l.b16 %v175
  %v699 = vunpack.c.l.b16 %v176
  %v700 = vunpack.c.l.b16 %v177
  %v701 = vunpack.c.l.b16 %v178
  %v702 = vunpack.c.l.b16 %v179
  %v703 = vunpack.c.l.b16 %v180
  %v704 = vunpack.c.l.b16 %v181
  %v705 = vunpack.c.l.b16 %v182
  %v706 = vunpack.c.l.b16 %v183
  %v707 = vunpack.c.l.b16 %v184
  %v708 = vunpack.c.l.b16 %v185
  %v709 = vunpack.c.l.b16 %v186
  %v710 = vunpack.c.l.b16 %v187
  %v711 = vunpack.c.l.b16 %v188
  %v712 = vunpack.c.l.b16 %v189
  %v713 = vunpack.c.l.b16 %v190
  %v714 = vunpack.c.l.b16 %v191
  %v715 = vunpack.c.l.b16 %v192
  %v716 = vunpack.c.l.b16 %v193
  %v717 = vunpack.c.l.b16 %v194
  %v718 = vunpack.c.l.b16 %v195
  %v719 = vunpack.c.l.b16 %v196
  %v720 = vunpack.c.l.b16 %v197
  %v721 = vunpack.c.l.b16 %v198
  %v722 = vunpack.c.l.b16 %v199
  %v723 = vunpack.c.l.b16 %v200
  %v724 = vunpack.c.l.b16 %v201
  %v725 = vunpack.c.l.b16 %v202
  %v726 = vunpack.c.l.b16 %v203
  %v727 = vunpack.c.l.b16 %v204
  %v728 = vunpack.c.l.b16 %v205
  %v729 = vunpack.c.l.b16 %v206
  %v730 = vunpack.c.l.b16 %v207
  %v731 = vunpack.c.l.b16 %v208
  %v732 = vunpack.c.l.b16 %v209
  %v733 = vunpack.c.l.b16 %v210
  %v734 = vunpack.c.l.b16 %v211
  %v735 = vunpack.c.l.b16 %v212
  %v736 = vunpack.c.l.b16 %v213
  %v737 = vunpack.c.l.b16 %v214
  %v738 = vunpack.c.l.b16 %v215
  %v739 = vunpack.c.l.b16 %v216
  %v740 = vunpack.c.l.b16 %v217
  %v741 = vunpack.c.l.b16 %v218
  %v742 = vunpack.c.l.b16 %v219
  %v743 = vunpack.c.l.b16 %v220
  %v744 = vunpack.c.l.b16 %v221
  %v745 = vunpack.c.l.b16 %v222
  %v746 = vunpack.c.l.b16 %v223
  %v747 = vunpack.c.l.b16 %v224
  %v748 = vunpack.c.l.b16 %v225
  %v749 = vunpack.c.l.b16 %v226
  %v750 = vunpack.c.l.b16 %v227
  %v751 = vunpack.c.l.b16 %v228
  %v752 = vunpack.c.l.b16 %v229
  %v753 = vunpack.c.l.b16 %v230
  %v754 = vunpack.c.l.b16 %v231
  %v755 = vunpack.c.l.b16 %v232
  %v756 = vunpack.c.l.b16 %v233
  %v757 = vunpack.c.l.b16 %v234
  %v758 = vunpack.c.l.b16 %v235
  %v759 = vunpack.c.l.b16 %v236
  %v760 = vunpack.c.l.b16 %v237
  %v761 = vunpack.c.l.b16 %v238
  %v762 = vunpack.c.l.b16 %v239
  %v763 = vunpack.c.l.b16 %v240
  %v764 = vunpack.c.l.b16 %v241
  %v765 = vunpack.c.l.b16 %v242
  %v766 = vunpack.c.l.b16 %v243
  %v767 = vunpack.c.l.b16 %v244
  %v768 = vunpack.c.l.b16 %v245
  %v769 = vunpack.c.l.b16 %v246
  %v770 = vunpack.c.l.b16 %v247
  %v771 = vunpack.c.l.b16 %v248
  %v772 = vunpack.c.l.b16 %v249
  %v773 = vunpack.c.l.b16 %v250
  %v774 = vunpack.c.l.b16 %v251
  %v775 = vunpack.c.l.b16 %v252
  %v776 = vunpack.c.l.b16 %v253
  %v777 = vunpack.c.l.b16 %v254
  %v778 = vunpack.c.l.b16 %v255
  %v779 = vunpack.c.l.b16 %v256
  %v780 = vunpack.c.l.b16 %v257
  %v781 = vunpack.c.l.b16 %v258
  %v782 = vunpack.c.l.b16 %v259
  %v783 = vunpack.c.l.b16 %v260
  %v784 = vunpack.c.l.b16 %v261
  %v785 = vunpack.c.l.b16 %v262
  %v786 = vunpack.c.l.b16 %v263
  %v787 = vunpack.c.l.b16 %v264
  %v788 = vunpack.c.l.b16 %v265
  %v789 = vunpack.c.l.b16 %v266
  %v790 = vunpack.c.l.b16 %v267
  %v791 = vunpack.c.l.b16 %v268
  %v792 = vunpack.c.l.b16 %v269
  %v793 = vunpack.c.l.b16 %v270
  %v794 = vpack.c.b16 %v539, %v538
  %v795 = vpack.c.b16 %v541, %v540
  %v796 = vpack.c.b16 %v543, %v542
  %v797 = vpack.c.b16 %v545, %v544
  %v798 = vpack.c.b16 %v547, %v546
  %v799 = vpack.c.b16 %v549, %v548
  %v800 = vpack.c.b16 %v551, %v550
  %v801 = vpack.c.b16 %v553, %v552
  %v802 = vpack.c.b16 %v555, %v554
  %v803 = vpack.c.b16 %v557, %v556
  %v804 = vpack.c.b16 %v559, %v558
  %v805 = vpack.c.b16 %v561, %v560
  %v806 = vpack.c.b16 %v563, %v562
  %v807 = vpack.c.b16 %v565, %v564
  %v808 = vpack.c.b16 %v567, %v566
  %v809 = vpack.c.b16 %v569, %v568
  %v810 = vpack.c.b16 %v571, %v570
  %v811 = vpack.c.b16 %v573, %v572
  %v812 = vpack.c.b16 %v575, %v574
  %v813 = vpack.c.b16 %v577, %v576
  %v814 = vpack.c.b16 %v579, %v578
  %v815 = vpack.c.b16 %v581, %v580
  %v816 = vpack.c.b16 %v583, %v582
  %v817 = vpack.c.b16 %v585, %v584
  %v818 = vpack.c.b16 %v587, %v586
  %v819 = vpack.c.b16 %v589, %v588
  %v820 = vpack.c.b16 %v591, %v590
  %v821 = vpack.c.b16 %v593, %v592
  %v822 = vpack.c.b16 %v595, %v594
  %v823 = vpack.c.b16 %v597, %v596
  %v824 = vpack.c.b16 %v599, %v598
  %v825 = vpack.c.b16 %v601, %v600
  %v826 = vpack.c.b16 %v603, %v602
  %v827 = vpack.c.b16 %v605, %v604
  %v828 = vpack.c.b16 %v607, %v606
  %v829 = vpack.c.b16 %v609, %v608
  %v830 = vpack.c.b16 %v611, %v610
  %v831 = vpack.c.b16 %v613, %v612
  %v832 = vpack.c.b16 %v615, %v614
  %v833 = vpack.c.b16 %v617, %v616
  %v834 = vpack.c.b16 %v619, %v618
  %v835 = vpack.c.b16 %v621, %v620
  %v836 = vpack.c.b16 %v623, %v622
  %v837 = vpack.c.b16 %v625, %v624
  %v838 = vpack.c.b16 %v627, %v626
  %v839 = vpack.c.b16 %v629, %v628
  %v840 = vpack.c.b16 %v631, %v630
  %v841 = vpack.c.b16 %v633, %v632
  %v842 = vpack.c.b16 %v635, %v634
  %v843 = vpack.c.b16 %v637, %v636
  %v844 = vpack.c.b16 %v639, %v638
  %v845 = vpack.c.b16 %v641, %v640
  %v846 = vpack.c.b16 %v643, %v642
  %v847 = vpack.c.b16 %v645, %v644
  %v848 = vpack.c.b16 %v647, %v646
  %v849 = vpack.c.b16 %v649, %v648
  %v850 = vpack.c.b16 %v651, %v650
  %v851 = vpack.c.b16 %v653, %v652
  %v852 = vpack.c.b16 %v655, %v654
  %v853 = vpack.c.b16 %v657, %v656
  %v854 = vpack.c.b16 %v659, %v658
  %v855 = vpack.c.b16 %v661, %v660
  %v856 = vpack.c.b16 %v663, %v662
  %v857 = vpack.c.b16 %v665, %v664
  %v858 = vpack.c.b16 %v667, %v666
  %v859 = vpack.c.b16 %v669, %v668
  %v860 = vpack.c.b16 %v671, %v670
  %v861 = vpack.c.b16 %v673, %v672
  %v862 = vpack.c.b16 %v675, %v674
  %v863 = vpack.c.b16 %v677, %v676
  %v864 = vpack.c.b16 %v679, %v678
  %v865 = vpack.c.b16 %v681, %v680
  %v866 = vpack.c.b16 %v683, %v682
  %v867 = vpack.c.b16 %v685, %v684
  %v868 = vpack.c.b16 %v687, %v686
  %v869 = vpack.c.b16 %v689, %v688
  %v870 = vpack.c.b16 %v691, %v690
  %v871 = vpack.c.b16 %v693, %v692
  %v872 = vpack.c.b16 %v695, %v694
  %v873 = vpack.c.b16 %v697, %v696
  %v874 = vpack.c.b16 %v699, %v698
  %v875 = vpack.c.b16 %v701, %v700
  %v876 = vpack.c.b16 %v703, %v702
  %v877 = vpack.c.b16 %v705, %v704
  %v878 = vpack.c.b16 %v707, %v706
  %v879 = vpack.c.b16 %v709, %v708
  %v880 = vpack.c.b16 %v711, %v710
  %v881 = vpack.c.b16 %v713, %v712
  %v882 = vpack.c.b16 %v715, %v714
  %v883 = vpack.c.b16 %v717, %v716
  %v884 = vpack.c.b16 %v719, %v718
  %v885 = vpack.c.b16 %v721, %v720
  %v886 = vpack.c.b16 %v723, %v722
  %v887 = vpack.c.b16 %v725, %v724
  %v888 = vpack.c.b16 %v727, %v726
  %v889 = vpack.c.b16 %v729, %v728
  %v890 = vpack.c.b16 %v731, %v730
  %v891 = vpack.c.b16 %v733, %v732
  %v892 = vpack.c.b16 %v735, %v734
  %v893 = vpack.c.b16 %v737, %v736
  %v894 = vpack.c.b16 %v739, %v738
  %v895 = vpack.c.b16 %v741, %v740
  %v896 = vpack.c.b16 %v743, %v742
  %v897 = vpack.c.b16 %v745, %v744
  %v898 = vpack.c.b16 %v747, %v746
  %v899 = vpack.c.b16 %v749, %v748
  %v900 = vpack.c.b16 %v751, %v750
  %v901 = vpack.c.b16 %v753, %v752
  %v902 = vpack.c.b16 %v755, %v754
  %v903 = vpack.c.b16 %v757, %v756
  %v904 = vpack.c.b16 %v759, %v758
  %v905 = vpack.c.b16 %v761, %v760
  %v906 = vpack.c.b16 %v763, %v762
  %v907 = vpack.c.b16 %v765, %v764
  %v908 = vpack.c.b16 %v767, %v766
  %v909 = vpack.c.b16 %v769, %v768
  %v910 = vpack.c.b16 %v771, %v770
  %v911 = vpack.c.b16 %v773, %v772
  %v912 = vpack.c.b16 %v775, %v774
  %v913 = vpack.c.b16 %v777, %v776
  %v914 = vpack.c.b16 %v779, %v778
  %v915 = vpack.c.b16 %v781, %v780
  %v916 = vpack.c.b16 %v783, %v782
  %v917 = vpack.c.b16 %v785, %v784
  %v918 = vpack.c.b16 %v787, %v786
  %v919 = vpack.c.b16 %v789, %v788
  %v920 = vpack.c.b16 %v791, %v790
  %v921 = vpack.c.b16 %v793, %v792
  %v926 = vunpack.c.l.b16 %v271
  %v927 = vunpack.c.l.b16 %v272
  %v928 = vunpack.c.l.b16 %v273
  %v929 = vunpack.c.l.b16 %v274
  %v930 = vpack.c.b16 %v927, %v926
  %v931 = vpack.c.b16 %v929, %v928
  %vm934 = vcmask 261120
  %v936 = vsel %vm934, %v794, 0
  %v939 = vsel %vm934, %v795, 0
  %v942 = vsel %vm934, %v796, 0
  %v945 = vsel %vm934, %v797, 0
  %v948 = vsel %vm934, %v798, 0
  %v951 = vsel %vm934, %v799, 0
  %v954 = vsel %vm934, %v800, 0
  %v957 = vsel %vm934, %v801, 0
  %v960 = vsel %vm934, %v802, 0
  %v963 = vsel %vm934, %v803, 0
  %v966 = vsel %vm934, %v804, 0
  %v969 = vsel %vm934, %v805, 0
  %v972 = vsel %vm934, %v806, 0
  %v975 = vsel %vm934, %v807, 0
  %v978 = vsel %vm934, %v808, 0
  %v981 = vsel %vm934, %v809, 0
  %v984 = vsel %vm934, %v810, 0
  %v987 = vsel %vm934, %v811, 0
  %v990 = vsel %vm934, %v812, 0
  %v993 = vsel %vm934, %v813, 0
  %v996 = vsel %vm934, %v814, 0
  %v999 = vsel %vm934, %v815, 0
  %v1002 = vsel %vm934, %v816, 0
  %v1005 = vsel %vm934, %v817, 0
  %v1008 = vsel %vm934, %v818, 0
  %v1011 = vsel %vm934, %v819, 0
  %v1014 = vsel %vm934, %v820, 0
  %v1017 = vsel %vm934, %v821, 0
  %v1020 = vsel %vm934, %v822, 0
  %v1023 = vsel %vm934, %v823, 0
  %v1026 = vsel %vm934, %v824, 0
  %v1029 = vsel %vm934, %v825, 0
  %v1032 = vsel %vm934, %v826, 0
  %v1035 = vsel %vm934, %v827, 0
  %v1038 = vsel %vm934, %v828, 0
  %v1041 = vsel %vm934, %v829, 0
  %v1044 = vsel %vm934, %v830, 0
  %v1047 = vsel %vm934, %v831, 0
  %v1050 = vsel %vm934, %v832, 0
  %v1053 = vsel %vm934, %v833, 0
  %v1056 = vsel %vm934, %v834, 0
  %v1059 = vsel %vm934, %v835, 0
  %v1062 = vsel %vm934, %v836, 0
  %v1065 = vsel %vm934, %v837, 0
  %v1068 = vsel %vm934, %v838, 0
  %v1071 = vsel %vm934, %v839, 0
  %v1074 = vsel %vm934, %v840, 0
  %v1077 = vsel %vm934, %v841, 0
  %v1080 = vsel %vm934, %v842, 0
  %v1083 = vsel %vm934, %v843, 0
  %v1086 = vsel %vm934, %v844, 0
  %v1089 = vsel %vm934, %v845, 0
  %v1092 = vsel %vm934, %v846, 0
  %v1095 = vsel %vm934, %v847, 0
  %v1098 = vsel %vm934, %v848, 0
  %v1101 = vsel %vm934, %v849, 0
  %v1104 = vsel %vm934, %v850, 0
  %v1107 = vsel %vm934, %v851, 0
  %v1110 = vsel %vm934, %v852, 0
  %v1113 = vsel %vm934, %v853, 0
  %v1116 = vsel %vm934, %v854, 0
  %v1119 = vsel %vm934, %v855, 0
  %v1122 = vsel %vm934, %v856, 0
  %v1125 = vsel %vm934, %v857, 0
  %v1128 = vsel %vm934, %v858, 0
  %v1131 = vsel %vm934, %v859, 0
  %v1134 = vsel %vm934, %v860, 0
  %v1137 = vsel %vm934, %v861, 0
  %v1140 = vsel %vm934, %v862, 0
  %v1143 = vsel %vm934, %v863, 0
  %v1146 = vsel %vm934, %v864, 0
  %v1149 = vsel %vm934, %v865, 0
  %v1152 = vsel %vm934, %v866, 0
  %v1155 = vsel %vm934, %v867, 0
  %v1158 = vsel %vm934, %v868, 0
  %v1161 = vsel %vm934, %v869, 0
  %v1164 = vsel %vm934, %v870, 0
  %v1167 = vsel %vm934, %v871, 0
  %v1170 = vsel %vm934, %v872, 0
  %v1173 = vsel %vm934, %v873, 0
  %v1176 = vsel %vm934, %v874, 0
  %v1179 = vsel %vm934, %v875, 0
  %v1182 = vsel %vm934, %v876, 0
  %v1185 = vsel %vm934, %v877, 0
  %v1188 = vsel %vm934, %v878, 0
  %v1191 = vsel %vm934, %v879, 0
  %v1194 = vsel %vm934, %v880, 0
  %v1197 = vsel %vm934, %v881, 0
  %v1200 = vsel %vm934, %v882, 0
  %v1203 = vsel %vm934, %v883, 0
  %v1206 = vsel %vm934, %v884, 0
  %v1209 = vsel %vm934, %v885, 0
  %v1212 = vsel %vm934, %v886, 0
  %v1215 = vsel %vm934, %v887, 0
  %v1218 = vsel %vm934, %v888, 0
  %v1221 = vsel %vm934, %v889, 0
  %v1224 = vsel %vm934, %v890, 0
  %v1227 = vsel %vm934, %v891, 0
  %v1230 = vsel %vm934, %v892, 0
  %v1233 = vsel %vm934, %v893, 0
  %v1236 = vsel %vm934, %v894, 0
  %v1239 = vsel %vm934, %v895, 0
  %v1242 = vsel %vm934, %v896, 0
  %v1245 = vsel %vm934, %v897, 0
  %v1248 = vsel %vm934, %v898, 0
  %v1251 = vsel %vm934, %v899, 0
  %v1254 = vsel %vm934, %v900, 0
  %v1257 = vsel %vm934, %v901, 0
  %v1260 = vsel %vm934, %v902, 0
  %v1263 = vsel %vm934, %v903, 0
  %v1266 = vsel %vm934, %v904, 0
  %v1269 = vsel %vm934, %v905, 0
  %v1272 = vsel %vm934, %v906, 0
  %v1275 = vsel %vm934, %v907, 0
  %v1278 = vsel %vm934, %v908, 0
  %v1281 = vsel %vm934, %v909, 0
  %v1284 = vsel %vm934, %v910, 0
  %v1287 = vsel %vm934, %v911, 0
  %v1290 = vsel %vm934, %v912, 0
  %v1293 = vsel %vm934, %v913, 0
  %v1296 = vsel %vm934, %v914, 0
  %v1299 = vsel %vm934, %v915, 0
  %v1302 = vsel %vm934, %v916, 0
  %v1305 = vsel %vm934, %v917, 0
  %v1308 = vsel %vm934, %v918, 0
  %v1311 = vsel %vm934, %v919, 0
  %v1314 = vsel %vm934, %v920, 0
  %v1317 = vsel %vm934, %v921, 0
  %1319 = vmatprep.subr.bf16.mxu0 0
  %1320 = vmatpush1.bf16.msra.mxu0 0
  %1321 = vmatprep.subr.bf16.mxu0 0
  %1322 = vmatpush1.bf16.msra.mxu0 0
  %1323 = vmatprep.subr.bf16.mxu0 0
  %1324 = vmatpush1.bf16.msra.mxu0 0
  %1325 = vmatprep.subr.bf16.mxu0 0
  %1326 = vmatpush1.bf16.msra.mxu0 0
  %1327 = vmatprep.subr.bf16.mxu0 0
  %1328 = vmatpush1.bf16.msra.mxu0 0
  %1329 = vmatprep.subr.bf16.mxu0 0
  %1330 = vmatpush1.bf16.msra.mxu0 0
  %1331 = vmatprep.subr.bf16.mxu0 0
  %1332 = vmatpush1.bf16.msra.mxu0 %v931
  %1333 = vmatprep.subr.bf16.mxu0 0
  %1334 = vmatpush1.bf16.msra.mxu0 %v930
  %1335 = vmatprep.subr.bf16.mxu0 0
  %1336 = vmatpush2.bf16.msra.mxu0 0
  %1337 = vmatprep.subr.bf16.mxu0 0
  %1338 = vmatpush2.bf16.msra.mxu0 0
  %1339 = vmatprep.subr.bf16.mxu0 0
  %1340 = vmatpush2.bf16.msra.mxu0 0
  %1341 = vmatprep.subr.bf16.mxu0 0
  %1342 = vmatpush2.bf16.msra.mxu0 0
  %1343 = vmatprep.subr.bf16.mxu0 0
  %1344 = vmatpush2.bf16.msra.mxu0 0
  %1345 = vmatprep.subr.bf16.mxu0 0
  %1346 = vmatpush2.bf16.msra.mxu0 0
  %1347 = vmatprep.subr.bf16.mxu0 0
  %1348 = vmatpush2.bf16.msra.mxu0 0
  %1349 = vmatprep.subr.bf16.mxu0 0
  %1350 = vmatpush2.bf16.msra.mxu0 0
  %1351 = vmatprep.mubr.bf16.mxu0 0
  %1352 = vmatmul.mubr.bf16.gmra.mxu0 %v936
  %v1353 = vpop.f32.mrf.mxu0
  %v1354 = vadd.f32 %v280, %v1353
  %v1355 = vpop.f32.mrf.mxu0
  %v1356 = vpop.f32.mrf.mxu0
  %v1357 = vadd.f32 %v280, %v1356
  %v1358 = vpop.f32.mrf.mxu0
  %1359 = vmatprep.mubr.bf16.mxu0 0
  %1360 = vmatmul.mubr.bf16.gmra.mxu0 %v939
  %v1361 = vpop.f32.mrf.mxu0
  %v1362 = vadd.f32 %v280, %v1361
  %v1363 = vpop.f32.mrf.mxu0
  %v1364 = vpop.f32.mrf.mxu0
  %v1365 = vadd.f32 %v280, %v1364
  %v1366 = vpop.f32.mrf.mxu0
  %1367 = vmatprep.mubr.bf16.mxu0 0
  %1368 = vmatmul.mubr.bf16.gmra.mxu0 %v942
  %v1369 = vpop.f32.mrf.mxu0
  %v1370 = vadd.f32 %v280, %v1369
  %v1371 = vpop.f32.mrf.mxu0
  %v1372 = vpop.f32.mrf.mxu0
  %v1373 = vadd.f32 %v280, %v1372
  %v1374 = vpop.f32.mrf.mxu0
  %1375 = vmatprep.mubr.bf16.mxu0 0
  %1376 = vmatmul.mubr.bf16.gmra.mxu0 %v945
  %v1377 = vpop.f32.mrf.mxu0
  %v1378 = vadd.f32 %v280, %v1377
  %v1379 = vpop.f32.mrf.mxu0
  %v1380 = vpop.f32.mrf.mxu0
  %v1381 = vadd.f32 %v280, %v1380
  %v1382 = vpop.f32.mrf.mxu0
  %1383 = vmatprep.mubr.bf16.mxu0 0
  %1384 = vmatmul.mubr.bf16.gmra.mxu0 %v948
  %v1385 = vpop.f32.mrf.mxu0
  %v1386 = vadd.f32 %v280, %v1385
  %v1387 = vpop.f32.mrf.mxu0
  %v1388 = vpop.f32.mrf.mxu0
  %v1389 = vadd.f32 %v280, %v1388
  %v1390 = vpop.f32.mrf.mxu0
  %1391 = vmatprep.mubr.bf16.mxu0 0
  %1392 = vmatmul.mubr.bf16.gmra.mxu0 %v951
  %v1393 = vpop.f32.mrf.mxu0
  %v1394 = vadd.f32 %v280, %v1393
  %v1395 = vpop.f32.mrf.mxu0
  %v1396 = vpop.f32.mrf.mxu0
  %v1397 = vadd.f32 %v280, %v1396
  %v1398 = vpop.f32.mrf.mxu0
  %1399 = vmatprep.mubr.bf16.mxu0 0
  %1400 = vmatmul.mubr.bf16.gmra.mxu0 %v954
  %v1401 = vpop.f32.mrf.mxu0
  %v1402 = vadd.f32 %v280, %v1401
  %v1403 = vpop.f32.mrf.mxu0
  %v1404 = vpop.f32.mrf.mxu0
  %v1405 = vadd.f32 %v280, %v1404
  %v1406 = vpop.f32.mrf.mxu0
  %1407 = vmatprep.mubr.bf16.mxu0 0
  %1408 = vmatmul.mubr.bf16.gmra.mxu0 %v957
  %v1409 = vpop.f32.mrf.mxu0
  %v1410 = vadd.f32 %v280, %v1409
  %v1411 = vpop.f32.mrf.mxu0
  %v1412 = vpop.f32.mrf.mxu0
  %v1413 = vadd.f32 %v280, %v1412
  %v1414 = vpop.f32.mrf.mxu0
  %1415 = vmatprep.mubr.bf16.mxu0 0
  %1416 = vmatmul.mubr.bf16.gmra.mxu0 %v960
  %v1417 = vpop.f32.mrf.mxu0
  %v1418 = vadd.f32 %v280, %v1417
  %v1419 = vpop.f32.mrf.mxu0
  %v1420 = vpop.f32.mrf.mxu0
  %v1421 = vadd.f32 %v280, %v1420
  %v1422 = vpop.f32.mrf.mxu0
  %1423 = vmatprep.mubr.bf16.mxu0 0
  %1424 = vmatmul.mubr.bf16.gmra.mxu0 %v963
  %v1425 = vpop.f32.mrf.mxu0
  %v1426 = vadd.f32 %v280, %v1425
  %v1427 = vpop.f32.mrf.mxu0
  %v1428 = vpop.f32.mrf.mxu0
  %v1429 = vadd.f32 %v280, %v1428
  %v1430 = vpop.f32.mrf.mxu0
  %1431 = vmatprep.mubr.bf16.mxu0 0
  %1432 = vmatmul.mubr.bf16.gmra.mxu0 %v966
  %v1433 = vpop.f32.mrf.mxu0
  %v1434 = vadd.f32 %v280, %v1433
  %v1435 = vpop.f32.mrf.mxu0
  %v1436 = vpop.f32.mrf.mxu0
  %v1437 = vadd.f32 %v280, %v1436
  %v1438 = vpop.f32.mrf.mxu0
  %1439 = vmatprep.mubr.bf16.mxu0 0
  %1440 = vmatmul.mubr.bf16.gmra.mxu0 %v969
  %v1441 = vpop.f32.mrf.mxu0
  %v1442 = vadd.f32 %v280, %v1441
  %v1443 = vpop.f32.mrf.mxu0
  %v1444 = vpop.f32.mrf.mxu0
  %v1445 = vadd.f32 %v280, %v1444
  %v1446 = vpop.f32.mrf.mxu0
  %1447 = vmatprep.mubr.bf16.mxu0 0
  %1448 = vmatmul.mubr.bf16.gmra.mxu0 %v972
  %v1449 = vpop.f32.mrf.mxu0
  %v1450 = vadd.f32 %v280, %v1449
  %v1451 = vpop.f32.mrf.mxu0
  %v1452 = vpop.f32.mrf.mxu0
  %v1453 = vadd.f32 %v280, %v1452
  %v1454 = vpop.f32.mrf.mxu0
  %1455 = vmatprep.mubr.bf16.mxu0 0
  %1456 = vmatmul.mubr.bf16.gmra.mxu0 %v975
  %v1457 = vpop.f32.mrf.mxu0
  %v1458 = vadd.f32 %v280, %v1457
  %v1459 = vpop.f32.mrf.mxu0
  %v1460 = vpop.f32.mrf.mxu0
  %v1461 = vadd.f32 %v280, %v1460
  %v1462 = vpop.f32.mrf.mxu0
  %1463 = vmatprep.mubr.bf16.mxu0 0
  %1464 = vmatmul.mubr.bf16.gmra.mxu0 %v978
  %v1465 = vpop.f32.mrf.mxu0
  %v1466 = vadd.f32 %v280, %v1465
  %v1467 = vpop.f32.mrf.mxu0
  %v1468 = vpop.f32.mrf.mxu0
  %v1469 = vadd.f32 %v280, %v1468
  %v1470 = vpop.f32.mrf.mxu0
  %1471 = vmatprep.mubr.bf16.mxu0 0
  %1472 = vmatmul.mubr.bf16.gmra.mxu0 %v981
  %v1473 = vpop.f32.mrf.mxu0
  %v1474 = vadd.f32 %v280, %v1473
  %v1475 = vpop.f32.mrf.mxu0
  %v1476 = vpop.f32.mrf.mxu0
  %v1477 = vadd.f32 %v280, %v1476
  %v1478 = vpop.f32.mrf.mxu0
  %1479 = vmatprep.mubr.bf16.mxu0 0
  %1480 = vmatmul.mubr.bf16.gmra.mxu0 %v984
  %v1481 = vpop.f32.mrf.mxu0
  %v1482 = vadd.f32 %v280, %v1481
  %v1483 = vpop.f32.mrf.mxu0
  %v1484 = vpop.f32.mrf.mxu0
  %v1485 = vadd.f32 %v280, %v1484
  %v1486 = vpop.f32.mrf.mxu0
  %1487 = vmatprep.mubr.bf16.mxu0 0
  %1488 = vmatmul.mubr.bf16.gmra.mxu0 %v987
  %v1489 = vpop.f32.mrf.mxu0
  %v1490 = vadd.f32 %v280, %v1489
  %v1491 = vpop.f32.mrf.mxu0
  %v1492 = vpop.f32.mrf.mxu0
  %v1493 = vadd.f32 %v280, %v1492
  %v1494 = vpop.f32.mrf.mxu0
  %1495 = vmatprep.mubr.bf16.mxu0 0
  %1496 = vmatmul.mubr.bf16.gmra.mxu0 %v990
  %v1497 = vpop.f32.mrf.mxu0
  %v1498 = vadd.f32 %v280, %v1497
  %v1499 = vpop.f32.mrf.mxu0
  %v1500 = vpop.f32.mrf.mxu0
  %v1501 = vadd.f32 %v280, %v1500
  %v1502 = vpop.f32.mrf.mxu0
  %1503 = vmatprep.mubr.bf16.mxu0 0
  %1504 = vmatmul.mubr.bf16.gmra.mxu0 %v993
  %v1505 = vpop.f32.mrf.mxu0
  %v1506 = vadd.f32 %v280, %v1505
  %v1507 = vpop.f32.mrf.mxu0
  %v1508 = vpop.f32.mrf.mxu0
  %v1509 = vadd.f32 %v280, %v1508
  %v1510 = vpop.f32.mrf.mxu0
  %1511 = vmatprep.mubr.bf16.mxu0 0
  %1512 = vmatmul.mubr.bf16.gmra.mxu0 %v996
  %v1513 = vpop.f32.mrf.mxu0
  %v1514 = vadd.f32 %v280, %v1513
  %v1515 = vpop.f32.mrf.mxu0
  %v1516 = vpop.f32.mrf.mxu0
  %v1517 = vadd.f32 %v280, %v1516
  %v1518 = vpop.f32.mrf.mxu0
  %1519 = vmatprep.mubr.bf16.mxu0 0
  %1520 = vmatmul.mubr.bf16.gmra.mxu0 %v999
  %v1521 = vpop.f32.mrf.mxu0
  %v1522 = vadd.f32 %v280, %v1521
  %v1523 = vpop.f32.mrf.mxu0
  %v1524 = vpop.f32.mrf.mxu0
  %v1525 = vadd.f32 %v280, %v1524
  %v1526 = vpop.f32.mrf.mxu0
  %1527 = vmatprep.mubr.bf16.mxu0 0
  %1528 = vmatmul.mubr.bf16.gmra.mxu0 %v1002
  %v1529 = vpop.f32.mrf.mxu0
  %v1530 = vadd.f32 %v280, %v1529
  %v1531 = vpop.f32.mrf.mxu0
  %v1532 = vpop.f32.mrf.mxu0
  %v1533 = vadd.f32 %v280, %v1532
  %v1534 = vpop.f32.mrf.mxu0
  %1535 = vmatprep.mubr.bf16.mxu0 0
  %1536 = vmatmul.mubr.bf16.gmra.mxu0 %v1005
  %v1537 = vpop.f32.mrf.mxu0
  %v1538 = vadd.f32 %v280, %v1537
  %v1539 = vpop.f32.mrf.mxu0
  %v1540 = vpop.f32.mrf.mxu0
  %v1541 = vadd.f32 %v280, %v1540
  %v1542 = vpop.f32.mrf.mxu0
  %1543 = vmatprep.mubr.bf16.mxu0 0
  %1544 = vmatmul.mubr.bf16.gmra.mxu0 %v1008
  %v1545 = vpop.f32.mrf.mxu0
  %v1546 = vadd.f32 %v280, %v1545
  %v1547 = vpop.f32.mrf.mxu0
  %v1548 = vpop.f32.mrf.mxu0
  %v1549 = vadd.f32 %v280, %v1548
  %v1550 = vpop.f32.mrf.mxu0
  %1551 = vmatprep.mubr.bf16.mxu0 0
  %1552 = vmatmul.mubr.bf16.gmra.mxu0 %v1011
  %v1553 = vpop.f32.mrf.mxu0
  %v1554 = vadd.f32 %v280, %v1553
  %v1555 = vpop.f32.mrf.mxu0
  %v1556 = vpop.f32.mrf.mxu0
  %v1557 = vadd.f32 %v280, %v1556
  %v1558 = vpop.f32.mrf.mxu0
  %1559 = vmatprep.mubr.bf16.mxu0 0
  %1560 = vmatmul.mubr.bf16.gmra.mxu0 %v1014
  %v1561 = vpop.f32.mrf.mxu0
  %v1562 = vadd.f32 %v280, %v1561
  %v1563 = vpop.f32.mrf.mxu0
  %v1564 = vpop.f32.mrf.mxu0
  %v1565 = vadd.f32 %v280, %v1564
  %v1566 = vpop.f32.mrf.mxu0
  %1567 = vmatprep.mubr.bf16.mxu0 0
  %1568 = vmatmul.mubr.bf16.gmra.mxu0 %v1017
  %v1569 = vpop.f32.mrf.mxu0
  %v1570 = vadd.f32 %v280, %v1569
  %v1571 = vpop.f32.mrf.mxu0
  %v1572 = vpop.f32.mrf.mxu0
  %v1573 = vadd.f32 %v280, %v1572
  %v1574 = vpop.f32.mrf.mxu0
  %1575 = vmatprep.mubr.bf16.mxu0 0
  %1576 = vmatmul.mubr.bf16.gmra.mxu0 %v1020
  %v1577 = vpop.f32.mrf.mxu0
  %v1578 = vadd.f32 %v280, %v1577
  %v1579 = vpop.f32.mrf.mxu0
  %v1580 = vpop.f32.mrf.mxu0
  %v1581 = vadd.f32 %v280, %v1580
  %v1582 = vpop.f32.mrf.mxu0
  %1583 = vmatprep.mubr.bf16.mxu0 0
  %1584 = vmatmul.mubr.bf16.gmra.mxu0 %v1023
  %v1585 = vpop.f32.mrf.mxu0
  %v1586 = vadd.f32 %v280, %v1585
  %v1587 = vpop.f32.mrf.mxu0
  %v1588 = vpop.f32.mrf.mxu0
  %v1589 = vadd.f32 %v280, %v1588
  %v1590 = vpop.f32.mrf.mxu0
  %1591 = vmatprep.mubr.bf16.mxu0 0
  %1592 = vmatmul.mubr.bf16.gmra.mxu0 %v1026
  %v1593 = vpop.f32.mrf.mxu0
  %v1594 = vadd.f32 %v280, %v1593
  %v1595 = vpop.f32.mrf.mxu0
  %v1596 = vpop.f32.mrf.mxu0
  %v1597 = vadd.f32 %v280, %v1596
  %v1598 = vpop.f32.mrf.mxu0
  %1599 = vmatprep.mubr.bf16.mxu0 0
  %1600 = vmatmul.mubr.bf16.gmra.mxu0 %v1029
  %v1601 = vpop.f32.mrf.mxu0
  %v1602 = vadd.f32 %v280, %v1601
  %v1603 = vpop.f32.mrf.mxu0
  %v1604 = vpop.f32.mrf.mxu0
  %v1605 = vadd.f32 %v280, %v1604
  %v1606 = vpop.f32.mrf.mxu0
  %1607 = vmatprep.mubr.bf16.mxu0 0
  %1608 = vmatmul.mubr.bf16.gmra.mxu0 %v1032
  %v1609 = vpop.f32.mrf.mxu0
  %v1610 = vadd.f32 %v280, %v1609
  %v1611 = vpop.f32.mrf.mxu0
  %v1612 = vpop.f32.mrf.mxu0
  %v1613 = vadd.f32 %v280, %v1612
  %v1614 = vpop.f32.mrf.mxu0
  %1615 = vmatprep.mubr.bf16.mxu0 0
  %1616 = vmatmul.mubr.bf16.gmra.mxu0 %v1035
  %v1617 = vpop.f32.mrf.mxu0
  %v1618 = vadd.f32 %v280, %v1617
  %v1619 = vpop.f32.mrf.mxu0
  %v1620 = vpop.f32.mrf.mxu0
  %v1621 = vadd.f32 %v280, %v1620
  %v1622 = vpop.f32.mrf.mxu0
  %1623 = vmatprep.mubr.bf16.mxu0 0
  %1624 = vmatmul.mubr.bf16.gmra.mxu0 %v1038
  %v1625 = vpop.f32.mrf.mxu0
  %v1626 = vadd.f32 %v280, %v1625
  %v1627 = vpop.f32.mrf.mxu0
  %v1628 = vpop.f32.mrf.mxu0
  %v1629 = vadd.f32 %v280, %v1628
  %v1630 = vpop.f32.mrf.mxu0
  %1631 = vmatprep.mubr.bf16.mxu0 0
  %1632 = vmatmul.mubr.bf16.gmra.mxu0 %v1041
  %v1633 = vpop.f32.mrf.mxu0
  %v1634 = vadd.f32 %v280, %v1633
  %v1635 = vpop.f32.mrf.mxu0
  %v1636 = vpop.f32.mrf.mxu0
  %v1637 = vadd.f32 %v280, %v1636
  %v1638 = vpop.f32.mrf.mxu0
  %1639 = vmatprep.mubr.bf16.mxu0 0
  %1640 = vmatmul.mubr.bf16.gmra.mxu0 %v1044
  %v1641 = vpop.f32.mrf.mxu0
  %v1642 = vadd.f32 %v280, %v1641
  %v1643 = vpop.f32.mrf.mxu0
  %v1644 = vpop.f32.mrf.mxu0
  %v1645 = vadd.f32 %v280, %v1644
  %v1646 = vpop.f32.mrf.mxu0
  %1647 = vmatprep.mubr.bf16.mxu0 0
  %1648 = vmatmul.mubr.bf16.gmra.mxu0 %v1047
  %v1649 = vpop.f32.mrf.mxu0
  %v1650 = vadd.f32 %v280, %v1649
  %v1651 = vpop.f32.mrf.mxu0
  %v1652 = vpop.f32.mrf.mxu0
  %v1653 = vadd.f32 %v280, %v1652
  %v1654 = vpop.f32.mrf.mxu0
  %1655 = vmatprep.mubr.bf16.mxu0 0
  %1656 = vmatmul.mubr.bf16.gmra.mxu0 %v1050
  %v1657 = vpop.f32.mrf.mxu0
  %v1658 = vadd.f32 %v280, %v1657
  %v1659 = vpop.f32.mrf.mxu0
  %v1660 = vpop.f32.mrf.mxu0
  %v1661 = vadd.f32 %v280, %v1660
  %v1662 = vpop.f32.mrf.mxu0
  %1663 = vmatprep.mubr.bf16.mxu0 0
  %1664 = vmatmul.mubr.bf16.gmra.mxu0 %v1053
  %v1665 = vpop.f32.mrf.mxu0
  %v1666 = vadd.f32 %v280, %v1665
  %v1667 = vpop.f32.mrf.mxu0
  %v1668 = vpop.f32.mrf.mxu0
  %v1669 = vadd.f32 %v280, %v1668
  %v1670 = vpop.f32.mrf.mxu0
  %1671 = vmatprep.mubr.bf16.mxu0 0
  %1672 = vmatmul.mubr.bf16.gmra.mxu0 %v1056
  %v1673 = vpop.f32.mrf.mxu0
  %v1674 = vadd.f32 %v280, %v1673
  %v1675 = vpop.f32.mrf.mxu0
  %v1676 = vpop.f32.mrf.mxu0
  %v1677 = vadd.f32 %v280, %v1676
  %v1678 = vpop.f32.mrf.mxu0
  %1679 = vmatprep.mubr.bf16.mxu0 0
  %1680 = vmatmul.mubr.bf16.gmra.mxu0 %v1059
  %v1681 = vpop.f32.mrf.mxu0
  %v1682 = vadd.f32 %v280, %v1681
  %v1683 = vpop.f32.mrf.mxu0
  %v1684 = vpop.f32.mrf.mxu0
  %v1685 = vadd.f32 %v280, %v1684
  %v1686 = vpop.f32.mrf.mxu0
  %1687 = vmatprep.mubr.bf16.mxu0 0
  %1688 = vmatmul.mubr.bf16.gmra.mxu0 %v1062
  %v1689 = vpop.f32.mrf.mxu0
  %v1690 = vadd.f32 %v280, %v1689
  %v1691 = vpop.f32.mrf.mxu0
  %v1692 = vpop.f32.mrf.mxu0
  %v1693 = vadd.f32 %v280, %v1692
  %v1694 = vpop.f32.mrf.mxu0
  %1695 = vmatprep.mubr.bf16.mxu0 0
  %1696 = vmatmul.mubr.bf16.gmra.mxu0 %v1065
  %v1697 = vpop.f32.mrf.mxu0
  %v1698 = vadd.f32 %v280, %v1697
  %v1699 = vpop.f32.mrf.mxu0
  %v1700 = vpop.f32.mrf.mxu0
  %v1701 = vadd.f32 %v280, %v1700
  %v1702 = vpop.f32.mrf.mxu0
  %1703 = vmatprep.mubr.bf16.mxu0 0
  %1704 = vmatmul.mubr.bf16.gmra.mxu0 %v1068
  %v1705 = vpop.f32.mrf.mxu0
  %v1706 = vadd.f32 %v280, %v1705
  %v1707 = vpop.f32.mrf.mxu0
  %v1708 = vpop.f32.mrf.mxu0
  %v1709 = vadd.f32 %v280, %v1708
  %v1710 = vpop.f32.mrf.mxu0
  %1711 = vmatprep.mubr.bf16.mxu0 0
  %1712 = vmatmul.mubr.bf16.gmra.mxu0 %v1071
  %v1713 = vpop.f32.mrf.mxu0
  %v1714 = vadd.f32 %v280, %v1713
  %v1715 = vpop.f32.mrf.mxu0
  %v1716 = vpop.f32.mrf.mxu0
  %v1717 = vadd.f32 %v280, %v1716
  %v1718 = vpop.f32.mrf.mxu0
  %1719 = vmatprep.mubr.bf16.mxu0 0
  %1720 = vmatmul.mubr.bf16.gmra.mxu0 %v1074
  %v1721 = vpop.f32.mrf.mxu0
  %v1722 = vadd.f32 %v280, %v1721
  %v1723 = vpop.f32.mrf.mxu0
  %v1724 = vpop.f32.mrf.mxu0
  %v1725 = vadd.f32 %v280, %v1724
  %v1726 = vpop.f32.mrf.mxu0
  %1727 = vmatprep.mubr.bf16.mxu0 0
  %1728 = vmatmul.mubr.bf16.gmra.mxu0 %v1077
  %v1729 = vpop.f32.mrf.mxu0
  %v1730 = vadd.f32 %v280, %v1729
  %v1731 = vpop.f32.mrf.mxu0
  %v1732 = vpop.f32.mrf.mxu0
  %v1733 = vadd.f32 %v280, %v1732
  %v1734 = vpop.f32.mrf.mxu0
  %1735 = vmatprep.mubr.bf16.mxu0 0
  %1736 = vmatmul.mubr.bf16.gmra.mxu0 %v1080
  %v1737 = vpop.f32.mrf.mxu0
  %v1738 = vadd.f32 %v280, %v1737
  %v1739 = vpop.f32.mrf.mxu0
  %v1740 = vpop.f32.mrf.mxu0
  %v1741 = vadd.f32 %v280, %v1740
  %v1742 = vpop.f32.mrf.mxu0
  %1743 = vmatprep.mubr.bf16.mxu0 0
  %1744 = vmatmul.mubr.bf16.gmra.mxu0 %v1083
  %v1745 = vpop.f32.mrf.mxu0
  %v1746 = vadd.f32 %v280, %v1745
  %v1747 = vpop.f32.mrf.mxu0
  %v1748 = vpop.f32.mrf.mxu0
  %v1749 = vadd.f32 %v280, %v1748
  %v1750 = vpop.f32.mrf.mxu0
  %1751 = vmatprep.mubr.bf16.mxu0 0
  %1752 = vmatmul.mubr.bf16.gmra.mxu0 %v1086
  %v1753 = vpop.f32.mrf.mxu0
  %v1754 = vadd.f32 %v280, %v1753
  %v1755 = vpop.f32.mrf.mxu0
  %v1756 = vpop.f32.mrf.mxu0
  %v1757 = vadd.f32 %v280, %v1756
  %v1758 = vpop.f32.mrf.mxu0
  %1759 = vmatprep.mubr.bf16.mxu0 0
  %1760 = vmatmul.mubr.bf16.gmra.mxu0 %v1089
  %v1761 = vpop.f32.mrf.mxu0
  %v1762 = vadd.f32 %v280, %v1761
  %v1763 = vpop.f32.mrf.mxu0
  %v1764 = vpop.f32.mrf.mxu0
  %v1765 = vadd.f32 %v280, %v1764
  %v1766 = vpop.f32.mrf.mxu0
  %1767 = vmatprep.mubr.bf16.mxu0 0
  %1768 = vmatmul.mubr.bf16.gmra.mxu0 %v1092
  %v1769 = vpop.f32.mrf.mxu0
  %v1770 = vadd.f32 %v280, %v1769
  %v1771 = vpop.f32.mrf.mxu0
  %v1772 = vpop.f32.mrf.mxu0
  %v1773 = vadd.f32 %v280, %v1772
  %v1774 = vpop.f32.mrf.mxu0
  %1775 = vmatprep.mubr.bf16.mxu0 0
  %1776 = vmatmul.mubr.bf16.gmra.mxu0 %v1095
  %v1777 = vpop.f32.mrf.mxu0
  %v1778 = vadd.f32 %v280, %v1777
  %v1779 = vpop.f32.mrf.mxu0
  %v1780 = vpop.f32.mrf.mxu0
  %v1781 = vadd.f32 %v280, %v1780
  %v1782 = vpop.f32.mrf.mxu0
  %1783 = vmatprep.mubr.bf16.mxu0 0
  %1784 = vmatmul.mubr.bf16.gmra.mxu0 %v1098
  %v1785 = vpop.f32.mrf.mxu0
  %v1786 = vadd.f32 %v280, %v1785
  %v1787 = vpop.f32.mrf.mxu0
  %v1788 = vpop.f32.mrf.mxu0
  %v1789 = vadd.f32 %v280, %v1788
  %v1790 = vpop.f32.mrf.mxu0
  %1791 = vmatprep.mubr.bf16.mxu0 0
  %1792 = vmatmul.mubr.bf16.gmra.mxu0 %v1101
  %v1793 = vpop.f32.mrf.mxu0
  %v1794 = vadd.f32 %v280, %v1793
  %v1795 = vpop.f32.mrf.mxu0
  %v1796 = vpop.f32.mrf.mxu0
  %v1797 = vadd.f32 %v280, %v1796
  %v1798 = vpop.f32.mrf.mxu0
  %1799 = vmatprep.mubr.bf16.mxu0 0
  %1800 = vmatmul.mubr.bf16.gmra.mxu0 %v1104
  %v1801 = vpop.f32.mrf.mxu0
  %v1802 = vadd.f32 %v280, %v1801
  %v1803 = vpop.f32.mrf.mxu0
  %v1804 = vpop.f32.mrf.mxu0
  %v1805 = vadd.f32 %v280, %v1804
  %v1806 = vpop.f32.mrf.mxu0
  %1807 = vmatprep.mubr.bf16.mxu0 0
  %1808 = vmatmul.mubr.bf16.gmra.mxu0 %v1107
  %v1809 = vpop.f32.mrf.mxu0
  %v1810 = vadd.f32 %v280, %v1809
  %v1811 = vpop.f32.mrf.mxu0
  %v1812 = vpop.f32.mrf.mxu0
  %v1813 = vadd.f32 %v280, %v1812
  %v1814 = vpop.f32.mrf.mxu0
  %1815 = vmatprep.mubr.bf16.mxu0 0
  %1816 = vmatmul.mubr.bf16.gmra.mxu0 %v1110
  %v1817 = vpop.f32.mrf.mxu0
  %v1818 = vadd.f32 %v280, %v1817
  %v1819 = vpop.f32.mrf.mxu0
  %v1820 = vpop.f32.mrf.mxu0
  %v1821 = vadd.f32 %v280, %v1820
  %v1822 = vpop.f32.mrf.mxu0
  %1823 = vmatprep.mubr.bf16.mxu0 0
  %1824 = vmatmul.mubr.bf16.gmra.mxu0 %v1113
  %v1825 = vpop.f32.mrf.mxu0
  %v1826 = vadd.f32 %v280, %v1825
  %v1827 = vpop.f32.mrf.mxu0
  %v1828 = vpop.f32.mrf.mxu0
  %v1829 = vadd.f32 %v280, %v1828
  %v1830 = vpop.f32.mrf.mxu0
  %1831 = vmatprep.mubr.bf16.mxu0 0
  %1832 = vmatmul.mubr.bf16.gmra.mxu0 %v1116
  %v1833 = vpop.f32.mrf.mxu0
  %v1834 = vadd.f32 %v280, %v1833
  %v1835 = vpop.f32.mrf.mxu0
  %v1836 = vpop.f32.mrf.mxu0
  %v1837 = vadd.f32 %v280, %v1836
  %v1838 = vpop.f32.mrf.mxu0
  %1839 = vmatprep.mubr.bf16.mxu0 0
  %1840 = vmatmul.mubr.bf16.gmra.mxu0 %v1119
  %v1841 = vpop.f32.mrf.mxu0
  %v1842 = vadd.f32 %v280, %v1841
  %v1843 = vpop.f32.mrf.mxu0
  %v1844 = vpop.f32.mrf.mxu0
  %v1845 = vadd.f32 %v280, %v1844
  %v1846 = vpop.f32.mrf.mxu0
  %1847 = vmatprep.mubr.bf16.mxu0 0
  %1848 = vmatmul.mubr.bf16.gmra.mxu0 %v1122
  %v1849 = vpop.f32.mrf.mxu0
  %v1850 = vadd.f32 %v280, %v1849
  %v1851 = vpop.f32.mrf.mxu0
  %v1852 = vpop.f32.mrf.mxu0
  %v1853 = vadd.f32 %v280, %v1852
  %v1854 = vpop.f32.mrf.mxu0
  %1855 = vmatprep.mubr.bf16.mxu0 0
  %1856 = vmatmul.mubr.bf16.gmra.mxu0 %v1125
  %v1857 = vpop.f32.mrf.mxu0
  %v1858 = vadd.f32 %v280, %v1857
  %v1859 = vpop.f32.mrf.mxu0
  %v1860 = vpop.f32.mrf.mxu0
  %v1861 = vadd.f32 %v280, %v1860
  %v1862 = vpop.f32.mrf.mxu0
  %1863 = vmatprep.mubr.bf16.mxu0 0
  %1864 = vmatmul.mubr.bf16.gmra.mxu0 %v1128
  %v1865 = vpop.f32.mrf.mxu0
  %v1866 = vadd.f32 %v280, %v1865
  %v1867 = vpop.f32.mrf.mxu0
  %v1868 = vpop.f32.mrf.mxu0
  %v1869 = vadd.f32 %v280, %v1868
  %v1870 = vpop.f32.mrf.mxu0
  %1871 = vmatprep.mubr.bf16.mxu0 0
  %1872 = vmatmul.mubr.bf16.gmra.mxu0 %v1131
  %v1873 = vpop.f32.mrf.mxu0
  %v1874 = vadd.f32 %v280, %v1873
  %v1875 = vpop.f32.mrf.mxu0
  %v1876 = vpop.f32.mrf.mxu0
  %v1877 = vadd.f32 %v280, %v1876
  %v1878 = vpop.f32.mrf.mxu0
  %1879 = vmatprep.mubr.bf16.mxu0 0
  %1880 = vmatmul.mubr.bf16.gmra.mxu0 %v1134
  %v1881 = vpop.f32.mrf.mxu0
  %v1882 = vadd.f32 %v280, %v1881
  %v1883 = vpop.f32.mrf.mxu0
  %v1884 = vpop.f32.mrf.mxu0
  %v1885 = vadd.f32 %v280, %v1884
  %v1886 = vpop.f32.mrf.mxu0
  %1887 = vmatprep.mubr.bf16.mxu0 0
  %1888 = vmatmul.mubr.bf16.gmra.mxu0 %v1137
  %v1889 = vpop.f32.mrf.mxu0
  %v1890 = vadd.f32 %v280, %v1889
  %v1891 = vpop.f32.mrf.mxu0
  %v1892 = vpop.f32.mrf.mxu0
  %v1893 = vadd.f32 %v280, %v1892
  %v1894 = vpop.f32.mrf.mxu0
  %1895 = vmatprep.mubr.bf16.mxu0 0
  %1896 = vmatmul.mubr.bf16.gmra.mxu0 %v1140
  %v1897 = vpop.f32.mrf.mxu0
  %v1898 = vadd.f32 %v280, %v1897
  %v1899 = vpop.f32.mrf.mxu0
  %v1900 = vpop.f32.mrf.mxu0
  %v1901 = vadd.f32 %v280, %v1900
  %v1902 = vpop.f32.mrf.mxu0
  %1903 = vmatprep.mubr.bf16.mxu0 0
  %1904 = vmatmul.mubr.bf16.gmra.mxu0 %v1143
  %v1905 = vpop.f32.mrf.mxu0
  %v1906 = vadd.f32 %v280, %v1905
  %v1907 = vpop.f32.mrf.mxu0
  %v1908 = vpop.f32.mrf.mxu0
  %v1909 = vadd.f32 %v280, %v1908
  %v1910 = vpop.f32.mrf.mxu0
  %1911 = vmatprep.mubr.bf16.mxu0 0
  %1912 = vmatmul.mubr.bf16.gmra.mxu0 %v1146
  %v1913 = vpop.f32.mrf.mxu0
  %v1914 = vadd.f32 %v280, %v1913
  %v1915 = vpop.f32.mrf.mxu0
  %v1916 = vpop.f32.mrf.mxu0
  %v1917 = vadd.f32 %v280, %v1916
  %v1918 = vpop.f32.mrf.mxu0
  %1919 = vmatprep.mubr.bf16.mxu0 0
  %1920 = vmatmul.mubr.bf16.gmra.mxu0 %v1149
  %v1921 = vpop.f32.mrf.mxu0
  %v1922 = vadd.f32 %v280, %v1921
  %v1923 = vpop.f32.mrf.mxu0
  %v1924 = vpop.f32.mrf.mxu0
  %v1925 = vadd.f32 %v280, %v1924
  %v1926 = vpop.f32.mrf.mxu0
  %1927 = vmatprep.mubr.bf16.mxu0 0
  %1928 = vmatmul.mubr.bf16.gmra.mxu0 %v1152
  %v1929 = vpop.f32.mrf.mxu0
  %v1930 = vadd.f32 %v280, %v1929
  %v1931 = vpop.f32.mrf.mxu0
  %v1932 = vpop.f32.mrf.mxu0
  %v1933 = vadd.f32 %v280, %v1932
  %v1934 = vpop.f32.mrf.mxu0
  %1935 = vmatprep.mubr.bf16.mxu0 0
  %1936 = vmatmul.mubr.bf16.gmra.mxu0 %v1155
  %v1937 = vpop.f32.mrf.mxu0
  %v1938 = vadd.f32 %v280, %v1937
  %v1939 = vpop.f32.mrf.mxu0
  %v1940 = vpop.f32.mrf.mxu0
  %v1941 = vadd.f32 %v280, %v1940
  %v1942 = vpop.f32.mrf.mxu0
  %1943 = vmatprep.mubr.bf16.mxu0 0
  %1944 = vmatmul.mubr.bf16.gmra.mxu0 %v1158
  %v1945 = vpop.f32.mrf.mxu0
  %v1946 = vadd.f32 %v280, %v1945
  %v1947 = vpop.f32.mrf.mxu0
  %v1948 = vpop.f32.mrf.mxu0
  %v1949 = vadd.f32 %v280, %v1948
  %v1950 = vpop.f32.mrf.mxu0
  %1951 = vmatprep.mubr.bf16.mxu0 0
  %1952 = vmatmul.mubr.bf16.gmra.mxu0 %v1161
  %v1953 = vpop.f32.mrf.mxu0
  %v1954 = vadd.f32 %v280, %v1953
  %v1955 = vpop.f32.mrf.mxu0
  %v1956 = vpop.f32.mrf.mxu0
  %v1957 = vadd.f32 %v280, %v1956
  %v1958 = vpop.f32.mrf.mxu0
  %1959 = vmatprep.mubr.bf16.mxu0 0
  %1960 = vmatmul.mubr.bf16.gmra.mxu0 %v1164
  %v1961 = vpop.f32.mrf.mxu0
  %v1962 = vadd.f32 %v280, %v1961
  %v1963 = vpop.f32.mrf.mxu0
  %v1964 = vpop.f32.mrf.mxu0
  %v1965 = vadd.f32 %v280, %v1964
  %v1966 = vpop.f32.mrf.mxu0
  %1967 = vmatprep.mubr.bf16.mxu0 0
  %1968 = vmatmul.mubr.bf16.gmra.mxu0 %v1167
  %v1969 = vpop.f32.mrf.mxu0
  %v1970 = vadd.f32 %v280, %v1969
  %v1971 = vpop.f32.mrf.mxu0
  %v1972 = vpop.f32.mrf.mxu0
  %v1973 = vadd.f32 %v280, %v1972
  %v1974 = vpop.f32.mrf.mxu0
  %1975 = vmatprep.mubr.bf16.mxu0 0
  %1976 = vmatmul.mubr.bf16.gmra.mxu0 %v1170
  %v1977 = vpop.f32.mrf.mxu0
  %v1978 = vadd.f32 %v280, %v1977
  %v1979 = vpop.f32.mrf.mxu0
  %v1980 = vpop.f32.mrf.mxu0
  %v1981 = vadd.f32 %v280, %v1980
  %v1982 = vpop.f32.mrf.mxu0
  %1983 = vmatprep.mubr.bf16.mxu0 0
  %1984 = vmatmul.mubr.bf16.gmra.mxu0 %v1173
  %v1985 = vpop.f32.mrf.mxu0
  %v1986 = vadd.f32 %v280, %v1985
  %v1987 = vpop.f32.mrf.mxu0
  %v1988 = vpop.f32.mrf.mxu0
  %v1989 = vadd.f32 %v280, %v1988
  %v1990 = vpop.f32.mrf.mxu0
  %1991 = vmatprep.mubr.bf16.mxu0 0
  %1992 = vmatmul.mubr.bf16.gmra.mxu0 %v1176
  %v1993 = vpop.f32.mrf.mxu0
  %v1994 = vadd.f32 %v280, %v1993
  %v1995 = vpop.f32.mrf.mxu0
  %v1996 = vpop.f32.mrf.mxu0
  %v1997 = vadd.f32 %v280, %v1996
  %v1998 = vpop.f32.mrf.mxu0
  %1999 = vmatprep.mubr.bf16.mxu0 0
  %2000 = vmatmul.mubr.bf16.gmra.mxu0 %v1179
  %v2001 = vpop.f32.mrf.mxu0
  %v2002 = vadd.f32 %v280, %v2001
  %v2003 = vpop.f32.mrf.mxu0
  %v2004 = vpop.f32.mrf.mxu0
  %v2005 = vadd.f32 %v280, %v2004
  %v2006 = vpop.f32.mrf.mxu0
  %2007 = vmatprep.mubr.bf16.mxu0 0
  %2008 = vmatmul.mubr.bf16.gmra.mxu0 %v1182
  %v2009 = vpop.f32.mrf.mxu0
  %v2010 = vadd.f32 %v280, %v2009
  %v2011 = vpop.f32.mrf.mxu0
  %v2012 = vpop.f32.mrf.mxu0
  %v2013 = vadd.f32 %v280, %v2012
  %v2014 = vpop.f32.mrf.mxu0
  %2015 = vmatprep.mubr.bf16.mxu0 0
  %2016 = vmatmul.mubr.bf16.gmra.mxu0 %v1185
  %v2017 = vpop.f32.mrf.mxu0
  %v2018 = vadd.f32 %v280, %v2017
  %v2019 = vpop.f32.mrf.mxu0
  %v2020 = vpop.f32.mrf.mxu0
  %v2021 = vadd.f32 %v280, %v2020
  %v2022 = vpop.f32.mrf.mxu0
  %2023 = vmatprep.mubr.bf16.mxu0 0
  %2024 = vmatmul.mubr.bf16.gmra.mxu0 %v1188
  %v2025 = vpop.f32.mrf.mxu0
  %v2026 = vadd.f32 %v280, %v2025
  %v2027 = vpop.f32.mrf.mxu0
  %v2028 = vpop.f32.mrf.mxu0
  %v2029 = vadd.f32 %v280, %v2028
  %v2030 = vpop.f32.mrf.mxu0
  %2031 = vmatprep.mubr.bf16.mxu0 0
  %2032 = vmatmul.mubr.bf16.gmra.mxu0 %v1191
  %v2033 = vpop.f32.mrf.mxu0
  %v2034 = vadd.f32 %v280, %v2033
  %v2035 = vpop.f32.mrf.mxu0
  %v2036 = vpop.f32.mrf.mxu0
  %v2037 = vadd.f32 %v280, %v2036
  %v2038 = vpop.f32.mrf.mxu0
  %2039 = vmatprep.mubr.bf16.mxu0 0
  %2040 = vmatmul.mubr.bf16.gmra.mxu0 %v1194
  %v2041 = vpop.f32.mrf.mxu0
  %v2042 = vadd.f32 %v280, %v2041
  %v2043 = vpop.f32.mrf.mxu0
  %v2044 = vpop.f32.mrf.mxu0
  %v2045 = vadd.f32 %v280, %v2044
  %v2046 = vpop.f32.mrf.mxu0
  %2047 = vmatprep.mubr.bf16.mxu0 0
  %2048 = vmatmul.mubr.bf16.gmra.mxu0 %v1197
  %v2049 = vpop.f32.mrf.mxu0
  %v2050 = vadd.f32 %v280, %v2049
  %v2051 = vpop.f32.mrf.mxu0
  %v2052 = vpop.f32.mrf.mxu0
  %v2053 = vadd.f32 %v280, %v2052
  %v2054 = vpop.f32.mrf.mxu0
  %2055 = vmatprep.mubr.bf16.mxu0 0
  %2056 = vmatmul.mubr.bf16.gmra.mxu0 %v1200
  %v2057 = vpop.f32.mrf.mxu0
  %v2058 = vadd.f32 %v280, %v2057
  %v2059 = vpop.f32.mrf.mxu0
  %v2060 = vpop.f32.mrf.mxu0
  %v2061 = vadd.f32 %v280, %v2060
  %v2062 = vpop.f32.mrf.mxu0
  %2063 = vmatprep.mubr.bf16.mxu0 0
  %2064 = vmatmul.mubr.bf16.gmra.mxu0 %v1203
  %v2065 = vpop.f32.mrf.mxu0
  %v2066 = vadd.f32 %v280, %v2065
  %v2067 = vpop.f32.mrf.mxu0
  %v2068 = vpop.f32.mrf.mxu0
  %v2069 = vadd.f32 %v280, %v2068
  %v2070 = vpop.f32.mrf.mxu0
  %2071 = vmatprep.mubr.bf16.mxu0 0
  %2072 = vmatmul.mubr.bf16.gmra.mxu0 %v1206
  %v2073 = vpop.f32.mrf.mxu0
  %v2074 = vadd.f32 %v280, %v2073
  %v2075 = vpop.f32.mrf.mxu0
  %v2076 = vpop.f32.mrf.mxu0
  %v2077 = vadd.f32 %v280, %v2076
  %v2078 = vpop.f32.mrf.mxu0
  %2079 = vmatprep.mubr.bf16.mxu0 0
  %2080 = vmatmul.mubr.bf16.gmra.mxu0 %v1209
  %v2081 = vpop.f32.mrf.mxu0
  %v2082 = vadd.f32 %v280, %v2081
  %v2083 = vpop.f32.mrf.mxu0
  %v2084 = vpop.f32.mrf.mxu0
  %v2085 = vadd.f32 %v280, %v2084
  %v2086 = vpop.f32.mrf.mxu0
  %2087 = vmatprep.mubr.bf16.mxu0 0
  %2088 = vmatmul.mubr.bf16.gmra.mxu0 %v1212
  %v2089 = vpop.f32.mrf.mxu0
  %v2090 = vadd.f32 %v280, %v2089
  %v2091 = vpop.f32.mrf.mxu0
  %v2092 = vpop.f32.mrf.mxu0
  %v2093 = vadd.f32 %v280, %v2092
  %v2094 = vpop.f32.mrf.mxu0
  %2095 = vmatprep.mubr.bf16.mxu0 0
  %2096 = vmatmul.mubr.bf16.gmra.mxu0 %v1215
  %v2097 = vpop.f32.mrf.mxu0
  %v2098 = vadd.f32 %v280, %v2097
  %v2099 = vpop.f32.mrf.mxu0
  %v2100 = vpop.f32.mrf.mxu0
  %v2101 = vadd.f32 %v280, %v2100
  %v2102 = vpop.f32.mrf.mxu0
  %2103 = vmatprep.mubr.bf16.mxu0 0
  %2104 = vmatmul.mubr.bf16.gmra.mxu0 %v1218
  %v2105 = vpop.f32.mrf.mxu0
  %v2106 = vadd.f32 %v280, %v2105
  %v2107 = vpop.f32.mrf.mxu0
  %v2108 = vpop.f32.mrf.mxu0
  %v2109 = vadd.f32 %v280, %v2108
  %v2110 = vpop.f32.mrf.mxu0
  %2111 = vmatprep.mubr.bf16.mxu0 0
  %2112 = vmatmul.mubr.bf16.gmra.mxu0 %v1221
  %v2113 = vpop.f32.mrf.mxu0
  %v2114 = vadd.f32 %v280, %v2113
  %v2115 = vpop.f32.mrf.mxu0
  %v2116 = vpop.f32.mrf.mxu0
  %v2117 = vadd.f32 %v280, %v2116
  %v2118 = vpop.f32.mrf.mxu0
  %2119 = vmatprep.mubr.bf16.mxu0 0
  %2120 = vmatmul.mubr.bf16.gmra.mxu0 %v1224
  %v2121 = vpop.f32.mrf.mxu0
  %v2122 = vadd.f32 %v280, %v2121
  %v2123 = vpop.f32.mrf.mxu0
  %v2124 = vpop.f32.mrf.mxu0
  %v2125 = vadd.f32 %v280, %v2124
  %v2126 = vpop.f32.mrf.mxu0
  %2127 = vmatprep.mubr.bf16.mxu0 0
  %2128 = vmatmul.mubr.bf16.gmra.mxu0 %v1227
  %v2129 = vpop.f32.mrf.mxu0
  %v2130 = vadd.f32 %v280, %v2129
  %v2131 = vpop.f32.mrf.mxu0
  %v2132 = vpop.f32.mrf.mxu0
  %v2133 = vadd.f32 %v280, %v2132
  %v2134 = vpop.f32.mrf.mxu0
  %2135 = vmatprep.mubr.bf16.mxu0 0
  %2136 = vmatmul.mubr.bf16.gmra.mxu0 %v1230
  %v2137 = vpop.f32.mrf.mxu0
  %v2138 = vadd.f32 %v280, %v2137
  %v2139 = vpop.f32.mrf.mxu0
  %v2140 = vpop.f32.mrf.mxu0
  %v2141 = vadd.f32 %v280, %v2140
  %v2142 = vpop.f32.mrf.mxu0
  %2143 = vmatprep.mubr.bf16.mxu0 0
  %2144 = vmatmul.mubr.bf16.gmra.mxu0 %v1233
  %v2145 = vpop.f32.mrf.mxu0
  %v2146 = vadd.f32 %v280, %v2145
  %v2147 = vpop.f32.mrf.mxu0
  %v2148 = vpop.f32.mrf.mxu0
  %v2149 = vadd.f32 %v280, %v2148
  %v2150 = vpop.f32.mrf.mxu0
  %2151 = vmatprep.mubr.bf16.mxu0 0
  %2152 = vmatmul.mubr.bf16.gmra.mxu0 %v1236
  %v2153 = vpop.f32.mrf.mxu0
  %v2154 = vadd.f32 %v280, %v2153
  %v2155 = vpop.f32.mrf.mxu0
  %v2156 = vpop.f32.mrf.mxu0
  %v2157 = vadd.f32 %v280, %v2156
  %v2158 = vpop.f32.mrf.mxu0
  %2159 = vmatprep.mubr.bf16.mxu0 0
  %2160 = vmatmul.mubr.bf16.gmra.mxu0 %v1239
  %v2161 = vpop.f32.mrf.mxu0
  %v2162 = vadd.f32 %v280, %v2161
  %v2163 = vpop.f32.mrf.mxu0
  %v2164 = vpop.f32.mrf.mxu0
  %v2165 = vadd.f32 %v280, %v2164
  %v2166 = vpop.f32.mrf.mxu0
  %2167 = vmatprep.mubr.bf16.mxu0 0
  %2168 = vmatmul.mubr.bf16.gmra.mxu0 %v1242
  %v2169 = vpop.f32.mrf.mxu0
  %v2170 = vadd.f32 %v280, %v2169
  %v2171 = vpop.f32.mrf.mxu0
  %v2172 = vpop.f32.mrf.mxu0
  %v2173 = vadd.f32 %v280, %v2172
  %v2174 = vpop.f32.mrf.mxu0
  %2175 = vmatprep.mubr.bf16.mxu0 0
  %2176 = vmatmul.mubr.bf16.gmra.mxu0 %v1245
  %v2177 = vpop.f32.mrf.mxu0
  %v2178 = vadd.f32 %v280, %v2177
  %v2179 = vpop.f32.mrf.mxu0
  %v2180 = vpop.f32.mrf.mxu0
  %v2181 = vadd.f32 %v280, %v2180
  %v2182 = vpop.f32.mrf.mxu0
  %2183 = vmatprep.mubr.bf16.mxu0 0
  %2184 = vmatmul.mubr.bf16.gmra.mxu0 %v1248
  %v2185 = vpop.f32.mrf.mxu0
  %v2186 = vadd.f32 %v280, %v2185
  %v2187 = vpop.f32.mrf.mxu0
  %v2188 = vpop.f32.mrf.mxu0
  %v2189 = vadd.f32 %v280, %v2188
  %v2190 = vpop.f32.mrf.mxu0
  %2191 = vmatprep.mubr.bf16.mxu0 0
  %2192 = vmatmul.mubr.bf16.gmra.mxu0 %v1251
  %v2193 = vpop.f32.mrf.mxu0
  %v2194 = vadd.f32 %v280, %v2193
  %v2195 = vpop.f32.mrf.mxu0
  %v2196 = vpop.f32.mrf.mxu0
  %v2197 = vadd.f32 %v280, %v2196
  %v2198 = vpop.f32.mrf.mxu0
  %2199 = vmatprep.mubr.bf16.mxu0 0
  %2200 = vmatmul.mubr.bf16.gmra.mxu0 %v1254
  %v2201 = vpop.f32.mrf.mxu0
  %v2202 = vadd.f32 %v280, %v2201
  %v2203 = vpop.f32.mrf.mxu0
  %v2204 = vpop.f32.mrf.mxu0
  %v2205 = vadd.f32 %v280, %v2204
  %v2206 = vpop.f32.mrf.mxu0
  %2207 = vmatprep.mubr.bf16.mxu0 0
  %2208 = vmatmul.mubr.bf16.gmra.mxu0 %v1257
  %v2209 = vpop.f32.mrf.mxu0
  %v2210 = vadd.f32 %v280, %v2209
  %v2211 = vpop.f32.mrf.mxu0
  %v2212 = vpop.f32.mrf.mxu0
  %v2213 = vadd.f32 %v280, %v2212
  %v2214 = vpop.f32.mrf.mxu0
  %2215 = vmatprep.mubr.bf16.mxu0 0
  %2216 = vmatmul.mubr.bf16.gmra.mxu0 %v1260
  %v2217 = vpop.f32.mrf.mxu0
  %v2218 = vadd.f32 %v280, %v2217
  %v2219 = vpop.f32.mrf.mxu0
  %v2220 = vpop.f32.mrf.mxu0
  %v2221 = vadd.f32 %v280, %v2220
  %v2222 = vpop.f32.mrf.mxu0
  %2223 = vmatprep.mubr.bf16.mxu0 0
  %2224 = vmatmul.mubr.bf16.gmra.mxu0 %v1263
  %v2225 = vpop.f32.mrf.mxu0
  %v2226 = vadd.f32 %v280, %v2225
  %v2227 = vpop.f32.mrf.mxu0
  %v2228 = vpop.f32.mrf.mxu0
  %v2229 = vadd.f32 %v280, %v2228
  %v2230 = vpop.f32.mrf.mxu0
  %2231 = vmatprep.mubr.bf16.mxu0 0
  %2232 = vmatmul.mubr.bf16.gmra.mxu0 %v1266
  %v2233 = vpop.f32.mrf.mxu0
  %v2234 = vadd.f32 %v280, %v2233
  %v2235 = vpop.f32.mrf.mxu0
  %v2236 = vpop.f32.mrf.mxu0
  %v2237 = vadd.f32 %v280, %v2236
  %v2238 = vpop.f32.mrf.mxu0
  %2239 = vmatprep.mubr.bf16.mxu0 0
  %2240 = vmatmul.mubr.bf16.gmra.mxu0 %v1269
  %v2241 = vpop.f32.mrf.mxu0
  %v2242 = vadd.f32 %v280, %v2241
  %v2243 = vpop.f32.mrf.mxu0
  %v2244 = vpop.f32.mrf.mxu0
  %v2245 = vadd.f32 %v280, %v2244
  %v2246 = vpop.f32.mrf.mxu0
  %2247 = vmatprep.mubr.bf16.mxu0 0
  %2248 = vmatmul.mubr.bf16.gmra.mxu0 %v1272
  %v2249 = vpop.f32.mrf.mxu0
  %v2250 = vadd.f32 %v280, %v2249
  %v2251 = vpop.f32.mrf.mxu0
  %v2252 = vpop.f32.mrf.mxu0
  %v2253 = vadd.f32 %v280, %v2252
  %v2254 = vpop.f32.mrf.mxu0
  %2255 = vmatprep.mubr.bf16.mxu0 0
  %2256 = vmatmul.mubr.bf16.gmra.mxu0 %v1275
  %v2257 = vpop.f32.mrf.mxu0
  %v2258 = vadd.f32 %v280, %v2257
  %v2259 = vpop.f32.mrf.mxu0
  %v2260 = vpop.f32.mrf.mxu0
  %v2261 = vadd.f32 %v280, %v2260
  %v2262 = vpop.f32.mrf.mxu0
  %2263 = vmatprep.mubr.bf16.mxu0 0
  %2264 = vmatmul.mubr.bf16.gmra.mxu0 %v1278
  %v2265 = vpop.f32.mrf.mxu0
  %v2266 = vadd.f32 %v280, %v2265
  %v2267 = vpop.f32.mrf.mxu0
  %v2268 = vpop.f32.mrf.mxu0
  %v2269 = vadd.f32 %v280, %v2268
  %v2270 = vpop.f32.mrf.mxu0
  %2271 = vmatprep.mubr.bf16.mxu0 0
  %2272 = vmatmul.mubr.bf16.gmra.mxu0 %v1281
  %v2273 = vpop.f32.mrf.mxu0
  %v2274 = vadd.f32 %v280, %v2273
  %v2275 = vpop.f32.mrf.mxu0
  %v2276 = vpop.f32.mrf.mxu0
  %v2277 = vadd.f32 %v280, %v2276
  %v2278 = vpop.f32.mrf.mxu0
  %2279 = vmatprep.mubr.bf16.mxu0 0
  %2280 = vmatmul.mubr.bf16.gmra.mxu0 %v1284
  %v2281 = vpop.f32.mrf.mxu0
  %v2282 = vadd.f32 %v280, %v2281
  %v2283 = vpop.f32.mrf.mxu0
  %v2284 = vpop.f32.mrf.mxu0
  %v2285 = vadd.f32 %v280, %v2284
  %v2286 = vpop.f32.mrf.mxu0
  %2287 = vmatprep.mubr.bf16.mxu0 0
  %2288 = vmatmul.mubr.bf16.gmra.mxu0 %v1287
  %v2289 = vpop.f32.mrf.mxu0
  %v2290 = vadd.f32 %v280, %v2289
  %v2291 = vpop.f32.mrf.mxu0
  %v2292 = vpop.f32.mrf.mxu0
  %v2293 = vadd.f32 %v280, %v2292
  %v2294 = vpop.f32.mrf.mxu0
  %2295 = vmatprep.mubr.bf16.mxu0 0
  %2296 = vmatmul.mubr.bf16.gmra.mxu0 %v1290
  %v2297 = vpop.f32.mrf.mxu0
  %v2298 = vadd.f32 %v280, %v2297
  %v2299 = vpop.f32.mrf.mxu0
  %v2300 = vpop.f32.mrf.mxu0
  %v2301 = vadd.f32 %v280, %v2300
  %v2302 = vpop.f32.mrf.mxu0
  %2303 = vmatprep.mubr.bf16.mxu0 0
  %2304 = vmatmul.mubr.bf16.gmra.mxu0 %v1293
  %v2305 = vpop.f32.mrf.mxu0
  %v2306 = vadd.f32 %v280, %v2305
  %v2307 = vpop.f32.mrf.mxu0
  %v2308 = vpop.f32.mrf.mxu0
  %v2309 = vadd.f32 %v280, %v2308
  %v2310 = vpop.f32.mrf.mxu0
  %2311 = vmatprep.mubr.bf16.mxu0 0
  %2312 = vmatmul.mubr.bf16.gmra.mxu0 %v1296
  %v2313 = vpop.f32.mrf.mxu0
  %v2314 = vadd.f32 %v280, %v2313
  %v2315 = vpop.f32.mrf.mxu0
  %v2316 = vpop.f32.mrf.mxu0
  %v2317 = vadd.f32 %v280, %v2316
  %v2318 = vpop.f32.mrf.mxu0
  %2319 = vmatprep.mubr.bf16.mxu0 0
  %2320 = vmatmul.mubr.bf16.gmra.mxu0 %v1299
  %v2321 = vpop.f32.mrf.mxu0
  %v2322 = vadd.f32 %v280, %v2321
  %v2323 = vpop.f32.mrf.mxu0
  %v2324 = vpop.f32.mrf.mxu0
  %v2325 = vadd.f32 %v280, %v2324
  %v2326 = vpop.f32.mrf.mxu0
  %2327 = vmatprep.mubr.bf16.mxu0 0
  %2328 = vmatmul.mubr.bf16.gmra.mxu0 %v1302
  %v2329 = vpop.f32.mrf.mxu0
  %v2330 = vadd.f32 %v280, %v2329
  %v2331 = vpop.f32.mrf.mxu0
  %v2332 = vpop.f32.mrf.mxu0
  %v2333 = vadd.f32 %v280, %v2332
  %v2334 = vpop.f32.mrf.mxu0
  %2335 = vmatprep.mubr.bf16.mxu0 0
  %2336 = vmatmul.mubr.bf16.gmra.mxu0 %v1305
  %v2337 = vpop.f32.mrf.mxu0
  %v2338 = vadd.f32 %v280, %v2337
  %v2339 = vpop.f32.mrf.mxu0
  %v2340 = vpop.f32.mrf.mxu0
  %v2341 = vadd.f32 %v280, %v2340
  %v2342 = vpop.f32.mrf.mxu0
  %2343 = vmatprep.mubr.bf16.mxu0 0
  %2344 = vmatmul.mubr.bf16.gmra.mxu0 %v1308
  %v2345 = vpop.f32.mrf.mxu0
  %v2346 = vadd.f32 %v280, %v2345
  %v2347 = vpop.f32.mrf.mxu0
  %v2348 = vpop.f32.mrf.mxu0
  %v2349 = vadd.f32 %v280, %v2348
  %v2350 = vpop.f32.mrf.mxu0
  %2351 = vmatprep.mubr.bf16.mxu0 0
  %2352 = vmatmul.mubr.bf16.gmra.mxu0 %v1311
  %v2353 = vpop.f32.mrf.mxu0
  %v2354 = vadd.f32 %v280, %v2353
  %v2355 = vpop.f32.mrf.mxu0
  %v2356 = vpop.f32.mrf.mxu0
  %v2357 = vadd.f32 %v280, %v2356
  %v2358 = vpop.f32.mrf.mxu0
  %2359 = vmatprep.mubr.bf16.mxu0 0
  %2360 = vmatmul.mubr.bf16.gmra.mxu0 %v1314
  %v2361 = vpop.f32.mrf.mxu0
  %v2362 = vadd.f32 %v280, %v2361
  %v2363 = vpop.f32.mrf.mxu0
  %v2364 = vpop.f32.mrf.mxu0
  %v2365 = vadd.f32 %v280, %v2364
  %v2366 = vpop.f32.mrf.mxu0
  %2367 = vmatprep.mubr.bf16.mxu0 0
  %2368 = vmatmul.mubr.bf16.gmra.mxu0 %v1317
  %v2369 = vpop.f32.mrf.mxu0
  %v2370 = vadd.f32 %v280, %v2369
  %v2371 = vpop.f32.mrf.mxu0
  %v2372 = vpop.f32.mrf.mxu0
  %v2373 = vadd.f32 %v280, %v2372
  %v2374 = vpop.f32.mrf.mxu0
  %2375 = vdwg.mxu0
  %v2376 = vmax.f32 %v1354, 0.0
  %v2377 = vmax.f32 %v1357, 0.0
  %v2378 = vmax.f32 %v1362, 0.0
  %v2379 = vmax.f32 %v1365, 0.0
  %v2380 = vmax.f32 %v1370, 0.0
  %v2381 = vmax.f32 %v1373, 0.0
  %v2382 = vmax.f32 %v1378, 0.0
  %v2383 = vmax.f32 %v1381, 0.0
  %v2384 = vmax.f32 %v1386, 0.0
  %v2385 = vmax.f32 %v1389, 0.0
  %v2386 = vmax.f32 %v1394, 0.0
  %v2387 = vmax.f32 %v1397, 0.0
  %v2388 = vmax.f32 %v1402, 0.0
  %v2389 = vmax.f32 %v1405, 0.0
  %v2390 = vmax.f32 %v1410, 0.0
  %v2391 = vmax.f32 %v1413, 0.0
  %v2392 = vmax.f32 %v1418, 0.0
  %v2393 = vmax.f32 %v1421, 0.0
  %v2394 = vmax.f32 %v1426, 0.0
  %v2395 = vmax.f32 %v1429, 0.0
  %v2396 = vmax.f32 %v1434, 0.0
  %v2397 = vmax.f32 %v1437, 0.0
  %v2398 = vmax.f32 %v1442, 0.0
  %v2399 = vmax.f32 %v1445, 0.0
  %v2400 = vmax.f32 %v1450, 0.0
  %v2401 = vmax.f32 %v1453, 0.0
  %v2402 = vmax.f32 %v1458, 0.0
  %v2403 = vmax.f32 %v1461, 0.0
  %v2404 = vmax.f32 %v1466, 0.0
  %v2405 = vmax.f32 %v1469, 0.0
  %v2406 = vmax.f32 %v1474, 0.0
  %v2407 = vmax.f32 %v1477, 0.0
  %v2408 = vmax.f32 %v1482, 0.0
  %v2409 = vmax.f32 %v1485, 0.0
  %v2410 = vmax.f32 %v1490, 0.0
  %v2411 = vmax.f32 %v1493, 0.0
  %v2412 = vmax.f32 %v1498, 0.0
  %v2413 = vmax.f32 %v1501, 0.0
  %v2414 = vmax.f32 %v1506, 0.0
  %v2415 = vmax.f32 %v1509, 0.0
  %v2416 = vmax.f32 %v1514, 0.0
  %v2417 = vmax.f32 %v1517, 0.0
  %v2418 = vmax.f32 %v1522, 0.0
  %v2419 = vmax.f32 %v1525, 0.0
  %v2420 = vmax.f32 %v1530, 0.0
  %v2421 = vmax.f32 %v1533, 0.0
  %v2422 = vmax.f32 %v1538, 0.0
  %v2423 = vmax.f32 %v1541, 0.0
  %v2424 = vmax.f32 %v1546, 0.0
  %v2425 = vmax.f32 %v1549, 0.0
  %v2426 = vmax.f32 %v1554, 0.0
  %v2427 = vmax.f32 %v1557, 0.0
  %v2428 = vmax.f32 %v1562, 0.0
  %v2429 = vmax.f32 %v1565, 0.0
  %v2430 = vmax.f32 %v1570, 0.0
  %v2431 = vmax.f32 %v1573, 0.0
  %v2432 = vmax.f32 %v1578, 0.0
  %v2433 = vmax.f32 %v1581, 0.0
  %v2434 = vmax.f32 %v1586, 0.0
  %v2435 = vmax.f32 %v1589, 0.0
  %v2436 = vmax.f32 %v1594, 0.0
  %v2437 = vmax.f32 %v1597, 0.0
  %v2438 = vmax.f32 %v1602, 0.0
  %v2439 = vmax.f32 %v1605, 0.0
  %v2440 = vmax.f32 %v1610, 0.0
  %v2441 = vmax.f32 %v1613, 0.0
  %v2442 = vmax.f32 %v1618, 0.0
  %v2443 = vmax.f32 %v1621, 0.0
  %v2444 = vmax.f32 %v1626, 0.0
  %v2445 = vmax.f32 %v1629, 0.0
  %v2446 = vmax.f32 %v1634, 0.0
  %v2447 = vmax.f32 %v1637, 0.0
  %v2448 = vmax.f32 %v1642, 0.0
  %v2449 = vmax.f32 %v1645, 0.0
  %v2450 = vmax.f32 %v1650, 0.0
  %v2451 = vmax.f32 %v1653, 0.0
  %v2452 = vmax.f32 %v1658, 0.0
  %v2453 = vmax.f32 %v1661, 0.0
  %v2454 = vmax.f32 %v1666, 0.0
  %v2455 = vmax.f32 %v1669, 0.0
  %v2456 = vmax.f32 %v1674, 0.0
  %v2457 = vmax.f32 %v1677, 0.0
  %v2458 = vmax.f32 %v1682, 0.0
  %v2459 = vmax.f32 %v1685, 0.0
  %v2460 = vmax.f32 %v1690, 0.0
  %v2461 = vmax.f32 %v1693, 0.0
  %v2462 = vmax.f32 %v1698, 0.0
  %v2463 = vmax.f32 %v1701, 0.0
  %v2464 = vmax.f32 %v1706, 0.0
  %v2465 = vmax.f32 %v1709, 0.0
  %v2466 = vmax.f32 %v1714, 0.0
  %v2467 = vmax.f32 %v1717, 0.0
  %v2468 = vmax.f32 %v1722, 0.0
  %v2469 = vmax.f32 %v1725, 0.0
  %v2470 = vmax.f32 %v1730, 0.0
  %v2471 = vmax.f32 %v1733, 0.0
  %v2472 = vmax.f32 %v1738, 0.0
  %v2473 = vmax.f32 %v1741, 0.0
  %v2474 = vmax.f32 %v1746, 0.0
  %v2475 = vmax.f32 %v1749, 0.0
  %v2476 = vmax.f32 %v1754, 0.0
  %v2477 = vmax.f32 %v1757, 0.0
  %v2478 = vmax.f32 %v1762, 0.0
  %v2479 = vmax.f32 %v1765, 0.0
  %v2480 = vmax.f32 %v1770, 0.0
  %v2481 = vmax.f32 %v1773, 0.0
  %v2482 = vmax.f32 %v1778, 0.0
  %v2483 = vmax.f32 %v1781, 0.0
  %v2484 = vmax.f32 %v1786, 0.0
  %v2485 = vmax.f32 %v1789, 0.0
  %v2486 = vmax.f32 %v1794, 0.0
  %v2487 = vmax.f32 %v1797, 0.0
  %v2488 = vmax.f32 %v1802, 0.0
  %v2489 = vmax.f32 %v1805, 0.0
  %v2490 = vmax.f32 %v1810, 0.0
  %v2491 = vmax.f32 %v1813, 0.0
  %v2492 = vmax.f32 %v1818, 0.0
  %v2493 = vmax.f32 %v1821, 0.0
  %v2494 = vmax.f32 %v1826, 0.0
  %v2495 = vmax.f32 %v1829, 0.0
  %v2496 = vmax.f32 %v1834, 0.0
  %v2497 = vmax.f32 %v1837, 0.0
  %v2498 = vmax.f32 %v1842, 0.0
  %v2499 = vmax.f32 %v1845, 0.0
  %v2500 = vmax.f32 %v1850, 0.0
  %v2501 = vmax.f32 %v1853, 0.0
  %v2502 = vmax.f32 %v1858, 0.0
  %v2503 = vmax.f32 %v1861, 0.0
  %v2504 = vmax.f32 %v1866, 0.0
  %v2505 = vmax.f32 %v1869, 0.0
  %v2506 = vmax.f32 %v1874, 0.0
  %v2507 = vmax.f32 %v1877, 0.0
  %v2508 = vmax.f32 %v1882, 0.0
  %v2509 = vmax.f32 %v1885, 0.0
  %v2510 = vmax.f32 %v1890, 0.0
  %v2511 = vmax.f32 %v1893, 0.0
  %v2512 = vmax.f32 %v1898, 0.0
  %v2513 = vmax.f32 %v1901, 0.0
  %v2514 = vmax.f32 %v1906, 0.0
  %v2515 = vmax.f32 %v1909, 0.0
  %v2516 = vmax.f32 %v1914, 0.0
  %v2517 = vmax.f32 %v1917, 0.0
  %v2518 = vmax.f32 %v1922, 0.0
  %v2519 = vmax.f32 %v1925, 0.0
  %v2520 = vmax.f32 %v1930, 0.0
  %v2521 = vmax.f32 %v1933, 0.0
  %v2522 = vmax.f32 %v1938, 0.0
  %v2523 = vmax.f32 %v1941, 0.0
  %v2524 = vmax.f32 %v1946, 0.0
  %v2525 = vmax.f32 %v1949, 0.0
  %v2526 = vmax.f32 %v1954, 0.0
  %v2527 = vmax.f32 %v1957, 0.0
  %v2528 = vmax.f32 %v1962, 0.0
  %v2529 = vmax.f32 %v1965, 0.0
  %v2530 = vmax.f32 %v1970, 0.0
  %v2531 = vmax.f32 %v1973, 0.0
  %v2532 = vmax.f32 %v1978, 0.0
  %v2533 = vmax.f32 %v1981, 0.0
  %v2534 = vmax.f32 %v1986, 0.0
  %v2535 = vmax.f32 %v1989, 0.0
  %v2536 = vmax.f32 %v1994, 0.0
  %v2537 = vmax.f32 %v1997, 0.0
  %v2538 = vmax.f32 %v2002, 0.0
  %v2539 = vmax.f32 %v2005, 0.0
  %v2540 = vmax.f32 %v2010, 0.0
  %v2541 = vmax.f32 %v2013, 0.0
  %v2542 = vmax.f32 %v2018, 0.0
  %v2543 = vmax.f32 %v2021, 0.0
  %v2544 = vmax.f32 %v2026, 0.0
  %v2545 = vmax.f32 %v2029, 0.0
  %v2546 = vmax.f32 %v2034, 0.0
  %v2547 = vmax.f32 %v2037, 0.0
  %v2548 = vmax.f32 %v2042, 0.0
  %v2549 = vmax.f32 %v2045, 0.0
  %v2550 = vmax.f32 %v2050, 0.0
  %v2551 = vmax.f32 %v2053, 0.0
  %v2552 = vmax.f32 %v2058, 0.0
  %v2553 = vmax.f32 %v2061, 0.0
  %v2554 = vmax.f32 %v2066, 0.0
  %v2555 = vmax.f32 %v2069, 0.0
  %v2556 = vmax.f32 %v2074, 0.0
  %v2557 = vmax.f32 %v2077, 0.0
  %v2558 = vmax.f32 %v2082, 0.0
  %v2559 = vmax.f32 %v2085, 0.0
  %v2560 = vmax.f32 %v2090, 0.0
  %v2561 = vmax.f32 %v2093, 0.0
  %v2562 = vmax.f32 %v2098, 0.0
  %v2563 = vmax.f32 %v2101, 0.0
  %v2564 = vmax.f32 %v2106, 0.0
  %v2565 = vmax.f32 %v2109, 0.0
  %v2566 = vmax.f32 %v2114, 0.0
  %v2567 = vmax.f32 %v2117, 0.0
  %v2568 = vmax.f32 %v2122, 0.0
  %v2569 = vmax.f32 %v2125, 0.0
  %v2570 = vmax.f32 %v2130, 0.0
  %v2571 = vmax.f32 %v2133, 0.0
  %v2572 = vmax.f32 %v2138, 0.0
  %v2573 = vmax.f32 %v2141, 0.0
  %v2574 = vmax.f32 %v2146, 0.0
  %v2575 = vmax.f32 %v2149, 0.0
  %v2576 = vmax.f32 %v2154, 0.0
  %v2577 = vmax.f32 %v2157, 0.0
  %v2578 = vmax.f32 %v2162, 0.0
  %v2579 = vmax.f32 %v2165, 0.0
  %v2580 = vmax.f32 %v2170, 0.0
  %v2581 = vmax.f32 %v2173, 0.0
  %v2582 = vmax.f32 %v2178, 0.0
  %v2583 = vmax.f32 %v2181, 0.0
  %v2584 = vmax.f32 %v2186, 0.0
  %v2585 = vmax.f32 %v2189, 0.0
  %v2586 = vmax.f32 %v2194, 0.0
  %v2587 = vmax.f32 %v2197, 0.0
  %v2588 = vmax.f32 %v2202, 0.0
  %v2589 = vmax.f32 %v2205, 0.0
  %v2590 = vmax.f32 %v2210, 0.0
  %v2591 = vmax.f32 %v2213, 0.0
  %v2592 = vmax.f32 %v2218, 0.0
  %v2593 = vmax.f32 %v2221, 0.0
  %v2594 = vmax.f32 %v2226, 0.0
  %v2595 = vmax.f32 %v2229, 0.0
  %v2596 = vmax.f32 %v2234, 0.0
  %v2597 = vmax.f32 %v2237, 0.0
  %v2598 = vmax.f32 %v2242, 0.0
  %v2599 = vmax.f32 %v2245, 0.0
  %v2600 = vmax.f32 %v2250, 0.0
  %v2601 = vmax.f32 %v2253, 0.0
  %v2602 = vmax.f32 %v2258, 0.0
  %v2603 = vmax.f32 %v2261, 0.0
  %v2604 = vmax.f32 %v2266, 0.0
  %v2605 = vmax.f32 %v2269, 0.0
  %v2606 = vmax.f32 %v2274, 0.0
  %v2607 = vmax.f32 %v2277, 0.0
  %v2608 = vmax.f32 %v2282, 0.0
  %v2609 = vmax.f32 %v2285, 0.0
  %v2610 = vmax.f32 %v2290, 0.0
  %v2611 = vmax.f32 %v2293, 0.0
  %v2612 = vmax.f32 %v2298, 0.0
  %v2613 = vmax.f32 %v2301, 0.0
  %v2614 = vmax.f32 %v2306, 0.0
  %v2615 = vmax.f32 %v2309, 0.0
  %v2616 = vmax.f32 %v2314, 0.0
  %v2617 = vmax.f32 %v2317, 0.0
  %v2618 = vmax.f32 %v2322, 0.0
  %v2619 = vmax.f32 %v2325, 0.0
  %v2620 = vmax.f32 %v2330, 0.0
  %v2621 = vmax.f32 %v2333, 0.0
  %v2622 = vmax.f32 %v2338, 0.0
  %v2623 = vmax.f32 %v2341, 0.0
  %v2624 = vmax.f32 %v2346, 0.0
  %v2625 = vmax.f32 %v2349, 0.0
  %v2626 = vmax.f32 %v2354, 0.0
  %v2627 = vmax.f32 %v2357, 0.0
  %v2628 = vmax.f32 %v2362, 0.0
  %v2629 = vmax.f32 %v2365, 0.0
  %v2630 = vmax.f32 %v2370, 0.0
  %v2631 = vmax.f32 %v2373, 0.0
  %v2632 = vpack.c.bf16 %v2377, %v2376
  %v2633 = vpack.c.bf16 %v2379, %v2378
  %v2634 = vpack.c.bf16 %v2381, %v2380
  %v2635 = vpack.c.bf16 %v2383, %v2382
  %v2636 = vpack.c.bf16 %v2385, %v2384
  %v2637 = vpack.c.bf16 %v2387, %v2386
  %v2638 = vpack.c.bf16 %v2389, %v2388
  %v2639 = vpack.c.bf16 %v2391, %v2390
  %v2640 = vpack.c.bf16 %v2393, %v2392
  %v2641 = vpack.c.bf16 %v2395, %v2394
  %v2642 = vpack.c.bf16 %v2397, %v2396
  %v2643 = vpack.c.bf16 %v2399, %v2398
  %v2644 = vpack.c.bf16 %v2401, %v2400
  %v2645 = vpack.c.bf16 %v2403, %v2402
  %v2646 = vpack.c.bf16 %v2405, %v2404
  %v2647 = vpack.c.bf16 %v2407, %v2406
  %v2648 = vpack.c.bf16 %v2409, %v2408
  %v2649 = vpack.c.bf16 %v2411, %v2410
  %v2650 = vpack.c.bf16 %v2413, %v2412
  %v2651 = vpack.c.bf16 %v2415, %v2414
  %v2652 = vpack.c.bf16 %v2417, %v2416
  %v2653 = vpack.c.bf16 %v2419, %v2418
  %v2654 = vpack.c.bf16 %v2421, %v2420
  %v2655 = vpack.c.bf16 %v2423, %v2422
  %v2656 = vpack.c.bf16 %v2425, %v2424
  %v2657 = vpack.c.bf16 %v2427, %v2426
  %v2658 = vpack.c.bf16 %v2429, %v2428
  %v2659 = vpack.c.bf16 %v2431, %v2430
  %v2660 = vpack.c.bf16 %v2433, %v2432
  %v2661 = vpack.c.bf16 %v2435, %v2434
  %v2662 = vpack.c.bf16 %v2437, %v2436
  %v2663 = vpack.c.bf16 %v2439, %v2438
  %v2664 = vpack.c.bf16 %v2441, %v2440
  %v2665 = vpack.c.bf16 %v2443, %v2442
  %v2666 = vpack.c.bf16 %v2445, %v2444
  %v2667 = vpack.c.bf16 %v2447, %v2446
  %v2668 = vpack.c.bf16 %v2449, %v2448
  %v2669 = vpack.c.bf16 %v2451, %v2450
  %v2670 = vpack.c.bf16 %v2453, %v2452
  %v2671 = vpack.c.bf16 %v2455, %v2454
  %v2672 = vpack.c.bf16 %v2457, %v2456
  %v2673 = vpack.c.bf16 %v2459, %v2458
  %v2674 = vpack.c.bf16 %v2461, %v2460
  %v2675 = vpack.c.bf16 %v2463, %v2462
  %v2676 = vpack.c.bf16 %v2465, %v2464
  %v2677 = vpack.c.bf16 %v2467, %v2466
  %v2678 = vpack.c.bf16 %v2469, %v2468
  %v2679 = vpack.c.bf16 %v2471, %v2470
  %v2680 = vpack.c.bf16 %v2473, %v2472
  %v2681 = vpack.c.bf16 %v2475, %v2474
  %v2682 = vpack.c.bf16 %v2477, %v2476
  %v2683 = vpack.c.bf16 %v2479, %v2478
  %v2684 = vpack.c.bf16 %v2481, %v2480
  %v2685 = vpack.c.bf16 %v2483, %v2482
  %v2686 = vpack.c.bf16 %v2485, %v2484
  %v2687 = vpack.c.bf16 %v2487, %v2486
  %v2688 = vpack.c.bf16 %v2489, %v2488
  %v2689 = vpack.c.bf16 %v2491, %v2490
  %v2690 = vpack.c.bf16 %v2493, %v2492
  %v2691 = vpack.c.bf16 %v2495, %v2494
  %v2692 = vpack.c.bf16 %v2497, %v2496
  %v2693 = vpack.c.bf16 %v2499, %v2498
  %v2694 = vpack.c.bf16 %v2501, %v2500
  %v2695 = vpack.c.bf16 %v2503, %v2502
  %v2696 = vpack.c.bf16 %v2505, %v2504
  %v2697 = vpack.c.bf16 %v2507, %v2506
  %v2698 = vpack.c.bf16 %v2509, %v2508
  %v2699 = vpack.c.bf16 %v2511, %v2510
  %v2700 = vpack.c.bf16 %v2513, %v2512
  %v2701 = vpack.c.bf16 %v2515, %v2514
  %v2702 = vpack.c.bf16 %v2517, %v2516
  %v2703 = vpack.c.bf16 %v2519, %v2518
  %v2704 = vpack.c.bf16 %v2521, %v2520
  %v2705 = vpack.c.bf16 %v2523, %v2522
  %v2706 = vpack.c.bf16 %v2525, %v2524
  %v2707 = vpack.c.bf16 %v2527, %v2526
  %v2708 = vpack.c.bf16 %v2529, %v2528
  %v2709 = vpack.c.bf16 %v2531, %v2530
  %v2710 = vpack.c.bf16 %v2533, %v2532
  %v2711 = vpack.c.bf16 %v2535, %v2534
  %v2712 = vpack.c.bf16 %v2537, %v2536
  %v2713 = vpack.c.bf16 %v2539, %v2538
  %v2714 = vpack.c.bf16 %v2541, %v2540
  %v2715 = vpack.c.bf16 %v2543, %v2542
  %v2716 = vpack.c.bf16 %v2545, %v2544
  %v2717 = vpack.c.bf16 %v2547, %v2546
  %v2718 = vpack.c.bf16 %v2549, %v2548
  %v2719 = vpack.c.bf16 %v2551, %v2550
  %v2720 = vpack.c.bf16 %v2553, %v2552
  %v2721 = vpack.c.bf16 %v2555, %v2554
  %v2722 = vpack.c.bf16 %v2557, %v2556
  %v2723 = vpack.c.bf16 %v2559, %v2558
  %v2724 = vpack.c.bf16 %v2561, %v2560
  %v2725 = vpack.c.bf16 %v2563, %v2562
  %v2726 = vpack.c.bf16 %v2565, %v2564
  %v2727 = vpack.c.bf16 %v2567, %v2566
  %v2728 = vpack.c.bf16 %v2569, %v2568
  %v2729 = vpack.c.bf16 %v2571, %v2570
  %v2730 = vpack.c.bf16 %v2573, %v2572
  %v2731 = vpack.c.bf16 %v2575, %v2574
  %v2732 = vpack.c.bf16 %v2577, %v2576
  %v2733 = vpack.c.bf16 %v2579, %v2578
  %v2734 = vpack.c.bf16 %v2581, %v2580
  %v2735 = vpack.c.bf16 %v2583, %v2582
  %v2736 = vpack.c.bf16 %v2585, %v2584
  %v2737 = vpack.c.bf16 %v2587, %v2586
  %v2738 = vpack.c.bf16 %v2589, %v2588
  %v2739 = vpack.c.bf16 %v2591, %v2590
  %v2740 = vpack.c.bf16 %v2593, %v2592
  %v2741 = vpack.c.bf16 %v2595, %v2594
  %v2742 = vpack.c.bf16 %v2597, %v2596
  %v2743 = vpack.c.bf16 %v2599, %v2598
  %v2744 = vpack.c.bf16 %v2601, %v2600
  %v2745 = vpack.c.bf16 %v2603, %v2602
  %v2746 = vpack.c.bf16 %v2605, %v2604
  %v2747 = vpack.c.bf16 %v2607, %v2606
  %v2748 = vpack.c.bf16 %v2609, %v2608
  %v2749 = vpack.c.bf16 %v2611, %v2610
  %v2750 = vpack.c.bf16 %v2613, %v2612
  %v2751 = vpack.c.bf16 %v2615, %v2614
  %v2752 = vpack.c.bf16 %v2617, %v2616
  %v2753 = vpack.c.bf16 %v2619, %v2618
  %v2754 = vpack.c.bf16 %v2621, %v2620
  %v2755 = vpack.c.bf16 %v2623, %v2622
  %v2756 = vpack.c.bf16 %v2625, %v2624
  %v2757 = vpack.c.bf16 %v2627, %v2626
  %v2758 = vpack.c.bf16 %v2629, %v2628
  %v2759 = vpack.c.bf16 %v2631, %v2630
  %v2888 = vunpack.c.l.b16 %v2632
  %v2889 = vunpack.c.h.b16 %v2632
  %v2890 = vunpack.c.l.b16 %v2633
  %v2891 = vunpack.c.h.b16 %v2633
  %v2892 = vunpack.c.l.b16 %v2634
  %v2893 = vunpack.c.h.b16 %v2634
  %v2894 = vunpack.c.l.b16 %v2635
  %v2895 = vunpack.c.h.b16 %v2635
  %v2896 = vunpack.c.l.b16 %v2636
  %v2897 = vunpack.c.h.b16 %v2636
  %v2898 = vunpack.c.l.b16 %v2637
  %v2899 = vunpack.c.h.b16 %v2637
  %v2900 = vunpack.c.l.b16 %v2638
  %v2901 = vunpack.c.h.b16 %v2638
  %v2902 = vunpack.c.l.b16 %v2639
  %v2903 = vunpack.c.h.b16 %v2639
  %v2904 = vunpack.c.l.b16 %v2640
  %v2905 = vunpack.c.h.b16 %v2640
  %v2906 = vunpack.c.l.b16 %v2641
  %v2907 = vunpack.c.h.b16 %v2641
  %v2908 = vunpack.c.l.b16 %v2642
  %v2909 = vunpack.c.h.b16 %v2642
  %v2910 = vunpack.c.l.b16 %v2643
  %v2911 = vunpack.c.h.b16 %v2643
  %v2912 = vunpack.c.l.b16 %v2644
  %v2913 = vunpack.c.h.b16 %v2644
  %v2914 = vunpack.c.l.b16 %v2645
  %v2915 = vunpack.c.h.b16 %v2645
  %v2916 = vunpack.c.l.b16 %v2646
  %v2917 = vunpack.c.h.b16 %v2646
  %v2918 = vunpack.c.l.b16 %v2647
  %v2919 = vunpack.c.h.b16 %v2647
  %v2920 = vunpack.c.l.b16 %v2648
  %v2921 = vunpack.c.h.b16 %v2648
  %v2922 = vunpack.c.l.b16 %v2649
  %v2923 = vunpack.c.h.b16 %v2649
  %v2924 = vunpack.c.l.b16 %v2650
  %v2925 = vunpack.c.h.b16 %v2650
  %v2926 = vunpack.c.l.b16 %v2651
  %v2927 = vunpack.c.h.b16 %v2651
  %v2928 = vunpack.c.l.b16 %v2652
  %v2929 = vunpack.c.h.b16 %v2652
  %v2930 = vunpack.c.l.b16 %v2653
  %v2931 = vunpack.c.h.b16 %v2653
  %v2932 = vunpack.c.l.b16 %v2654
  %v2933 = vunpack.c.h.b16 %v2654
  %v2934 = vunpack.c.l.b16 %v2655
  %v2935 = vunpack.c.h.b16 %v2655
  %v2936 = vunpack.c.l.b16 %v2656
  %v2937 = vunpack.c.h.b16 %v2656
  %v2938 = vunpack.c.l.b16 %v2657
  %v2939 = vunpack.c.h.b16 %v2657
  %v2940 = vunpack.c.l.b16 %v2658
  %v2941 = vunpack.c.h.b16 %v2658
  %v2942 = vunpack.c.l.b16 %v2659
  %v2943 = vunpack.c.h.b16 %v2659
  %v2944 = vunpack.c.l.b16 %v2660
  %v2945 = vunpack.c.h.b16 %v2660
  %v2946 = vunpack.c.l.b16 %v2661
  %v2947 = vunpack.c.h.b16 %v2661
  %v2948 = vunpack.c.l.b16 %v2662
  %v2949 = vunpack.c.h.b16 %v2662
  %v2950 = vunpack.c.l.b16 %v2663
  %v2951 = vunpack.c.h.b16 %v2663
  %v2952 = vunpack.c.l.b16 %v2664
  %v2953 = vunpack.c.h.b16 %v2664
  %v2954 = vunpack.c.l.b16 %v2665
  %v2955 = vunpack.c.h.b16 %v2665
  %v2956 = vunpack.c.l.b16 %v2666
  %v2957 = vunpack.c.h.b16 %v2666
  %v2958 = vunpack.c.l.b16 %v2667
  %v2959 = vunpack.c.h.b16 %v2667
  %v2960 = vunpack.c.l.b16 %v2668
  %v2961 = vunpack.c.h.b16 %v2668
  %v2962 = vunpack.c.l.b16 %v2669
  %v2963 = vunpack.c.h.b16 %v2669
  %v2964 = vunpack.c.l.b16 %v2670
  %v2965 = vunpack.c.h.b16 %v2670
  %v2966 = vunpack.c.l.b16 %v2671
  %v2967 = vunpack.c.h.b16 %v2671
  %v2968 = vunpack.c.l.b16 %v2672
  %v2969 = vunpack.c.h.b16 %v2672
  %v2970 = vunpack.c.l.b16 %v2673
  %v2971 = vunpack.c.h.b16 %v2673
  %v2972 = vunpack.c.l.b16 %v2674
  %v2973 = vunpack.c.h.b16 %v2674
  %v2974 = vunpack.c.l.b16 %v2675
  %v2975 = vunpack.c.h.b16 %v2675
  %v2976 = vunpack.c.l.b16 %v2676
  %v2977 = vunpack.c.h.b16 %v2676
  %v2978 = vunpack.c.l.b16 %v2677
  %v2979 = vunpack.c.h.b16 %v2677
  %v2980 = vunpack.c.l.b16 %v2678
  %v2981 = vunpack.c.h.b16 %v2678
  %v2982 = vunpack.c.l.b16 %v2679
  %v2983 = vunpack.c.h.b16 %v2679
  %v2984 = vunpack.c.l.b16 %v2680
  %v2985 = vunpack.c.h.b16 %v2680
  %v2986 = vunpack.c.l.b16 %v2681
  %v2987 = vunpack.c.h.b16 %v2681
  %v2988 = vunpack.c.l.b16 %v2682
  %v2989 = vunpack.c.h.b16 %v2682
  %v2990 = vunpack.c.l.b16 %v2683
  %v2991 = vunpack.c.h.b16 %v2683
  %v2992 = vunpack.c.l.b16 %v2684
  %v2993 = vunpack.c.h.b16 %v2684
  %v2994 = vunpack.c.l.b16 %v2685
  %v2995 = vunpack.c.h.b16 %v2685
  %v2996 = vunpack.c.l.b16 %v2686
  %v2997 = vunpack.c.h.b16 %v2686
  %v2998 = vunpack.c.l.b16 %v2687
  %v2999 = vunpack.c.h.b16 %v2687
  %v3000 = vunpack.c.l.b16 %v2688
  %v3001 = vunpack.c.h.b16 %v2688
  %v3002 = vunpack.c.l.b16 %v2689
  %v3003 = vunpack.c.h.b16 %v2689
  %v3004 = vunpack.c.l.b16 %v2690
  %v3005 = vunpack.c.h.b16 %v2690
  %v3006 = vunpack.c.l.b16 %v2691
  %v3007 = vunpack.c.h.b16 %v2691
  %v3008 = vunpack.c.l.b16 %v2692
  %v3009 = vunpack.c.h.b16 %v2692
  %v3010 = vunpack.c.l.b16 %v2693
  %v3011 = vunpack.c.h.b16 %v2693
  %v3012 = vunpack.c.l.b16 %v2694
  %v3013 = vunpack.c.h.b16 %v2694
  %v3014 = vunpack.c.l.b16 %v2695
  %v3015 = vunpack.c.h.b16 %v2695
  %v3016 = vunpack.c.l.b16 %v2696
  %v3017 = vunpack.c.h.b16 %v2696
  %v3018 = vunpack.c.l.b16 %v2697
  %v3019 = vunpack.c.h.b16 %v2697
  %v3020 = vunpack.c.l.b16 %v2698
  %v3021 = vunpack.c.h.b16 %v2698
  %v3022 = vunpack.c.l.b16 %v2699
  %v3023 = vunpack.c.h.b16 %v2699
  %v3024 = vunpack.c.l.b16 %v2700
  %v3025 = vunpack.c.h.b16 %v2700
  %v3026 = vunpack.c.l.b16 %v2701
  %v3027 = vunpack.c.h.b16 %v2701
  %v3028 = vunpack.c.l.b16 %v2702
  %v3029 = vunpack.c.h.b16 %v2702
  %v3030 = vunpack.c.l.b16 %v2703
  %v3031 = vunpack.c.h.b16 %v2703
  %v3032 = vunpack.c.l.b16 %v2704
  %v3033 = vunpack.c.h.b16 %v2704
  %v3034 = vunpack.c.l.b16 %v2705
  %v3035 = vunpack.c.h.b16 %v2705
  %v3036 = vunpack.c.l.b16 %v2706
  %v3037 = vunpack.c.h.b16 %v2706
  %v3038 = vunpack.c.l.b16 %v2707
  %v3039 = vunpack.c.h.b16 %v2707
  %v3040 = vunpack.c.l.b16 %v2708
  %v3041 = vunpack.c.h.b16 %v2708
  %v3042 = vunpack.c.l.b16 %v2709
  %v3043 = vunpack.c.h.b16 %v2709
  %v3044 = vunpack.c.l.b16 %v2710
  %v3045 = vunpack.c.h.b16 %v2710
  %v3046 = vunpack.c.l.b16 %v2711
  %v3047 = vunpack.c.h.b16 %v2711
  %v3048 = vunpack.c.l.b16 %v2712
  %v3049 = vunpack.c.h.b16 %v2712
  %v3050 = vunpack.c.l.b16 %v2713
  %v3051 = vunpack.c.h.b16 %v2713
  %v3052 = vunpack.c.l.b16 %v2714
  %v3053 = vunpack.c.h.b16 %v2714
  %v3054 = vunpack.c.l.b16 %v2715
  %v3055 = vunpack.c.h.b16 %v2715
  %v3056 = vunpack.c.l.b16 %v2716
  %v3057 = vunpack.c.h.b16 %v2716
  %v3058 = vunpack.c.l.b16 %v2717
  %v3059 = vunpack.c.h.b16 %v2717
  %v3060 = vunpack.c.l.b16 %v2718
  %v3061 = vunpack.c.h.b16 %v2718
  %v3062 = vunpack.c.l.b16 %v2719
  %v3063 = vunpack.c.h.b16 %v2719
  %v3064 = vunpack.c.l.b16 %v2720
  %v3065 = vunpack.c.h.b16 %v2720
  %v3066 = vunpack.c.l.b16 %v2721
  %v3067 = vunpack.c.h.b16 %v2721
  %v3068 = vunpack.c.l.b16 %v2722
  %v3069 = vunpack.c.h.b16 %v2722
  %v3070 = vunpack.c.l.b16 %v2723
  %v3071 = vunpack.c.h.b16 %v2723
  %v3072 = vunpack.c.l.b16 %v2724
  %v3073 = vunpack.c.h.b16 %v2724
  %v3074 = vunpack.c.l.b16 %v2725
  %v3075 = vunpack.c.h.b16 %v2725
  %v3076 = vunpack.c.l.b16 %v2726
  %v3077 = vunpack.c.h.b16 %v2726
  %v3078 = vunpack.c.l.b16 %v2727
  %v3079 = vunpack.c.h.b16 %v2727
  %v3080 = vunpack.c.l.b16 %v2728
  %v3081 = vunpack.c.h.b16 %v2728
  %v3082 = vunpack.c.l.b16 %v2729
  %v3083 = vunpack.c.h.b16 %v2729
  %v3084 = vunpack.c.l.b16 %v2730
  %v3085 = vunpack.c.h.b16 %v2730
  %v3086 = vunpack.c.l.b16 %v2731
  %v3087 = vunpack.c.h.b16 %v2731
  %v3088 = vunpack.c.l.b16 %v2732
  %v3089 = vunpack.c.h.b16 %v2732
  %v3090 = vunpack.c.l.b16 %v2733
  %v3091 = vunpack.c.h.b16 %v2733
  %v3092 = vunpack.c.l.b16 %v2734
  %v3093 = vunpack.c.h.b16 %v2734
  %v3094 = vunpack.c.l.b16 %v2735
  %v3095 = vunpack.c.h.b16 %v2735
  %v3096 = vunpack.c.l.b16 %v2736
  %v3097 = vunpack.c.h.b16 %v2736
  %v3098 = vunpack.c.l.b16 %v2737
  %v3099 = vunpack.c.h.b16 %v2737
  %v3100 = vunpack.c.l.b16 %v2738
  %v3101 = vunpack.c.h.b16 %v2738
  %v3102 = vunpack.c.l.b16 %v2739
  %v3103 = vunpack.c.h.b16 %v2739
  %v3104 = vunpack.c.l.b16 %v2740
  %v3105 = vunpack.c.h.b16 %v2740
  %v3106 = vunpack.c.l.b16 %v2741
  %v3107 = vunpack.c.h.b16 %v2741
  %v3108 = vunpack.c.l.b16 %v2742
  %v3109 = vunpack.c.h.b16 %v2742
  %v3110 = vunpack.c.l.b16 %v2743
  %v3111 = vunpack.c.h.b16 %v2743
  %v3112 = vunpack.c.l.b16 %v2744
  %v3113 = vunpack.c.h.b16 %v2744
  %v3114 = vunpack.c.l.b16 %v2745
  %v3115 = vunpack.c.h.b16 %v2745
  %v3116 = vunpack.c.l.b16 %v2746
  %v3117 = vunpack.c.h.b16 %v2746
  %v3118 = vunpack.c.l.b16 %v2747
  %v3119 = vunpack.c.h.b16 %v2747
  %v3120 = vunpack.c.l.b16 %v2748
  %v3121 = vunpack.c.h.b16 %v2748
  %v3122 = vunpack.c.l.b16 %v2749
  %v3123 = vunpack.c.h.b16 %v2749
  %v3124 = vunpack.c.l.b16 %v2750
  %v3125 = vunpack.c.h.b16 %v2750
  %v3126 = vunpack.c.l.b16 %v2751
  %v3127 = vunpack.c.h.b16 %v2751
  %v3128 = vunpack.c.l.b16 %v2752
  %v3129 = vunpack.c.h.b16 %v2752
  %v3130 = vunpack.c.l.b16 %v2753
  %v3131 = vunpack.c.h.b16 %v2753
  %v3132 = vunpack.c.l.b16 %v2754
  %v3133 = vunpack.c.h.b16 %v2754
  %v3134 = vunpack.c.l.b16 %v2755
  %v3135 = vunpack.c.h.b16 %v2755
  %v3136 = vunpack.c.l.b16 %v2756
  %v3137 = vunpack.c.h.b16 %v2756
  %v3138 = vunpack.c.l.b16 %v2757
  %v3139 = vunpack.c.h.b16 %v2757
  %v3140 = vunpack.c.l.b16 %v2758
  %v3141 = vunpack.c.h.b16 %v2758
  %v3142 = vunpack.c.l.b16 %v2759
  %v3143 = vunpack.c.h.b16 %v2759
  %v3144 = vpack.c.b16 %v2888, %v2888
  %v3145 = vpack.c.b16 %v2889, %v2889
  %v3146 = vpack.c.b16 %v2890, %v2890
  %v3147 = vpack.c.b16 %v2891, %v2891
  %v3148 = vpack.c.b16 %v2892, %v2892
  %v3149 = vpack.c.b16 %v2893, %v2893
  %v3150 = vpack.c.b16 %v2894, %v2894
  %v3151 = vpack.c.b16 %v2895, %v2895
  %v3152 = vpack.c.b16 %v2896, %v2896
  %v3153 = vpack.c.b16 %v2897, %v2897
  %v3154 = vpack.c.b16 %v2898, %v2898
  %v3155 = vpack.c.b16 %v2899, %v2899
  %v3156 = vpack.c.b16 %v2900, %v2900
  %v3157 = vpack.c.b16 %v2901, %v2901
  %v3158 = vpack.c.b16 %v2902, %v2902
  %v3159 = vpack.c.b16 %v2903, %v2903
  %v3160 = vpack.c.b16 %v2904, %v2904
  %v3161 = vpack.c.b16 %v2905, %v2905
  %v3162 = vpack.c.b16 %v2906, %v2906
  %v3163 = vpack.c.b16 %v2907, %v2907
  %v3164 = vpack.c.b16 %v2908, %v2908
  %v3165 = vpack.c.b16 %v2909, %v2909
  %v3166 = vpack.c.b16 %v2910, %v2910
  %v3167 = vpack.c.b16 %v2911, %v2911
  %v3168 = vpack.c.b16 %v2912, %v2912
  %v3169 = vpack.c.b16 %v2913, %v2913
  %v3170 = vpack.c.b16 %v2914, %v2914
  %v3171 = vpack.c.b16 %v2915, %v2915
  %v3172 = vpack.c.b16 %v2916, %v2916
  %v3173 = vpack.c.b16 %v2917, %v2917
  %v3174 = vpack.c.b16 %v2918, %v2918
  %v3175 = vpack.c.b16 %v2919, %v2919
  %v3176 = vpack.c.b16 %v2920, %v2920
  %v3177 = vpack.c.b16 %v2921, %v2921
  %v3178 = vpack.c.b16 %v2922, %v2922
  %v3179 = vpack.c.b16 %v2923, %v2923
  %v3180 = vpack.c.b16 %v2924, %v2924
  %v3181 = vpack.c.b16 %v2925, %v2925
  %v3182 = vpack.c.b16 %v2926, %v2926
  %v3183 = vpack.c.b16 %v2927, %v2927
  %v3184 = vpack.c.b16 %v2928, %v2928
  %v3185 = vpack.c.b16 %v2929, %v2929
  %v3186 = vpack.c.b16 %v2930, %v2930
  %v3187 = vpack.c.b16 %v2931, %v2931
  %v3188 = vpack.c.b16 %v2932, %v2932
  %v3189 = vpack.c.b16 %v2933, %v2933
  %v3190 = vpack.c.b16 %v2934, %v2934
  %v3191 = vpack.c.b16 %v2935, %v2935
  %v3192 = vpack.c.b16 %v2936, %v2936
  %v3193 = vpack.c.b16 %v2937, %v2937
  %v3194 = vpack.c.b16 %v2938, %v2938
  %v3195 = vpack.c.b16 %v2939, %v2939
  %v3196 = vpack.c.b16 %v2940, %v2940
  %v3197 = vpack.c.b16 %v2941, %v2941
  %v3198 = vpack.c.b16 %v2942, %v2942
  %v3199 = vpack.c.b16 %v2943, %v2943
  %v3200 = vpack.c.b16 %v2944, %v2944
  %v3201 = vpack.c.b16 %v2945, %v2945
  %v3202 = vpack.c.b16 %v2946, %v2946
  %v3203 = vpack.c.b16 %v2947, %v2947
  %v3204 = vpack.c.b16 %v2948, %v2948
  %v3205 = vpack.c.b16 %v2949, %v2949
  %v3206 = vpack.c.b16 %v2950, %v2950
  %v3207 = vpack.c.b16 %v2951, %v2951
  %v3208 = vpack.c.b16 %v2952, %v2952
  %v3209 = vpack.c.b16 %v2953, %v2953
  %v3210 = vpack.c.b16 %v2954, %v2954
  %v3211 = vpack.c.b16 %v2955, %v2955
  %v3212 = vpack.c.b16 %v2956, %v2956
  %v3213 = vpack.c.b16 %v2957, %v2957
  %v3214 = vpack.c.b16 %v2958, %v2958
  %v3215 = vpack.c.b16 %v2959, %v2959
  %v3216 = vpack.c.b16 %v2960, %v2960
  %v3217 = vpack.c.b16 %v2961, %v2961
  %v3218 = vpack.c.b16 %v2962, %v2962
  %v3219 = vpack.c.b16 %v2963, %v2963
  %v3220 = vpack.c.b16 %v2964, %v2964
  %v3221 = vpack.c.b16 %v2965, %v2965
  %v3222 = vpack.c.b16 %v2966, %v2966
  %v3223 = vpack.c.b16 %v2967, %v2967
  %v3224 = vpack.c.b16 %v2968, %v2968
  %v3225 = vpack.c.b16 %v2969, %v2969
  %v3226 = vpack.c.b16 %v2970, %v2970
  %v3227 = vpack.c.b16 %v2971, %v2971
  %v3228 = vpack.c.b16 %v2972, %v2972
  %v3229 = vpack.c.b16 %v2973, %v2973
  %v3230 = vpack.c.b16 %v2974, %v2974
  %v3231 = vpack.c.b16 %v2975, %v2975
  %v3232 = vpack.c.b16 %v2976, %v2976
  %v3233 = vpack.c.b16 %v2977, %v2977
  %v3234 = vpack.c.b16 %v2978, %v2978
  %v3235 = vpack.c.b16 %v2979, %v2979
  %v3236 = vpack.c.b16 %v2980, %v2980
  %v3237 = vpack.c.b16 %v2981, %v2981
  %v3238 = vpack.c.b16 %v2982, %v2982
  %v3239 = vpack.c.b16 %v2983, %v2983
  %v3240 = vpack.c.b16 %v2984, %v2984
  %v3241 = vpack.c.b16 %v2985, %v2985
  %v3242 = vpack.c.b16 %v2986, %v2986
  %v3243 = vpack.c.b16 %v2987, %v2987
  %v3244 = vpack.c.b16 %v2988, %v2988
  %v3245 = vpack.c.b16 %v2989, %v2989
  %v3246 = vpack.c.b16 %v2990, %v2990
  %v3247 = vpack.c.b16 %v2991, %v2991
  %v3248 = vpack.c.b16 %v2992, %v2992
  %v3249 = vpack.c.b16 %v2993, %v2993
  %v3250 = vpack.c.b16 %v2994, %v2994
  %v3251 = vpack.c.b16 %v2995, %v2995
  %v3252 = vpack.c.b16 %v2996, %v2996
  %v3253 = vpack.c.b16 %v2997, %v2997
  %v3254 = vpack.c.b16 %v2998, %v2998
  %v3255 = vpack.c.b16 %v2999, %v2999
  %v3256 = vpack.c.b16 %v3000, %v3000
  %v3257 = vpack.c.b16 %v3001, %v3001
  %v3258 = vpack.c.b16 %v3002, %v3002
  %v3259 = vpack.c.b16 %v3003, %v3003
  %v3260 = vpack.c.b16 %v3004, %v3004
  %v3261 = vpack.c.b16 %v3005, %v3005
  %v3262 = vpack.c.b16 %v3006, %v3006
  %v3263 = vpack.c.b16 %v3007, %v3007
  %v3264 = vpack.c.b16 %v3008, %v3008
  %v3265 = vpack.c.b16 %v3009, %v3009
  %v3266 = vpack.c.b16 %v3010, %v3010
  %v3267 = vpack.c.b16 %v3011, %v3011
  %v3268 = vpack.c.b16 %v3012, %v3012
  %v3269 = vpack.c.b16 %v3013, %v3013
  %v3270 = vpack.c.b16 %v3014, %v3014
  %v3271 = vpack.c.b16 %v3015, %v3015
  %v3272 = vpack.c.b16 %v3016, %v3016
  %v3273 = vpack.c.b16 %v3017, %v3017
  %v3274 = vpack.c.b16 %v3018, %v3018
  %v3275 = vpack.c.b16 %v3019, %v3019
  %v3276 = vpack.c.b16 %v3020, %v3020
  %v3277 = vpack.c.b16 %v3021, %v3021
  %v3278 = vpack.c.b16 %v3022, %v3022
  %v3279 = vpack.c.b16 %v3023, %v3023
  %v3280 = vpack.c.b16 %v3024, %v3024
  %v3281 = vpack.c.b16 %v3025, %v3025
  %v3282 = vpack.c.b16 %v3026, %v3026
  %v3283 = vpack.c.b16 %v3027, %v3027
  %v3284 = vpack.c.b16 %v3028, %v3028
  %v3285 = vpack.c.b16 %v3029, %v3029
  %v3286 = vpack.c.b16 %v3030, %v3030
  %v3287 = vpack.c.b16 %v3031, %v3031
  %v3288 = vpack.c.b16 %v3032, %v3032
  %v3289 = vpack.c.b16 %v3033, %v3033
  %v3290 = vpack.c.b16 %v3034, %v3034
  %v3291 = vpack.c.b16 %v3035, %v3035
  %v3292 = vpack.c.b16 %v3036, %v3036
  %v3293 = vpack.c.b16 %v3037, %v3037
  %v3294 = vpack.c.b16 %v3038, %v3038
  %v3295 = vpack.c.b16 %v3039, %v3039
  %v3296 = vpack.c.b16 %v3040, %v3040
  %v3297 = vpack.c.b16 %v3041, %v3041
  %v3298 = vpack.c.b16 %v3042, %v3042
  %v3299 = vpack.c.b16 %v3043, %v3043
  %v3300 = vpack.c.b16 %v3044, %v3044
  %v3301 = vpack.c.b16 %v3045, %v3045
  %v3302 = vpack.c.b16 %v3046, %v3046
  %v3303 = vpack.c.b16 %v3047, %v3047
  %v3304 = vpack.c.b16 %v3048, %v3048
  %v3305 = vpack.c.b16 %v3049, %v3049
  %v3306 = vpack.c.b16 %v3050, %v3050
  %v3307 = vpack.c.b16 %v3051, %v3051
  %v3308 = vpack.c.b16 %v3052, %v3052
  %v3309 = vpack.c.b16 %v3053, %v3053
  %v3310 = vpack.c.b16 %v3054, %v3054
  %v3311 = vpack.c.b16 %v3055, %v3055
  %v3312 = vpack.c.b16 %v3056, %v3056
  %v3313 = vpack.c.b16 %v3057, %v3057
  %v3314 = vpack.c.b16 %v3058, %v3058
  %v3315 = vpack.c.b16 %v3059, %v3059
  %v3316 = vpack.c.b16 %v3060, %v3060
  %v3317 = vpack.c.b16 %v3061, %v3061
  %v3318 = vpack.c.b16 %v3062, %v3062
  %v3319 = vpack.c.b16 %v3063, %v3063
  %v3320 = vpack.c.b16 %v3064, %v3064
  %v3321 = vpack.c.b16 %v3065, %v3065
  %v3322 = vpack.c.b16 %v3066, %v3066
  %v3323 = vpack.c.b16 %v3067, %v3067
  %v3324 = vpack.c.b16 %v3068, %v3068
  %v3325 = vpack.c.b16 %v3069, %v3069
  %v3326 = vpack.c.b16 %v3070, %v3070
  %v3327 = vpack.c.b16 %v3071, %v3071
  %v3328 = vpack.c.b16 %v3072, %v3072
  %v3329 = vpack.c.b16 %v3073, %v3073
  %v3330 = vpack.c.b16 %v3074, %v3074
  %v3331 = vpack.c.b16 %v3075, %v3075
  %v3332 = vpack.c.b16 %v3076, %v3076
  %v3333 = vpack.c.b16 %v3077, %v3077
  %v3334 = vpack.c.b16 %v3078, %v3078
  %v3335 = vpack.c.b16 %v3079, %v3079
  %v3336 = vpack.c.b16 %v3080, %v3080
  %v3337 = vpack.c.b16 %v3081, %v3081
  %v3338 = vpack.c.b16 %v3082, %v3082
  %v3339 = vpack.c.b16 %v3083, %v3083
  %v3340 = vpack.c.b16 %v3084, %v3084
  %v3341 = vpack.c.b16 %v3085, %v3085
  %v3342 = vpack.c.b16 %v3086, %v3086
  %v3343 = vpack.c.b16 %v3087, %v3087
  %v3344 = vpack.c.b16 %v3088, %v3088
  %v3345 = vpack.c.b16 %v3089, %v3089
  %v3346 = vpack.c.b16 %v3090, %v3090
  %v3347 = vpack.c.b16 %v3091, %v3091
  %v3348 = vpack.c.b16 %v3092, %v3092
  %v3349 = vpack.c.b16 %v3093, %v3093
  %v3350 = vpack.c.b16 %v3094, %v3094
  %v3351 = vpack.c.b16 %v3095, %v3095
  %v3352 = vpack.c.b16 %v3096, %v3096
  %v3353 = vpack.c.b16 %v3097, %v3097
  %v3354 = vpack.c.b16 %v3098, %v3098
  %v3355 = vpack.c.b16 %v3099, %v3099
  %v3356 = vpack.c.b16 %v3100, %v3100
  %v3357 = vpack.c.b16 %v3101, %v3101
  %v3358 = vpack.c.b16 %v3102, %v3102
  %v3359 = vpack.c.b16 %v3103, %v3103
  %v3360 = vpack.c.b16 %v3104, %v3104
  %v3361 = vpack.c.b16 %v3105, %v3105
  %v3362 = vpack.c.b16 %v3106, %v3106
  %v3363 = vpack.c.b16 %v3107, %v3107
  %v3364 = vpack.c.b16 %v3108, %v3108
  %v3365 = vpack.c.b16 %v3109, %v3109
  %v3366 = vpack.c.b16 %v3110, %v3110
  %v3367 = vpack.c.b16 %v3111, %v3111
  %v3368 = vpack.c.b16 %v3112, %v3112
  %v3369 = vpack.c.b16 %v3113, %v3113
  %v3370 = vpack.c.b16 %v3114, %v3114
  %v3371 = vpack.c.b16 %v3115, %v3115
  %v3372 = vpack.c.b16 %v3116, %v3116
  %v3373 = vpack.c.b16 %v3117, %v3117
  %v3374 = vpack.c.b16 %v3118, %v3118
  %v3375 = vpack.c.b16 %v3119, %v3119
  %v3376 = vpack.c.b16 %v3120, %v3120
  %v3377 = vpack.c.b16 %v3121, %v3121
  %v3378 = vpack.c.b16 %v3122, %v3122
  %v3379 = vpack.c.b16 %v3123, %v3123
  %v3380 = vpack.c.b16 %v3124, %v3124
  %v3381 = vpack.c.b16 %v3125, %v3125
  %v3382 = vpack.c.b16 %v3126, %v3126
  %v3383 = vpack.c.b16 %v3127, %v3127
  %v3384 = vpack.c.b16 %v3128, %v3128
  %v3385 = vpack.c.b16 %v3129, %v3129
  %v3386 = vpack.c.b16 %v3130, %v3130
  %v3387 = vpack.c.b16 %v3131, %v3131
  %v3388 = vpack.c.b16 %v3132, %v3132
  %v3389 = vpack.c.b16 %v3133, %v3133
  %v3390 = vpack.c.b16 %v3134, %v3134
  %v3391 = vpack.c.b16 %v3135, %v3135
  %v3392 = vpack.c.b16 %v3136, %v3136
  %v3393 = vpack.c.b16 %v3137, %v3137
  %v3394 = vpack.c.b16 %v3138, %v3138
  %v3395 = vpack.c.b16 %v3139, %v3139
  %v3396 = vpack.c.b16 %v3140, %v3140
  %v3397 = vpack.c.b16 %v3141, %v3141
  %v3398 = vpack.c.b16 %v3142, %v3142
  %v3399 = vpack.c.b16 %v3143, %v3143
  %vm3656 = vcmask 519168
  %3657 = vst.msk [vmem:[%s3] sm:$0xf] %vm3656, %v3144
  %3658 = vst.msk [vmem:[%s3 + $0x4] sm:$0xf] %vm3656, %v3145
  %3659 = vst.msk [vmem:[%s3 + $0x8] sm:$0xf] %vm3656, %v3146
  %3660 = vst.msk [vmem:[%s3 + $0xc] sm:$0xf] %vm3656, %v3147
  %3661 = vst.msk [vmem:[%s3 + $0x10] sm:$0xf] %vm3656, %v3148
  %3662 = vst.msk [vmem:[%s3 + $0x14] sm:$0xf] %vm3656, %v3149
  %3663 = vst.msk [vmem:[%s3 + $0x18] sm:$0xf] %vm3656, %v3150
  %3664 = vst.msk [vmem:[%s3 + $0x1c] sm:$0xf] %vm3656, %v3151
  %3665 = vst.msk [vmem:[%s3 + $0x20] sm:$0xf] %vm3656, %v3152
  %3666 = vst.msk [vmem:[%s3 + $0x24] sm:$0xf] %vm3656, %v3153
  %3667 = vst.msk [vmem:[%s3 + $0x28] sm:$0xf] %vm3656, %v3154
  %3668 = vst.msk [vmem:[%s3 + $0x2c] sm:$0xf] %vm3656, %v3155
  %3669 = vst.msk [vmem:[%s3 + $0x30] sm:$0xf] %vm3656, %v3156
  %3670 = vst.msk [vmem:[%s3 + $0x34] sm:$0xf] %vm3656, %v3157
  %3671 = vst.msk [vmem:[%s3 + $0x38] sm:$0xf] %vm3656, %v3158
  %3672 = vst.msk [vmem:[%s3 + $0x3c] sm:$0xf] %vm3656, %v3159
  %3673 = vst.msk [vmem:[%s3 + $0x40] sm:$0xf] %vm3656, %v3160
  %3674 = vst.msk [vmem:[%s3 + $0x44] sm:$0xf] %vm3656, %v3161
  %3675 = vst.msk [vmem:[%s3 + $0x48] sm:$0xf] %vm3656, %v3162
  %3676 = vst.msk [vmem:[%s3 + $0x4c] sm:$0xf] %vm3656, %v3163
  %3677 = vst.msk [vmem:[%s3 + $0x50] sm:$0xf] %vm3656, %v3164
  %3678 = vst.msk [vmem:[%s3 + $0x54] sm:$0xf] %vm3656, %v3165
  %3679 = vst.msk [vmem:[%s3 + $0x58] sm:$0xf] %vm3656, %v3166
  %3680 = vst.msk [vmem:[%s3 + $0x5c] sm:$0xf] %vm3656, %v3167
  %3681 = vst.msk [vmem:[%s3 + $0x60] sm:$0xf] %vm3656, %v3168
  %3682 = vst.msk [vmem:[%s3 + $0x64] sm:$0xf] %vm3656, %v3169
  %3683 = vst.msk [vmem:[%s3 + $0x68] sm:$0xf] %vm3656, %v3170
  %3684 = vst.msk [vmem:[%s3 + $0x6c] sm:$0xf] %vm3656, %v3171
  %3685 = vst.msk [vmem:[%s3 + $0x70] sm:$0xf] %vm3656, %v3172
  %3686 = vst.msk [vmem:[%s3 + $0x74] sm:$0xf] %vm3656, %v3173
  %3687 = vst.msk [vmem:[%s3 + $0x78] sm:$0xf] %vm3656, %v3174
  %3688 = vst.msk [vmem:[%s3 + $0x7c] sm:$0xf] %vm3656, %v3175
  %3689 = vst.msk [vmem:[%s3 + $0x80] sm:$0xf] %vm3656, %v3176
  %3690 = vst.msk [vmem:[%s3 + $0x84] sm:$0xf] %vm3656, %v3177
  %3691 = vst.msk [vmem:[%s3 + $0x88] sm:$0xf] %vm3656, %v3178
  %3692 = vst.msk [vmem:[%s3 + $0x8c] sm:$0xf] %vm3656, %v3179
  %3693 = vst.msk [vmem:[%s3 + $0x90] sm:$0xf] %vm3656, %v3180
  %3694 = vst.msk [vmem:[%s3 + $0x94] sm:$0xf] %vm3656, %v3181
  %3695 = vst.msk [vmem:[%s3 + $0x98] sm:$0xf] %vm3656, %v3182
  %3696 = vst.msk [vmem:[%s3 + $0x9c] sm:$0xf] %vm3656, %v3183
  %3697 = vst.msk [vmem:[%s3 + $0xa0] sm:$0xf] %vm3656, %v3184
  %3698 = vst.msk [vmem:[%s3 + $0xa4] sm:$0xf] %vm3656, %v3185
  %3699 = vst.msk [vmem:[%s3 + $0xa8] sm:$0xf] %vm3656, %v3186
  %3700 = vst.msk [vmem:[%s3 + $0xac] sm:$0xf] %vm3656, %v3187
  %3701 = vst.msk [vmem:[%s3 + $0xb0] sm:$0xf] %vm3656, %v3188
  %3702 = vst.msk [vmem:[%s3 + $0xb4] sm:$0xf] %vm3656, %v3189
  %3703 = vst.msk [vmem:[%s3 + $0xb8] sm:$0xf] %vm3656, %v3190
  %3704 = vst.msk [vmem:[%s3 + $0xbc] sm:$0xf] %vm3656, %v3191
  %3705 = vst.msk [vmem:[%s3 + $0xc0] sm:$0xf] %vm3656, %v3192
  %3706 = vst.msk [vmem:[%s3 + $0xc4] sm:$0xf] %vm3656, %v3193
  %3707 = vst.msk [vmem:[%s3 + $0xc8] sm:$0xf] %vm3656, %v3194
  %3708 = vst.msk [vmem:[%s3 + $0xcc] sm:$0xf] %vm3656, %v3195
  %3709 = vst.msk [vmem:[%s3 + $0xd0] sm:$0xf] %vm3656, %v3196
  %3710 = vst.msk [vmem:[%s3 + $0xd4] sm:$0xf] %vm3656, %v3197
  %3711 = vst.msk [vmem:[%s3 + $0xd8] sm:$0xf] %vm3656, %v3198
  %3712 = vst.msk [vmem:[%s3 + $0xdc] sm:$0xf] %vm3656, %v3199
  %3713 = vst.msk [vmem:[%s3 + $0xe0] sm:$0xf] %vm3656, %v3200
  %3714 = vst.msk [vmem:[%s3 + $0xe4] sm:$0xf] %vm3656, %v3201
  %3715 = vst.msk [vmem:[%s3 + $0xe8] sm:$0xf] %vm3656, %v3202
  %3716 = vst.msk [vmem:[%s3 + $0xec] sm:$0xf] %vm3656, %v3203
  %3717 = vst.msk [vmem:[%s3 + $0xf0] sm:$0xf] %vm3656, %v3204
  %3718 = vst.msk [vmem:[%s3 + $0xf4] sm:$0xf] %vm3656, %v3205
  %3719 = vst.msk [vmem:[%s3 + $0xf8] sm:$0xf] %vm3656, %v3206
  %3720 = vst.msk [vmem:[%s3 + $0xfc] sm:$0xf] %vm3656, %v3207
  %3721 = vst.msk [vmem:[%s3 + $0x100] sm:$0xf] %vm3656, %v3208
  %3722 = vst.msk [vmem:[%s3 + $0x104] sm:$0xf] %vm3656, %v3209
  %3723 = vst.msk [vmem:[%s3 + $0x108] sm:$0xf] %vm3656, %v3210
  %3724 = vst.msk [vmem:[%s3 + $0x10c] sm:$0xf] %vm3656, %v3211
  %3725 = vst.msk [vmem:[%s3 + $0x110] sm:$0xf] %vm3656, %v3212
  %3726 = vst.msk [vmem:[%s3 + $0x114] sm:$0xf] %vm3656, %v3213
  %3727 = vst.msk [vmem:[%s3 + $0x118] sm:$0xf] %vm3656, %v3214
  %3728 = vst.msk [vmem:[%s3 + $0x11c] sm:$0xf] %vm3656, %v3215
  %3729 = vst.msk [vmem:[%s3 + $0x120] sm:$0xf] %vm3656, %v3216
  %3730 = vst.msk [vmem:[%s3 + $0x124] sm:$0xf] %vm3656, %v3217
  %3731 = vst.msk [vmem:[%s3 + $0x128] sm:$0xf] %vm3656, %v3218
  %3732 = vst.msk [vmem:[%s3 + $0x12c] sm:$0xf] %vm3656, %v3219
  %3733 = vst.msk [vmem:[%s3 + $0x130] sm:$0xf] %vm3656, %v3220
  %3734 = vst.msk [vmem:[%s3 + $0x134] sm:$0xf] %vm3656, %v3221
  %3735 = vst.msk [vmem:[%s3 + $0x138] sm:$0xf] %vm3656, %v3222
  %3736 = vst.msk [vmem:[%s3 + $0x13c] sm:$0xf] %vm3656, %v3223
  %3737 = vst.msk [vmem:[%s3 + $0x140] sm:$0xf] %vm3656, %v3224
  %3738 = vst.msk [vmem:[%s3 + $0x144] sm:$0xf] %vm3656, %v3225
  %3739 = vst.msk [vmem:[%s3 + $0x148] sm:$0xf] %vm3656, %v3226
  %3740 = vst.msk [vmem:[%s3 + $0x14c] sm:$0xf] %vm3656, %v3227
  %3741 = vst.msk [vmem:[%s3 + $0x150] sm:$0xf] %vm3656, %v3228
  %3742 = vst.msk [vmem:[%s3 + $0x154] sm:$0xf] %vm3656, %v3229
  %3743 = vst.msk [vmem:[%s3 + $0x158] sm:$0xf] %vm3656, %v3230
  %3744 = vst.msk [vmem:[%s3 + $0x15c] sm:$0xf] %vm3656, %v3231
  %3745 = vst.msk [vmem:[%s3 + $0x160] sm:$0xf] %vm3656, %v3232
  %3746 = vst.msk [vmem:[%s3 + $0x164] sm:$0xf] %vm3656, %v3233
  %3747 = vst.msk [vmem:[%s3 + $0x168] sm:$0xf] %vm3656, %v3234
  %3748 = vst.msk [vmem:[%s3 + $0x16c] sm:$0xf] %vm3656, %v3235
  %3749 = vst.msk [vmem:[%s3 + $0x170] sm:$0xf] %vm3656, %v3236
  %3750 = vst.msk [vmem:[%s3 + $0x174] sm:$0xf] %vm3656, %v3237
  %3751 = vst.msk [vmem:[%s3 + $0x178] sm:$0xf] %vm3656, %v3238
  %3752 = vst.msk [vmem:[%s3 + $0x17c] sm:$0xf] %vm3656, %v3239
  %3753 = vst.msk [vmem:[%s3 + $0x180] sm:$0xf] %vm3656, %v3240
  %3754 = vst.msk [vmem:[%s3 + $0x184] sm:$0xf] %vm3656, %v3241
  %3755 = vst.msk [vmem:[%s3 + $0x188] sm:$0xf] %vm3656, %v3242
  %3756 = vst.msk [vmem:[%s3 + $0x18c] sm:$0xf] %vm3656, %v3243
  %3757 = vst.msk [vmem:[%s3 + $0x190] sm:$0xf] %vm3656, %v3244
  %3758 = vst.msk [vmem:[%s3 + $0x194] sm:$0xf] %vm3656, %v3245
  %3759 = vst.msk [vmem:[%s3 + $0x198] sm:$0xf] %vm3656, %v3246
  %3760 = vst.msk [vmem:[%s3 + $0x19c] sm:$0xf] %vm3656, %v3247
  %3761 = vst.msk [vmem:[%s3 + $0x1a0] sm:$0xf] %vm3656, %v3248
  %3762 = vst.msk [vmem:[%s3 + $0x1a4] sm:$0xf] %vm3656, %v3249
  %3763 = vst.msk [vmem:[%s3 + $0x1a8] sm:$0xf] %vm3656, %v3250
  %3764 = vst.msk [vmem:[%s3 + $0x1ac] sm:$0xf] %vm3656, %v3251
  %3765 = vst.msk [vmem:[%s3 + $0x1b0] sm:$0xf] %vm3656, %v3252
  %3766 = vst.msk [vmem:[%s3 + $0x1b4] sm:$0xf] %vm3656, %v3253
  %3767 = vst.msk [vmem:[%s3 + $0x1b8] sm:$0xf] %vm3656, %v3254
  %3768 = vst.msk [vmem:[%s3 + $0x1bc] sm:$0xf] %vm3656, %v3255
  %3769 = vst.msk [vmem:[%s3 + $0x1c0] sm:$0xf] %vm3656, %v3256
  %3770 = vst.msk [vmem:[%s3 + $0x1c4] sm:$0xf] %vm3656, %v3257
  %3771 = vst.msk [vmem:[%s3 + $0x1c8] sm:$0xf] %vm3656, %v3258
  %3772 = vst.msk [vmem:[%s3 + $0x1cc] sm:$0xf] %vm3656, %v3259
  %3773 = vst.msk [vmem:[%s3 + $0x1d0] sm:$0xf] %vm3656, %v3260
  %3774 = vst.msk [vmem:[%s3 + $0x1d4] sm:$0xf] %vm3656, %v3261
  %3775 = vst.msk [vmem:[%s3 + $0x1d8] sm:$0xf] %vm3656, %v3262
  %3776 = vst.msk [vmem:[%s3 + $0x1dc] sm:$0xf] %vm3656, %v3263
  %3777 = vst.msk [vmem:[%s3 + $0x1e0] sm:$0xf] %vm3656, %v3264
  %3778 = vst.msk [vmem:[%s3 + $0x1e4] sm:$0xf] %vm3656, %v3265
  %3779 = vst.msk [vmem:[%s3 + $0x1e8] sm:$0xf] %vm3656, %v3266
  %3780 = vst.msk [vmem:[%s3 + $0x1ec] sm:$0xf] %vm3656, %v3267
  %3781 = vst.msk [vmem:[%s3 + $0x1f0] sm:$0xf] %vm3656, %v3268
  %3782 = vst.msk [vmem:[%s3 + $0x1f4] sm:$0xf] %vm3656, %v3269
  %3783 = vst.msk [vmem:[%s3 + $0x1f8] sm:$0xf] %vm3656, %v3270
  %3784 = vst.msk [vmem:[%s3 + $0x1fc] sm:$0xf] %vm3656, %v3271
  %3785 = vst.msk [vmem:[%s3 + $0x200] sm:$0xf] %vm3656, %v3272
  %3786 = vst.msk [vmem:[%s3 + $0x204] sm:$0xf] %vm3656, %v3273
  %3787 = vst.msk [vmem:[%s3 + $0x208] sm:$0xf] %vm3656, %v3274
  %3788 = vst.msk [vmem:[%s3 + $0x20c] sm:$0xf] %vm3656, %v3275
  %3789 = vst.msk [vmem:[%s3 + $0x210] sm:$0xf] %vm3656, %v3276
  %3790 = vst.msk [vmem:[%s3 + $0x214] sm:$0xf] %vm3656, %v3277
  %3791 = vst.msk [vmem:[%s3 + $0x218] sm:$0xf] %vm3656, %v3278
  %3792 = vst.msk [vmem:[%s3 + $0x21c] sm:$0xf] %vm3656, %v3279
  %3793 = vst.msk [vmem:[%s3 + $0x220] sm:$0xf] %vm3656, %v3280
  %3794 = vst.msk [vmem:[%s3 + $0x224] sm:$0xf] %vm3656, %v3281
  %3795 = vst.msk [vmem:[%s3 + $0x228] sm:$0xf] %vm3656, %v3282
  %3796 = vst.msk [vmem:[%s3 + $0x22c] sm:$0xf] %vm3656, %v3283
  %3797 = vst.msk [vmem:[%s3 + $0x230] sm:$0xf] %vm3656, %v3284
  %3798 = vst.msk [vmem:[%s3 + $0x234] sm:$0xf] %vm3656, %v3285
  %3799 = vst.msk [vmem:[%s3 + $0x238] sm:$0xf] %vm3656, %v3286
  %3800 = vst.msk [vmem:[%s3 + $0x23c] sm:$0xf] %vm3656, %v3287
  %3801 = vst.msk [vmem:[%s3 + $0x240] sm:$0xf] %vm3656, %v3288
  %3802 = vst.msk [vmem:[%s3 + $0x244] sm:$0xf] %vm3656, %v3289
  %3803 = vst.msk [vmem:[%s3 + $0x248] sm:$0xf] %vm3656, %v3290
  %3804 = vst.msk [vmem:[%s3 + $0x24c] sm:$0xf] %vm3656, %v3291
  %3805 = vst.msk [vmem:[%s3 + $0x250] sm:$0xf] %vm3656, %v3292
  %3806 = vst.msk [vmem:[%s3 + $0x254] sm:$0xf] %vm3656, %v3293
  %3807 = vst.msk [vmem:[%s3 + $0x258] sm:$0xf] %vm3656, %v3294
  %3808 = vst.msk [vmem:[%s3 + $0x25c] sm:$0xf] %vm3656, %v3295
  %3809 = vst.msk [vmem:[%s3 + $0x260] sm:$0xf] %vm3656, %v3296
  %3810 = vst.msk [vmem:[%s3 + $0x264] sm:$0xf] %vm3656, %v3297
  %3811 = vst.msk [vmem:[%s3 + $0x268] sm:$0xf] %vm3656, %v3298
  %3812 = vst.msk [vmem:[%s3 + $0x26c] sm:$0xf] %vm3656, %v3299
  %3813 = vst.msk [vmem:[%s3 + $0x270] sm:$0xf] %vm3656, %v3300
  %3814 = vst.msk [vmem:[%s3 + $0x274] sm:$0xf] %vm3656, %v3301
  %3815 = vst.msk [vmem:[%s3 + $0x278] sm:$0xf] %vm3656, %v3302
  %3816 = vst.msk [vmem:[%s3 + $0x27c] sm:$0xf] %vm3656, %v3303
  %3817 = vst.msk [vmem:[%s3 + $0x280] sm:$0xf] %vm3656, %v3304
  %3818 = vst.msk [vmem:[%s3 + $0x284] sm:$0xf] %vm3656, %v3305
  %3819 = vst.msk [vmem:[%s3 + $0x288] sm:$0xf] %vm3656, %v3306
  %3820 = vst.msk [vmem:[%s3 + $0x28c] sm:$0xf] %vm3656, %v3307
  %3821 = vst.msk [vmem:[%s3 + $0x290] sm:$0xf] %vm3656, %v3308
  %3822 = vst.msk [vmem:[%s3 + $0x294] sm:$0xf] %vm3656, %v3309
  %3823 = vst.msk [vmem:[%s3 + $0x298] sm:$0xf] %vm3656, %v3310
  %3824 = vst.msk [vmem:[%s3 + $0x29c] sm:$0xf] %vm3656, %v3311
  %3825 = vst.msk [vmem:[%s3 + $0x2a0] sm:$0xf] %vm3656, %v3312
  %3826 = vst.msk [vmem:[%s3 + $0x2a4] sm:$0xf] %vm3656, %v3313
  %3827 = vst.msk [vmem:[%s3 + $0x2a8] sm:$0xf] %vm3656, %v3314
  %3828 = vst.msk [vmem:[%s3 + $0x2ac] sm:$0xf] %vm3656, %v3315
  %3829 = vst.msk [vmem:[%s3 + $0x2b0] sm:$0xf] %vm3656, %v3316
  %3830 = vst.msk [vmem:[%s3 + $0x2b4] sm:$0xf] %vm3656, %v3317
  %3831 = vst.msk [vmem:[%s3 + $0x2b8] sm:$0xf] %vm3656, %v3318
  %3832 = vst.msk [vmem:[%s3 + $0x2bc] sm:$0xf] %vm3656, %v3319
  %3833 = vst.msk [vmem:[%s3 + $0x2c0] sm:$0xf] %vm3656, %v3320
  %3834 = vst.msk [vmem:[%s3 + $0x2c4] sm:$0xf] %vm3656, %v3321
  %3835 = vst.msk [vmem:[%s3 + $0x2c8] sm:$0xf] %vm3656, %v3322
  %3836 = vst.msk [vmem:[%s3 + $0x2cc] sm:$0xf] %vm3656, %v3323
  %3837 = vst.msk [vmem:[%s3 + $0x2d0] sm:$0xf] %vm3656, %v3324
  %3838 = vst.msk [vmem:[%s3 + $0x2d4] sm:$0xf] %vm3656, %v3325
  %3839 = vst.msk [vmem:[%s3 + $0x2d8] sm:$0xf] %vm3656, %v3326
  %3840 = vst.msk [vmem:[%s3 + $0x2dc] sm:$0xf] %vm3656, %v3327
  %3841 = vst.msk [vmem:[%s3 + $0x2e0] sm:$0xf] %vm3656, %v3328
  %3842 = vst.msk [vmem:[%s3 + $0x2e4] sm:$0xf] %vm3656, %v3329
  %3843 = vst.msk [vmem:[%s3 + $0x2e8] sm:$0xf] %vm3656, %v3330
  %3844 = vst.msk [vmem:[%s3 + $0x2ec] sm:$0xf] %vm3656, %v3331
  %3845 = vst.msk [vmem:[%s3 + $0x2f0] sm:$0xf] %vm3656, %v3332
  %3846 = vst.msk [vmem:[%s3 + $0x2f4] sm:$0xf] %vm3656, %v3333
  %3847 = vst.msk [vmem:[%s3 + $0x2f8] sm:$0xf] %vm3656, %v3334
  %3848 = vst.msk [vmem:[%s3 + $0x2fc] sm:$0xf] %vm3656, %v3335
  %3849 = vst.msk [vmem:[%s3 + $0x300] sm:$0xf] %vm3656, %v3336
  %3850 = vst.msk [vmem:[%s3 + $0x304] sm:$0xf] %vm3656, %v3337
  %3851 = vst.msk [vmem:[%s3 + $0x308] sm:$0xf] %vm3656, %v3338
  %3852 = vst.msk [vmem:[%s3 + $0x30c] sm:$0xf] %vm3656, %v3339
  %3853 = vst.msk [vmem:[%s3 + $0x310] sm:$0xf] %vm3656, %v3340
  %3854 = vst.msk [vmem:[%s3 + $0x314] sm:$0xf] %vm3656, %v3341
  %3855 = vst.msk [vmem:[%s3 + $0x318] sm:$0xf] %vm3656, %v3342
  %3856 = vst.msk [vmem:[%s3 + $0x31c] sm:$0xf] %vm3656, %v3343
  %3857 = vst.msk [vmem:[%s3 + $0x320] sm:$0xf] %vm3656, %v3344
  %3858 = vst.msk [vmem:[%s3 + $0x324] sm:$0xf] %vm3656, %v3345
  %3859 = vst.msk [vmem:[%s3 + $0x328] sm:$0xf] %vm3656, %v3346
  %3860 = vst.msk [vmem:[%s3 + $0x32c] sm:$0xf] %vm3656, %v3347
  %3861 = vst.msk [vmem:[%s3 + $0x330] sm:$0xf] %vm3656, %v3348
  %3862 = vst.msk [vmem:[%s3 + $0x334] sm:$0xf] %vm3656, %v3349
  %3863 = vst.msk [vmem:[%s3 + $0x338] sm:$0xf] %vm3656, %v3350
  %3864 = vst.msk [vmem:[%s3 + $0x33c] sm:$0xf] %vm3656, %v3351
  %3865 = vst.msk [vmem:[%s3 + $0x340] sm:$0xf] %vm3656, %v3352
  %3866 = vst.msk [vmem:[%s3 + $0x344] sm:$0xf] %vm3656, %v3353
  %3867 = vst.msk [vmem:[%s3 + $0x348] sm:$0xf] %vm3656, %v3354
  %3868 = vst.msk [vmem:[%s3 + $0x34c] sm:$0xf] %vm3656, %v3355
  %3869 = vst.msk [vmem:[%s3 + $0x350] sm:$0xf] %vm3656, %v3356
  %3870 = vst.msk [vmem:[%s3 + $0x354] sm:$0xf] %vm3656, %v3357
  %3871 = vst.msk [vmem:[%s3 + $0x358] sm:$0xf] %vm3656, %v3358
  %3872 = vst.msk [vmem:[%s3 + $0x35c] sm:$0xf] %vm3656, %v3359
  %3873 = vst.msk [vmem:[%s3 + $0x360] sm:$0xf] %vm3656, %v3360
  %3874 = vst.msk [vmem:[%s3 + $0x364] sm:$0xf] %vm3656, %v3361
  %3875 = vst.msk [vmem:[%s3 + $0x368] sm:$0xf] %vm3656, %v3362
  %3876 = vst.msk [vmem:[%s3 + $0x36c] sm:$0xf] %vm3656, %v3363
  %3877 = vst.msk [vmem:[%s3 + $0x370] sm:$0xf] %vm3656, %v3364
  %3878 = vst.msk [vmem:[%s3 + $0x374] sm:$0xf] %vm3656, %v3365
  %3879 = vst.msk [vmem:[%s3 + $0x378] sm:$0xf] %vm3656, %v3366
  %3880 = vst.msk [vmem:[%s3 + $0x37c] sm:$0xf] %vm3656, %v3367
  %3881 = vst.msk [vmem:[%s3 + $0x380] sm:$0xf] %vm3656, %v3368
  %3882 = vst.msk [vmem:[%s3 + $0x384] sm:$0xf] %vm3656, %v3369
  %3883 = vst.msk [vmem:[%s3 + $0x388] sm:$0xf] %vm3656, %v3370
  %3884 = vst.msk [vmem:[%s3 + $0x38c] sm:$0xf] %vm3656, %v3371
  %3885 = vst.msk [vmem:[%s3 + $0x390] sm:$0xf] %vm3656, %v3372
  %3886 = vst.msk [vmem:[%s3 + $0x394] sm:$0xf] %vm3656, %v3373
  %3887 = vst.msk [vmem:[%s3 + $0x398] sm:$0xf] %vm3656, %v3374
  %3888 = vst.msk [vmem:[%s3 + $0x39c] sm:$0xf] %vm3656, %v3375
  %3889 = vst.msk [vmem:[%s3 + $0x3a0] sm:$0xf] %vm3656, %v3376
  %3890 = vst.msk [vmem:[%s3 + $0x3a4] sm:$0xf] %vm3656, %v3377
  %3891 = vst.msk [vmem:[%s3 + $0x3a8] sm:$0xf] %vm3656, %v3378
  %3892 = vst.msk [vmem:[%s3 + $0x3ac] sm:$0xf] %vm3656, %v3379
  %3893 = vst.msk [vmem:[%s3 + $0x3b0] sm:$0xf] %vm3656, %v3380
  %3894 = vst.msk [vmem:[%s3 + $0x3b4] sm:$0xf] %vm3656, %v3381
  %3895 = vst.msk [vmem:[%s3 + $0x3b8] sm:$0xf] %vm3656, %v3382
  %3896 = vst.msk [vmem:[%s3 + $0x3bc] sm:$0xf] %vm3656, %v3383
  %3897 = vst.msk [vmem:[%s3 + $0x3c0] sm:$0xf] %vm3656, %v3384
  %3898 = vst.msk [vmem:[%s3 + $0x3c4] sm:$0xf] %vm3656, %v3385
  %3899 = vst.msk [vmem:[%s3 + $0x3c8] sm:$0xf] %vm3656, %v3386
  %3900 = vst.msk [vmem:[%s3 + $0x3cc] sm:$0xf] %vm3656, %v3387
  %3901 = vst.msk [vmem:[%s3 + $0x3d0] sm:$0xf] %vm3656, %v3388
  %3902 = vst.msk [vmem:[%s3 + $0x3d4] sm:$0xf] %vm3656, %v3389
  %3903 = vst.msk [vmem:[%s3 + $0x3d8] sm:$0xf] %vm3656, %v3390
  %3904 = vst.msk [vmem:[%s3 + $0x3dc] sm:$0xf] %vm3656, %v3391
  %3905 = vst.msk [vmem:[%s3 + $0x3e0] sm:$0xf] %vm3656, %v3392
  %3906 = vst.msk [vmem:[%s3 + $0x3e4] sm:$0xf] %vm3656, %v3393
  %3907 = vst.msk [vmem:[%s3 + $0x3e8] sm:$0xf] %vm3656, %v3394
  %3908 = vst.msk [vmem:[%s3 + $0x3ec] sm:$0xf] %vm3656, %v3395
  %3909 = vst.msk [vmem:[%s3 + $0x3f0] sm:$0xf] %vm3656, %v3396
  %3910 = vst.msk [vmem:[%s3 + $0x3f4] sm:$0xf] %vm3656, %v3397
  %3911 = vst.msk [vmem:[%s3 + $0x3f8] sm:$0xf] %vm3656, %v3398
  %3912 = vst.msk [vmem:[%s3 + $0x3fc] sm:$0xf] %vm3656, %v3399
  // Predicated region
  $region14: #{tpu_custom_call.1} parent=0 // pred_check
    _
  $region15: #{tpu_custom_call.1} parent=0 // pred_check_branch
    %3914 = sbr.rel (0) target = $region17
  $region16: #{tpu_custom_call.1} parent=0 // pred_region
    _
  $region17: #{tpu_custom_call.1} parent=0 // pred_fallthru
    _
  // Predicated region
  $region18: #{tpu_custom_call.1} parent=0 // pred_check
    _
  $region19: #{tpu_custom_call.1} parent=0 // pred_check_branch
    %3916 = sbr.rel (0) target = $region21
  $region20: #{tpu_custom_call.1} parent=0 // pred_region
    _
  $region21: #{tpu_custom_call.1} parent=0 // pred_fallthru
    _

</llo_original>
